<compile_context>
chip_gen: v6e
topology: v6e:2x2x1
jax: 0.10.0
libtpu: 0.0.40
codegen_flags: <defaults>
</compile_context>

<pallas_src>
import functools

import jax
import jax.numpy as jnp
from jax.experimental import pallas as pl
from jax.experimental.pallas import tpu as pltpu

K = 7       # spatial-attention kernel size
PAD = 3     # zero padding for the 7x7 conv
_N_ACC = 4  # independent partial accumulators for the tap loop


def cbam_kernel(x_ref, w1_ref, w2_ref, wsp_ref, o_ref,
                pad_a_ref, pad_m_ref, sa_ref, *, H, W):
    x = x_ref[...]                                   # (Nb, C, H*W) f32, lane-dense
    Nb, C, HW = x.shape

    # ---------------- Channel attention ----------------
    avg_pool = jnp.mean(x, axis=2)                   # (Nb, C)  lane-axis reduction
    max_pool = jnp.max(x, axis=2)                    # (Nb, C)

    # Single MXU pass over both pooled vectors: fc2(relu(fc1([avg; max]))), then sum halves.
    pooled = jnp.concatenate([avg_pool, max_pool], axis=0)            # (2*Nb, C)
    hidden = jnp.maximum(
        jnp.dot(pooled, w1_ref[...], preferred_element_type=jnp.float32), 0.0)
    mlp = jnp.dot(hidden, w2_ref[...], preferred_element_type=jnp.float32)  # (2*Nb, C)
    ca = jax.nn.sigmoid(mlp[:Nb] + mlp[Nb:])                          # (Nb, C)

    out1 = x * ca[:, :, None]                        # ca(emb) * emb   (Nb, C, HW)

    # ---------------- Spatial attention ----------------
    avg_sp = jnp.mean(out1, axis=1)                  # (Nb, HW)  sublane (C) reduction
    max_sp = jnp.max(out1, axis=1)                   # (Nb, HW)

    # Zero-padded (H, W) maps live in VMEM scratch (no concatenate-based padding): zero the
    # buffer, then lay the flat maps down row by row.  The row stores double as the
    # (HW) -> (H, W) relayout, so no awkward in-kernel reshape of the lane dim is needed.
    pad_a_ref[...] = jnp.zeros_like(pad_a_ref)
    pad_m_ref[...] = jnp.zeros_like(pad_m_ref)
    for r in range(H):
        row = slice(r * W, (r + 1) * W)
        pad_a_ref[:, PAD + r, PAD:PAD + W] = avg_sp[:, row]
        pad_m_ref[:, PAD + r, PAD:PAD + W] = max_sp[:, row]
    pa = pad_a_ref[...]                              # (Nb, H+2*PAD, WP), WP % 128 == 0
    pm = pad_m_ref[...]

    # Hoist the 98 scalar-weight reads (and their vector splats) out of the tap loop.
    w_avg = [wsp_ref[t] for t in range(K * K)]
    w_max = [wsp_ref[K * K + t] for t in range(K * K)]

    # 7x7 conv, 49 taps unrolled.  Column (lane) shift is hoisted: one slice per dw
    # (lowers to an XLU lane rotate) instead of one per tap; row shift is a cheap static
    # sublane slice.  Four independent accumulators expose ILP across the VALU lanes.
    accs = [jnp.zeros((Nb, H, W), jnp.float32) for _ in range(_N_ACC)]
    for dw in range(K):
        pa_col = pa[:, :, dw:dw + W]                 # (Nb, H+2*PAD, W)
        pm_col = pm[:, :, dw:dw + W]
        for dh in range(K):
            t = dh * K + dw
            accs[t % _N_ACC] = (accs[t % _N_ACC]
                                + w_avg[t] * pa_col[:, dh:dh + H, :]
                                + w_max[t] * pm_col[:, dh:dh + H, :])
    sa2d = jax.nn.sigmoid((accs[0] + accs[1]) + (accs[2] + accs[3]))   # (Nb, H, W)

    # Back to the lane-dense layout through a small flat scratch (row stores again).
    for r in range(H):
        sa_ref[:, 0, r * W:(r + 1) * W] = sa2d[:, r, :]
    sa = sa_ref[...]                                 # (Nb, 1, HW)

    out2 = out1 * sa                                 # sa(out) * out

    # Residual add + ReLU; (Nb, C, HW) with HW a multiple of 128 -> full unmasked stores.
    o_ref[...] = jnp.maximum(out2 + x, 0.0)


def _pick_batch_block(n, c, hw, itemsize=4, max_block_bytes=2 * 1024 * 1024):
    """Largest batch block that divides N, keeps the activation block modest, and
    (when possible) leaves >= 2 grid steps so both v7x TensorCores get work."""
    per_batch = c * hw * itemsize
    nb = 1
    for d in range(1, n + 1):
        if n % d == 0 and d * per_batch <= max_block_bytes and (n // d >= 2 or n == 1):
            nb = d
    return nb


def cbam_forward(x, w_fc1, w_fc2, w_sp):
    """x: (N, C, H, W); w_fc1: (C//16, C, 1, 1); w_fc2: (C, C//16, 1, 1); w_sp: (1, 2, 7, 7)."""
    N, C, H, W = x.shape
    Ch = w_fc1.shape[0]
    HW = H * W

    # Lane-dense activation layout (the reshape is a free XLA bitcast on contiguous data).
    x_flat = jnp.asarray(x, jnp.float32).reshape(N, C, HW)
    w1 = jnp.asarray(w_fc1[:, :, 0, 0].T, jnp.float32)    # (C, Ch)
    w2 = jnp.asarray(w_fc2[:, :, 0, 0].T, jnp.float32)    # (Ch, C)
    wsp = jnp.asarray(w_sp[0].reshape(-1), jnp.float32)   # (2*7*7,) scalars -> SMEM

    nb = _pick_batch_block(N, C, HW)
    grid = (N // nb,)

    # Padded spatial maps: lane dim rounded up to a multiple of 128.
    HP = H + 2 * PAD
    WP = ((W + 2 * PAD + 127) // 128) * 128

    # Explicit VMEM budget (v7x scoped default is 32 MiB of 64 MiB physical).
    block_bytes = nb * C * HW * 4
    vmem_limit = int(max(32 * 1024 * 1024, min(64 * 1024 * 1024, 16 * block_bytes)))

    kernel = functools.partial(cbam_kernel, H=H, W=W)

    out_flat = pl.pallas_call(
        kernel,
        out_shape=jax.ShapeDtypeStruct((N, C, HW), jnp.float32),
        grid_spec=pltpu.PrefetchScalarGridSpec(
            num_scalar_prefetch=0,
            grid=grid,
            in_specs=[
                pl.BlockSpec((nb, C, HW), lambda n: (n, 0, 0)),
                pl.BlockSpec((C, Ch), lambda n: (0, 0)),
                pl.BlockSpec((Ch, C), lambda n: (0, 0)),
                pl.BlockSpec(memory_space=pltpu.MemorySpace.SMEM),
            ],
            out_specs=pl.BlockSpec((nb, C, HW), lambda n: (n, 0, 0)),
            scratch_shapes=[
                pltpu.VMEM((nb, HP, WP), jnp.float32),   # zero-padded avg map
                pltpu.VMEM((nb, HP, WP), jnp.float32),   # zero-padded max map
                pltpu.VMEM((nb, 1, HW), jnp.float32),    # flat spatial-attention map
            ],
        ),
        compiler_params=pltpu.CompilerParams(
            dimension_semantics=("parallel",),
            vmem_limit_bytes=vmem_limit,
        ),
    )(x_flat, w1, w2, wsp)

    # Note: activations stay f32 so v5e keeps its native VPU path; on v6e/v7x the I/O could
    # optionally be carried in bf16 (f32 accumulation) to halve HBM traffic.
    return out_flat.reshape(N, C, H, W).astype(x.dtype)


def cbam_reference(x, w_fc1, w_fc2, w_sp):
    """Plain-JAX reference mirroring the PyTorch CBAM_Module forward."""
    w1 = w_fc1[:, :, 0, 0]                         # (Ch, C)
    w2 = w_fc2[:, :, 0, 0]                         # (C, Ch)
    avg = jnp.mean(x, axis=(2, 3))
    mx = jnp.max(x, axis=(2, 3))

    def mlp(p):
        return jnp.maximum(p @ w1.T, 0.0) @ w2.T

    ca = jax.nn.sigmoid(mlp(avg) + mlp(mx))[:, :, None, None]
    out1 = ca * x
    avg_sp = jnp.mean(out1, axis=1, keepdims=True)
    max_sp = jnp.max(out1, axis=1, keepdims=True)
    cat = jnp.concatenate([avg_sp, max_sp], axis=1)
    conv = jax.lax.conv_general_dilated(
        cat, w_sp, window_strides=(1, 1), padding=((PAD, PAD), (PAD, PAD)),
        dimension_numbers=("NCHW", "OIHW", "NCHW"))
    sa = jax.nn.sigmoid(conv)
    out2 = sa * out1
    return jnp.maximum(out2 + x, 0.0)


if __name__ == "__main__":
    N, C, H, W = 2, 32, 16, 16         # in_planes=32 so hidden channels C//16 = 2
    Ch = C // 16

    key = jax.random.PRNGKey(0)
    kx, k1, k2, k3 = jax.random.split(key, 4)

    x = jax.random.normal(kx, (N, C, H, W), dtype=jnp.float32)
    w_fc1 = jax.random.normal(k1, (Ch, C, 1, 1), dtype=jnp.float32) * 0.2
    w_fc2 = jax.random.normal(k2, (C, Ch, 1, 1), dtype=jnp.float32) * 0.2
    w_sp = jax.random.normal(k3, (1, 2, K, K), dtype=jnp.float32) * 0.1

    out = cbam_forward(x, w_fc1, w_fc2, w_sp)
    jax.block_until_ready(out)

    ref = cbam_reference(x, w_fc1, w_fc2, w_sp)
    assert out.shape == ref.shape
    err = float(jnp.max(jnp.abs(out - ref)))
    assert jnp.allclose(out, ref, atol=1e-4, rtol=1e-4), err

    print("KERNEL_OK")
</pallas_src>

<mosaic_0001>
module attributes {stable_mosaic.version = 11 : i64} {
  func.func @cbam_kernel(%arg0: i32, %arg1: memref<1x32x256xf32, #tpu.memory_space<vmem>>, %arg2: memref<32x2xf32, #tpu.memory_space<vmem>>, %arg3: memref<2x32xf32, #tpu.memory_space<vmem>>, %arg4: memref<98xf32, #tpu.memory_space<smem>>, %arg5: memref<1x32x256xf32, #tpu.memory_space<vmem>>, %arg6: memref<1x22x128xf32, #tpu.memory_space<vmem>>, %arg7: memref<1x22x128xf32, #tpu.memory_space<vmem>>, %arg8: memref<1x1x256xf32, #tpu.memory_space<vmem>>) attributes {dimension_semantics = [#tpu.dimension_semantics<parallel>], iteration_bounds = array<i64: 2>, scalar_prefetch = 0 : i64, scratch_operands = 3 : i64, tpu.core_type = #tpu.core_type<tc>, window_params = [{transform_indices = @transform_0, window_bounds = array<i64: 1, 32, 256>}, {pipeline_mode = #tpu.pipeline_mode<synchronous>, transform_indices = @transform_1, window_bounds = array<i64: 32, 2>}, {pipeline_mode = #tpu.pipeline_mode<synchronous>, transform_indices = @transform_2, window_bounds = array<i64: 2, 32>}, {transform_indices = @transform_3, window_bounds = array<i64: 98>}, {transform_indices = @transform_4, window_bounds = array<i64: 1, 32, 256>}]} {
    %c0 = arith.constant 0 : index
    %c0_0 = arith.constant 0 : index
    %c0_1 = arith.constant 0 : index
    %0 = vector.load %arg1[%c0, %c0_0, %c0_1] : memref<1x32x256xf32, #tpu.memory_space<vmem>>, vector<1x32x256xf32>
    %cst = arith.constant dense<0.000000e+00> : vector<1x32xf32>
    %1 = vector.multi_reduction <add>, %0, %cst [2] : vector<1x32x256xf32> to vector<1x32xf32>
    %cst_2 = arith.constant 2.560000e+02 : f32
    %2 = vector.broadcast %cst_2 : f32 to vector<1x32xf32>
    %3 = arith.divf %1, %2 : vector<1x32xf32>
    %cst_3 = arith.constant dense<0xFF800000> : vector<1x32xf32>
    %4 = vector.multi_reduction <maximumf>, %0, %cst_3 [2] : vector<1x32x256xf32> to vector<1x32xf32>
    %5 = tpu.concatenate %3, %4 in 0 : vector<1x32xf32>, vector<1x32xf32> -> vector<2x32xf32>
    %c0_4 = arith.constant 0 : index
    %c0_5 = arith.constant 0 : index
    %6 = vector.load %arg2[%c0_4, %c0_5] : memref<32x2xf32, #tpu.memory_space<vmem>>, vector<32x2xf32>
    %cst_6 = arith.constant dense<0.000000e+00> : vector<2x2xf32>
    %7 = tpu.matmul %5, %6, %cst_6 {dimension_numbers = #tpu.dot_dimension_numbers<[1], [0], [0], [1], [0, 0, 1, 1], [], []>} : vector<2x32xf32>, vector<32x2xf32>, vector<2x2xf32> -> vector<2x2xf32>
    %cst_7 = arith.constant 0.000000e+00 : f32
    %8 = vector.broadcast %cst_7 : f32 to vector<2x2xf32>
    %9 = arith.maximumf %7, %8 : vector<2x2xf32>
    %c0_8 = arith.constant 0 : index
    %c0_9 = arith.constant 0 : index
    %10 = vector.load %arg3[%c0_8, %c0_9] : memref<2x32xf32, #tpu.memory_space<vmem>>, vector<2x32xf32>
    %cst_10 = arith.constant dense<0.000000e+00> : vector<2x32xf32>
    %11 = tpu.matmul %9, %10, %cst_10 {dimension_numbers = #tpu.dot_dimension_numbers<[1], [0], [0], [1], [0, 0, 1, 1], [], []>} : vector<2x2xf32>, vector<2x32xf32>, vector<2x32xf32> -> vector<2x32xf32>
    %12 = vector.extract_strided_slice %11 {offsets = [0, 0], sizes = [1, 32], strides = [1, 1]} : vector<2x32xf32> to vector<1x32xf32>
    %13 = vector.extract_strided_slice %11 {offsets = [1, 0], sizes = [1, 32], strides = [1, 1]} : vector<2x32xf32> to vector<1x32xf32>
    %14 = arith.addf %12, %13 : vector<1x32xf32>
    %15 = arith.negf %14 : vector<1x32xf32>
    %16 = math.exp %15 : vector<1x32xf32>
    %cst_11 = arith.constant 1.000000e+00 : f32
    %17 = vector.broadcast %cst_11 : f32 to vector<1x32xf32>
    %18 = arith.addf %17, %16 : vector<1x32xf32>
    %19 = arith.divf %17, %18 : vector<1x32xf32>
    %20 = vector.shape_cast %19 : vector<1x32xf32> to vector<1x32x1xf32>
    %21 = vector.broadcast %20 : vector<1x32x1xf32> to vector<1x32x256xf32>
    %22 = arith.mulf %0, %21 : vector<1x32x256xf32>
    %cst_12 = arith.constant dense<0.000000e+00> : vector<1x256xf32>
    %23 = vector.multi_reduction <add>, %22, %cst_12 [1] : vector<1x32x256xf32> to vector<1x256xf32>
    %cst_13 = arith.constant 3.200000e+01 : f32
    %24 = vector.broadcast %cst_13 : f32 to vector<1x256xf32>
    %25 = arith.divf %23, %24 : vector<1x256xf32>
    %cst_14 = arith.constant dense<0xFF800000> : vector<1x256xf32>
    %26 = vector.multi_reduction <maximumf>, %22, %cst_14 [1] : vector<1x32x256xf32> to vector<1x256xf32>
    %cst_15 = arith.constant 0.000000e+00 : f32
    %27 = vector.broadcast %cst_15 : f32 to vector<1x22x128xf32>
    %c0_16 = arith.constant 0 : index
    %c0_17 = arith.constant 0 : index
    %c0_18 = arith.constant 0 : index
    %28 = vector.load %arg6[%c0_16, %c0_17, %c0_18] : memref<1x22x128xf32, #tpu.memory_space<vmem>>, vector<1x22x128xf32>
    tpu.vector_store %arg6[%c0_16, %c0_17, %c0_18], %27 {strides = array<i32>} : memref<1x22x128xf32, #tpu.memory_space<vmem>>, vector<1x22x128xf32>,
    %cst_19 = arith.constant 0.000000e+00 : f32
    %29 = vector.broadcast %cst_19 : f32 to vector<1x22x128xf32>
    %c0_20 = arith.constant 0 : index
    %c0_21 = arith.constant 0 : index
    %c0_22 = arith.constant 0 : index
    %30 = vector.load %arg7[%c0_20, %c0_21, %c0_22] : memref<1x22x128xf32, #tpu.memory_space<vmem>>, vector<1x22x128xf32>
    tpu.vector_store %arg7[%c0_20, %c0_21, %c0_22], %29 {strides = array<i32>} : memref<1x22x128xf32, #tpu.memory_space<vmem>>, vector<1x22x128xf32>,
    %31 = vector.extract_strided_slice %25 {offsets = [0, 0], sizes = [1, 16], strides = [1, 1]} : vector<1x256xf32> to vector<1x16xf32>
    %c0_23 = arith.constant 0 : index
    %c3 = arith.constant 3 : index
    %c3_24 = arith.constant 3 : index
    %32 = vector.load %arg6[%c0_23, %c3, %c3_24] : memref<1x22x128xf32, #tpu.memory_space<vmem>>, vector<1x1x16xf32>
    %33 = vector.shape_cast %32 : vector<1x1x16xf32> to vector<1x16xf32>
    %34 = vector.shape_cast %31 : vector<1x16xf32> to vector<1x1x16xf32>
    tpu.vector_store %arg6[%c0_23, %c3, %c3_24], %34 {strides = array<i32>} : memref<1x22x128xf32, #tpu.memory_space<vmem>>, vector<1x1x16xf32>,
    %35 = vector.extract_strided_slice %26 {offsets = [0, 0], sizes = [1, 16], strides = [1, 1]} : vector<1x256xf32> to vector<1x16xf32>
    %c0_25 = arith.constant 0 : index
    %c3_26 = arith.constant 3 : index
    %c3_27 = arith.constant 3 : index
    %36 = vector.load %arg7[%c0_25, %c3_26, %c3_27] : memref<1x22x128xf32, #tpu.memory_space<vmem>>, vector<1x1x16xf32>
    %37 = vector.shape_cast %36 : vector<1x1x16xf32> to vector<1x16xf32>
    %38 = vector.shape_cast %35 : vector<1x16xf32> to vector<1x1x16xf32>
    tpu.vector_store %arg7[%c0_25, %c3_26, %c3_27], %38 {strides = array<i32>} : memref<1x22x128xf32, #tpu.memory_space<vmem>>, vector<1x1x16xf32>,
    %39 = vector.extract_strided_slice %25 {offsets = [0, 16], sizes = [1, 16], strides = [1, 1]} : vector<1x256xf32> to vector<1x16xf32>
    %c0_28 = arith.constant 0 : index
    %c4 = arith.constant 4 : index
    %c3_29 = arith.constant 3 : index
    %40 = vector.load %arg6[%c0_28, %c4, %c3_29] : memref<1x22x128xf32, #tpu.memory_space<vmem>>, vector<1x1x16xf32>
    %41 = vector.shape_cast %40 : vector<1x1x16xf32> to vector<1x16xf32>
    %42 = vector.shape_cast %39 : vector<1x16xf32> to vector<1x1x16xf32>
    tpu.vector_store %arg6[%c0_28, %c4, %c3_29], %42 {strides = array<i32>} : memref<1x22x128xf32, #tpu.memory_space<vmem>>, vector<1x1x16xf32>,
    %43 = vector.extract_strided_slice %26 {offsets = [0, 16], sizes = [1, 16], strides = [1, 1]} : vector<1x256xf32> to vector<1x16xf32>
    %c0_30 = arith.constant 0 : index
    %c4_31 = arith.constant 4 : index
    %c3_32 = arith.constant 3 : index
    %44 = vector.load %arg7[%c0_30, %c4_31, %c3_32] : memref<1x22x128xf32, #tpu.memory_space<vmem>>, vector<1x1x16xf32>
    %45 = vector.shape_cast %44 : vector<1x1x16xf32> to vector<1x16xf32>
    %46 = vector.shape_cast %43 : vector<1x16xf32> to vector<1x1x16xf32>
    tpu.vector_store %arg7[%c0_30, %c4_31, %c3_32], %46 {strides = array<i32>} : memref<1x22x128xf32, #tpu.memory_space<vmem>>, vector<1x1x16xf32>,
    %47 = vector.extract_strided_slice %25 {offsets = [0, 32], sizes = [1, 16], strides = [1, 1]} : vector<1x256xf32> to vector<1x16xf32>
    %c0_33 = arith.constant 0 : index
    %c5 = arith.constant 5 : index
    %c3_34 = arith.constant 3 : index
    %48 = vector.load %arg6[%c0_33, %c5, %c3_34] : memref<1x22x128xf32, #tpu.memory_space<vmem>>, vector<1x1x16xf32>
    %49 = vector.shape_cast %48 : vector<1x1x16xf32> to vector<1x16xf32>
    %50 = vector.shape_cast %47 : vector<1x16xf32> to vector<1x1x16xf32>
    tpu.vector_store %arg6[%c0_33, %c5, %c3_34], %50 {strides = array<i32>} : memref<1x22x128xf32, #tpu.memory_space<vmem>>, vector<1x1x16xf32>,
    %51 = vector.extract_strided_slice %26 {offsets = [0, 32], sizes = [1, 16], strides = [1, 1]} : vector<1x256xf32> to vector<1x16xf32>
    %c0_35 = arith.constant 0 : index
    %c5_36 = arith.constant 5 : index
    %c3_37 = arith.constant 3 : index
    %52 = vector.load %arg7[%c0_35, %c5_36, %c3_37] : memref<1x22x128xf32, #tpu.memory_space<vmem>>, vector<1x1x16xf32>
    %53 = vector.shape_cast %52 : vector<1x1x16xf32> to vector<1x16xf32>
    %54 = vector.shape_cast %51 : vector<1x16xf32> to vector<1x1x16xf32>
    tpu.vector_store %arg7[%c0_35, %c5_36, %c3_37], %54 {strides = array<i32>} : memref<1x22x128xf32, #tpu.memory_space<vmem>>, vector<1x1x16xf32>,
    %55 = vector.extract_strided_slice %25 {offsets = [0, 48], sizes = [1, 16], strides = [1, 1]} : vector<1x256xf32> to vector<1x16xf32>
    %c0_38 = arith.constant 0 : index
    %c6 = arith.constant 6 : index
    %c3_39 = arith.constant 3 : index
    %56 = vector.load %arg6[%c0_38, %c6, %c3_39] : memref<1x22x128xf32, #tpu.memory_space<vmem>>, vector<1x1x16xf32>
    %57 = vector.shape_cast %56 : vector<1x1x16xf32> to vector<1x16xf32>
    %58 = vector.shape_cast %55 : vector<1x16xf32> to vector<1x1x16xf32>
    tpu.vector_store %arg6[%c0_38, %c6, %c3_39], %58 {strides = array<i32>} : memref<1x22x128xf32, #tpu.memory_space<vmem>>, vector<1x1x16xf32>,
    %59 = vector.extract_strided_slice %26 {offsets = [0, 48], sizes = [1, 16], strides = [1, 1]} : vector<1x256xf32> to vector<1x16xf32>
    %c0_40 = arith.constant 0 : index
    %c6_41 = arith.constant 6 : index
    %c3_42 = arith.constant 3 : index
    %60 = vector.load %arg7[%c0_40, %c6_41, %c3_42] : memref<1x22x128xf32, #tpu.memory_space<vmem>>, vector<1x1x16xf32>
    %61 = vector.shape_cast %60 : vector<1x1x16xf32> to vector<1x16xf32>
    %62 = vector.shape_cast %59 : vector<1x16xf32> to vector<1x1x16xf32>
    tpu.vector_store %arg7[%c0_40, %c6_41, %c3_42], %62 {strides = array<i32>} : memref<1x22x128xf32, #tpu.memory_space<vmem>>, vector<1x1x16xf32>,
    %63 = vector.extract_strided_slice %25 {offsets = [0, 64], sizes = [1, 16], strides = [1, 1]} : vector<1x256xf32> to vector<1x16xf32>
    %c0_43 = arith.constant 0 : index
    %c7 = arith.constant 7 : index
    %c3_44 = arith.constant 3 : index
    %64 = vector.load %arg6[%c0_43, %c7, %c3_44] : memref<1x22x128xf32, #tpu.memory_space<vmem>>, vector<1x1x16xf32>
    %65 = vector.shape_cast %64 : vector<1x1x16xf32> to vector<1x16xf32>
    %66 = vector.shape_cast %63 : vector<1x16xf32> to vector<1x1x16xf32>
    tpu.vector_store %arg6[%c0_43, %c7, %c3_44], %66 {strides = array<i32>} : memref<1x22x128xf32, #tpu.memory_space<vmem>>, vector<1x1x16xf32>,
    %67 = vector.extract_strided_slice %26 {offsets = [0, 64], sizes = [1, 16], strides = [1, 1]} : vector<1x256xf32> to vector<1x16xf32>
    %c0_45 = arith.constant 0 : index
    %c7_46 = arith.constant 7 : index
    %c3_47 = arith.constant 3 : index
    %68 = vector.load %arg7[%c0_45, %c7_46, %c3_47] : memref<1x22x128xf32, #tpu.memory_space<vmem>>, vector<1x1x16xf32>
    %69 = vector.shape_cast %68 : vector<1x1x16xf32> to vector<1x16xf32>
    %70 = vector.shape_cast %67 : vector<1x16xf32> to vector<1x1x16xf32>
    tpu.vector_store %arg7[%c0_45, %c7_46, %c3_47], %70 {strides = array<i32>} : memref<1x22x128xf32, #tpu.memory_space<vmem>>, vector<1x1x16xf32>,
    %71 = vector.extract_strided_slice %25 {offsets = [0, 80], sizes = [1, 16], strides = [1, 1]} : vector<1x256xf32> to vector<1x16xf32>
    %c0_48 = arith.constant 0 : index
    %c8 = arith.constant 8 : index
    %c3_49 = arith.constant 3 : index
    %72 = vector.load %arg6[%c0_48, %c8, %c3_49] : memref<1x22x128xf32, #tpu.memory_space<vmem>>, vector<1x1x16xf32>
    %73 = vector.shape_cast %72 : vector<1x1x16xf32> to vector<1x16xf32>
    %74 = vector.shape_cast %71 : vector<1x16xf32> to vector<1x1x16xf32>
    tpu.vector_store %arg6[%c0_48, %c8, %c3_49], %74 {strides = array<i32>} : memref<1x22x128xf32, #tpu.memory_space<vmem>>, vector<1x1x16xf32>,
    %75 = vector.extract_strided_slice %26 {offsets = [0, 80], sizes = [1, 16], strides = [1, 1]} : vector<1x256xf32> to vector<1x16xf32>
    %c0_50 = arith.constant 0 : index
    %c8_51 = arith.constant 8 : index
    %c3_52 = arith.constant 3 : index
    %76 = vector.load %arg7[%c0_50, %c8_51, %c3_52] : memref<1x22x128xf32, #tpu.memory_space<vmem>>, vector<1x1x16xf32>
    %77 = vector.shape_cast %76 : vector<1x1x16xf32> to vector<1x16xf32>
    %78 = vector.shape_cast %75 : vector<1x16xf32> to vector<1x1x16xf32>
    tpu.vector_store %arg7[%c0_50, %c8_51, %c3_52], %78 {strides = array<i32>} : memref<1x22x128xf32, #tpu.memory_space<vmem>>, vector<1x1x16xf32>,
    %79 = vector.extract_strided_slice %25 {offsets = [0, 96], sizes = [1, 16], strides = [1, 1]} : vector<1x256xf32> to vector<1x16xf32>
    %c0_53 = arith.constant 0 : index
    %c9 = arith.constant 9 : index
    %c3_54 = arith.constant 3 : index
    %80 = vector.load %arg6[%c0_53, %c9, %c3_54] : memref<1x22x128xf32, #tpu.memory_space<vmem>>, vector<1x1x16xf32>
    %81 = vector.shape_cast %80 : vector<1x1x16xf32> to vector<1x16xf32>
    %82 = vector.shape_cast %79 : vector<1x16xf32> to vector<1x1x16xf32>
    tpu.vector_store %arg6[%c0_53, %c9, %c3_54], %82 {strides = array<i32>} : memref<1x22x128xf32, #tpu.memory_space<vmem>>, vector<1x1x16xf32>,
    %83 = vector.extract_strided_slice %26 {offsets = [0, 96], sizes = [1, 16], strides = [1, 1]} : vector<1x256xf32> to vector<1x16xf32>
    %c0_55 = arith.constant 0 : index
    %c9_56 = arith.constant 9 : index
    %c3_57 = arith.constant 3 : index
    %84 = vector.load %arg7[%c0_55, %c9_56, %c3_57] : memref<1x22x128xf32, #tpu.memory_space<vmem>>, vector<1x1x16xf32>
    %85 = vector.shape_cast %84 : vector<1x1x16xf32> to vector<1x16xf32>
    %86 = vector.shape_cast %83 : vector<1x16xf32> to vector<1x1x16xf32>
    tpu.vector_store %arg7[%c0_55, %c9_56, %c3_57], %86 {strides = array<i32>} : memref<1x22x128xf32, #tpu.memory_space<vmem>>, vector<1x1x16xf32>,
    %87 = vector.extract_strided_slice %25 {offsets = [0, 112], sizes = [1, 16], strides = [1, 1]} : vector<1x256xf32> to vector<1x16xf32>
    %c0_58 = arith.constant 0 : index
    %c10 = arith.constant 10 : index
    %c3_59 = arith.constant 3 : index
    %88 = vector.load %arg6[%c0_58, %c10, %c3_59] : memref<1x22x128xf32, #tpu.memory_space<vmem>>, vector<1x1x16xf32>
    %89 = vector.shape_cast %88 : vector<1x1x16xf32> to vector<1x16xf32>
    %90 = vector.shape_cast %87 : vector<1x16xf32> to vector<1x1x16xf32>
    tpu.vector_store %arg6[%c0_58, %c10, %c3_59], %90 {strides = array<i32>} : memref<1x22x128xf32, #tpu.memory_space<vmem>>, vector<1x1x16xf32>,
    %91 = vector.extract_strided_slice %26 {offsets = [0, 112], sizes = [1, 16], strides = [1, 1]} : vector<1x256xf32> to vector<1x16xf32>
    %c0_60 = arith.constant 0 : index
    %c10_61 = arith.constant 10 : index
    %c3_62 = arith.constant 3 : index
    %92 = vector.load %arg7[%c0_60, %c10_61, %c3_62] : memref<1x22x128xf32, #tpu.memory_space<vmem>>, vector<1x1x16xf32>
    %93 = vector.shape_cast %92 : vector<1x1x16xf32> to vector<1x16xf32>
    %94 = vector.shape_cast %91 : vector<1x16xf32> to vector<1x1x16xf32>
    tpu.vector_store %arg7[%c0_60, %c10_61, %c3_62], %94 {strides = array<i32>} : memref<1x22x128xf32, #tpu.memory_space<vmem>>, vector<1x1x16xf32>,
    %95 = vector.extract_strided_slice %25 {offsets = [0, 128], sizes = [1, 16], strides = [1, 1]} : vector<1x256xf32> to vector<1x16xf32>
    %c0_63 = arith.constant 0 : index
    %c11 = arith.constant 11 : index
    %c3_64 = arith.constant 3 : index
    %96 = vector.load %arg6[%c0_63, %c11, %c3_64] : memref<1x22x128xf32, #tpu.memory_space<vmem>>, vector<1x1x16xf32>
    %97 = vector.shape_cast %96 : vector<1x1x16xf32> to vector<1x16xf32>
    %98 = vector.shape_cast %95 : vector<1x16xf32> to vector<1x1x16xf32>
    tpu.vector_store %arg6[%c0_63, %c11, %c3_64], %98 {strides = array<i32>} : memref<1x22x128xf32, #tpu.memory_space<vmem>>, vector<1x1x16xf32>,
    %99 = vector.extract_strided_slice %26 {offsets = [0, 128], sizes = [1, 16], strides = [1, 1]} : vector<1x256xf32> to vector<1x16xf32>
    %c0_65 = arith.constant 0 : index
    %c11_66 = arith.constant 11 : index
    %c3_67 = arith.constant 3 : index
    %100 = vector.load %arg7[%c0_65, %c11_66, %c3_67] : memref<1x22x128xf32, #tpu.memory_space<vmem>>, vector<1x1x16xf32>
    %101 = vector.shape_cast %100 : vector<1x1x16xf32> to vector<1x16xf32>
    %102 = vector.shape_cast %99 : vector<1x16xf32> to vector<1x1x16xf32>
    tpu.vector_store %arg7[%c0_65, %c11_66, %c3_67], %102 {strides = array<i32>} : memref<1x22x128xf32, #tpu.memory_space<vmem>>, vector<1x1x16xf32>,
    %103 = vector.extract_strided_slice %25 {offsets = [0, 144], sizes = [1, 16], strides = [1, 1]} : vector<1x256xf32> to vector<1x16xf32>
    %c0_68 = arith.constant 0 : index
    %c12 = arith.constant 12 : index
    %c3_69 = arith.constant 3 : index
    %104 = vector.load %arg6[%c0_68, %c12, %c3_69] : memref<1x22x128xf32, #tpu.memory_space<vmem>>, vector<1x1x16xf32>
    %105 = vector.shape_cast %104 : vector<1x1x16xf32> to vector<1x16xf32>
    %106 = vector.shape_cast %103 : vector<1x16xf32> to vector<1x1x16xf32>
    tpu.vector_store %arg6[%c0_68, %c12, %c3_69], %106 {strides = array<i32>} : memref<1x22x128xf32, #tpu.memory_space<vmem>>, vector<1x1x16xf32>,
    %107 = vector.extract_strided_slice %26 {offsets = [0, 144], sizes = [1, 16], strides = [1, 1]} : vector<1x256xf32> to vector<1x16xf32>
    %c0_70 = arith.constant 0 : index
    %c12_71 = arith.constant 12 : index
    %c3_72 = arith.constant 3 : index
    %108 = vector.load %arg7[%c0_70, %c12_71, %c3_72] : memref<1x22x128xf32, #tpu.memory_space<vmem>>, vector<1x1x16xf32>
    %109 = vector.shape_cast %108 : vector<1x1x16xf32> to vector<1x16xf32>
    %110 = vector.shape_cast %107 : vector<1x16xf32> to vector<1x1x16xf32>
    tpu.vector_store %arg7[%c0_70, %c12_71, %c3_72], %110 {strides = array<i32>} : memref<1x22x128xf32, #tpu.memory_space<vmem>>, vector<1x1x16xf32>,
    %111 = vector.extract_strided_slice %25 {offsets = [0, 160], sizes = [1, 16], strides = [1, 1]} : vector<1x256xf32> to vector<1x16xf32>
    %c0_73 = arith.constant 0 : index
    %c13 = arith.constant 13 : index
    %c3_74 = arith.constant 3 : index
    %112 = vector.load %arg6[%c0_73, %c13, %c3_74] : memref<1x22x128xf32, #tpu.memory_space<vmem>>, vector<1x1x16xf32>
    %113 = vector.shape_cast %112 : vector<1x1x16xf32> to vector<1x16xf32>
    %114 = vector.shape_cast %111 : vector<1x16xf32> to vector<1x1x16xf32>
    tpu.vector_store %arg6[%c0_73, %c13, %c3_74], %114 {strides = array<i32>} : memref<1x22x128xf32, #tpu.memory_space<vmem>>, vector<1x1x16xf32>,
    %115 = vector.extract_strided_slice %26 {offsets = [0, 160], sizes = [1, 16], strides = [1, 1]} : vector<1x256xf32> to vector<1x16xf32>
    %c0_75 = arith.constant 0 : index
    %c13_76 = arith.constant 13 : index
    %c3_77 = arith.constant 3 : index
    %116 = vector.load %arg7[%c0_75, %c13_76, %c3_77] : memref<1x22x128xf32, #tpu.memory_space<vmem>>, vector<1x1x16xf32>
    %117 = vector.shape_cast %116 : vector<1x1x16xf32> to vector<1x16xf32>
    %118 = vector.shape_cast %115 : vector<1x16xf32> to vector<1x1x16xf32>
    tpu.vector_store %arg7[%c0_75, %c13_76, %c3_77], %118 {strides = array<i32>} : memref<1x22x128xf32, #tpu.memory_space<vmem>>, vector<1x1x16xf32>,
    %119 = vector.extract_strided_slice %25 {offsets = [0, 176], sizes = [1, 16], strides = [1, 1]} : vector<1x256xf32> to vector<1x16xf32>
    %c0_78 = arith.constant 0 : index
    %c14 = arith.constant 14 : index
    %c3_79 = arith.constant 3 : index
    %120 = vector.load %arg6[%c0_78, %c14, %c3_79] : memref<1x22x128xf32, #tpu.memory_space<vmem>>, vector<1x1x16xf32>
    %121 = vector.shape_cast %120 : vector<1x1x16xf32> to vector<1x16xf32>
    %122 = vector.shape_cast %119 : vector<1x16xf32> to vector<1x1x16xf32>
    tpu.vector_store %arg6[%c0_78, %c14, %c3_79], %122 {strides = array<i32>} : memref<1x22x128xf32, #tpu.memory_space<vmem>>, vector<1x1x16xf32>,
    %123 = vector.extract_strided_slice %26 {offsets = [0, 176], sizes = [1, 16], strides = [1, 1]} : vector<1x256xf32> to vector<1x16xf32>
    %c0_80 = arith.constant 0 : index
    %c14_81 = arith.constant 14 : index
    %c3_82 = arith.constant 3 : index
    %124 = vector.load %arg7[%c0_80, %c14_81, %c3_82] : memref<1x22x128xf32, #tpu.memory_space<vmem>>, vector<1x1x16xf32>
    %125 = vector.shape_cast %124 : vector<1x1x16xf32> to vector<1x16xf32>
    %126 = vector.shape_cast %123 : vector<1x16xf32> to vector<1x1x16xf32>
    tpu.vector_store %arg7[%c0_80, %c14_81, %c3_82], %126 {strides = array<i32>} : memref<1x22x128xf32, #tpu.memory_space<vmem>>, vector<1x1x16xf32>,
    %127 = vector.extract_strided_slice %25 {offsets = [0, 192], sizes = [1, 16], strides = [1, 1]} : vector<1x256xf32> to vector<1x16xf32>
    %c0_83 = arith.constant 0 : index
    %c15 = arith.constant 15 : index
    %c3_84 = arith.constant 3 : index
    %128 = vector.load %arg6[%c0_83, %c15, %c3_84] : memref<1x22x128xf32, #tpu.memory_space<vmem>>, vector<1x1x16xf32>
    %129 = vector.shape_cast %128 : vector<1x1x16xf32> to vector<1x16xf32>
    %130 = vector.shape_cast %127 : vector<1x16xf32> to vector<1x1x16xf32>
    tpu.vector_store %arg6[%c0_83, %c15, %c3_84], %130 {strides = array<i32>} : memref<1x22x128xf32, #tpu.memory_space<vmem>>, vector<1x1x16xf32>,
    %131 = vector.extract_strided_slice %26 {offsets = [0, 192], sizes = [1, 16], strides = [1, 1]} : vector<1x256xf32> to vector<1x16xf32>
    %c0_85 = arith.constant 0 : index
    %c15_86 = arith.constant 15 : index
    %c3_87 = arith.constant 3 : index
    %132 = vector.load %arg7[%c0_85, %c15_86, %c3_87] : memref<1x22x128xf32, #tpu.memory_space<vmem>>, vector<1x1x16xf32>
    %133 = vector.shape_cast %132 : vector<1x1x16xf32> to vector<1x16xf32>
    %134 = vector.shape_cast %131 : vector<1x16xf32> to vector<1x1x16xf32>
    tpu.vector_store %arg7[%c0_85, %c15_86, %c3_87], %134 {strides = array<i32>} : memref<1x22x128xf32, #tpu.memory_space<vmem>>, vector<1x1x16xf32>,
    %135 = vector.extract_strided_slice %25 {offsets = [0, 208], sizes = [1, 16], strides = [1, 1]} : vector<1x256xf32> to vector<1x16xf32>
    %c0_88 = arith.constant 0 : index
    %c16 = arith.constant 16 : index
    %c3_89 = arith.constant 3 : index
    %136 = vector.load %arg6[%c0_88, %c16, %c3_89] : memref<1x22x128xf32, #tpu.memory_space<vmem>>, vector<1x1x16xf32>
    %137 = vector.shape_cast %136 : vector<1x1x16xf32> to vector<1x16xf32>
    %138 = vector.shape_cast %135 : vector<1x16xf32> to vector<1x1x16xf32>
    tpu.vector_store %arg6[%c0_88, %c16, %c3_89], %138 {strides = array<i32>} : memref<1x22x128xf32, #tpu.memory_space<vmem>>, vector<1x1x16xf32>,
    %139 = vector.extract_strided_slice %26 {offsets = [0, 208], sizes = [1, 16], strides = [1, 1]} : vector<1x256xf32> to vector<1x16xf32>
    %c0_90 = arith.constant 0 : index
    %c16_91 = arith.constant 16 : index
    %c3_92 = arith.constant 3 : index
    %140 = vector.load %arg7[%c0_90, %c16_91, %c3_92] : memref<1x22x128xf32, #tpu.memory_space<vmem>>, vector<1x1x16xf32>
    %141 = vector.shape_cast %140 : vector<1x1x16xf32> to vector<1x16xf32>
    %142 = vector.shape_cast %139 : vector<1x16xf32> to vector<1x1x16xf32>
    tpu.vector_store %arg7[%c0_90, %c16_91, %c3_92], %142 {strides = array<i32>} : memref<1x22x128xf32, #tpu.memory_space<vmem>>, vector<1x1x16xf32>,
    %143 = vector.extract_strided_slice %25 {offsets = [0, 224], sizes = [1, 16], strides = [1, 1]} : vector<1x256xf32> to vector<1x16xf32>
    %c0_93 = arith.constant 0 : index
    %c17 = arith.constant 17 : index
    %c3_94 = arith.constant 3 : index
    %144 = vector.load %arg6[%c0_93, %c17, %c3_94] : memref<1x22x128xf32, #tpu.memory_space<vmem>>, vector<1x1x16xf32>
    %145 = vector.shape_cast %144 : vector<1x1x16xf32> to vector<1x16xf32>
    %146 = vector.shape_cast %143 : vector<1x16xf32> to vector<1x1x16xf32>
    tpu.vector_store %arg6[%c0_93, %c17, %c3_94], %146 {strides = array<i32>} : memref<1x22x128xf32, #tpu.memory_space<vmem>>, vector<1x1x16xf32>,
    %147 = vector.extract_strided_slice %26 {offsets = [0, 224], sizes = [1, 16], strides = [1, 1]} : vector<1x256xf32> to vector<1x16xf32>
    %c0_95 = arith.constant 0 : index
    %c17_96 = arith.constant 17 : index
    %c3_97 = arith.constant 3 : index
    %148 = vector.load %arg7[%c0_95, %c17_96, %c3_97] : memref<1x22x128xf32, #tpu.memory_space<vmem>>, vector<1x1x16xf32>
    %149 = vector.shape_cast %148 : vector<1x1x16xf32> to vector<1x16xf32>
    %150 = vector.shape_cast %147 : vector<1x16xf32> to vector<1x1x16xf32>
    tpu.vector_store %arg7[%c0_95, %c17_96, %c3_97], %150 {strides = array<i32>} : memref<1x22x128xf32, #tpu.memory_space<vmem>>, vector<1x1x16xf32>,
    %151 = vector.extract_strided_slice %25 {offsets = [0, 240], sizes = [1, 16], strides = [1, 1]} : vector<1x256xf32> to vector<1x16xf32>
    %c0_98 = arith.constant 0 : index
    %c18 = arith.constant 18 : index
    %c3_99 = arith.constant 3 : index
    %152 = vector.load %arg6[%c0_98, %c18, %c3_99] : memref<1x22x128xf32, #tpu.memory_space<vmem>>, vector<1x1x16xf32>
    %153 = vector.shape_cast %152 : vector<1x1x16xf32> to vector<1x16xf32>
    %154 = vector.shape_cast %151 : vector<1x16xf32> to vector<1x1x16xf32>
    tpu.vector_store %arg6[%c0_98, %c18, %c3_99], %154 {strides = array<i32>} : memref<1x22x128xf32, #tpu.memory_space<vmem>>, vector<1x1x16xf32>,
    %155 = vector.extract_strided_slice %26 {offsets = [0, 240], sizes = [1, 16], strides = [1, 1]} : vector<1x256xf32> to vector<1x16xf32>
    %c0_100 = arith.constant 0 : index
    %c18_101 = arith.constant 18 : index
    %c3_102 = arith.constant 3 : index
    %156 = vector.load %arg7[%c0_100, %c18_101, %c3_102] : memref<1x22x128xf32, #tpu.memory_space<vmem>>, vector<1x1x16xf32>
    %157 = vector.shape_cast %156 : vector<1x1x16xf32> to vector<1x16xf32>
    %158 = vector.shape_cast %155 : vector<1x16xf32> to vector<1x1x16xf32>
    tpu.vector_store %arg7[%c0_100, %c18_101, %c3_102], %158 {strides = array<i32>} : memref<1x22x128xf32, #tpu.memory_space<vmem>>, vector<1x1x16xf32>,
    %c0_103 = arith.constant 0 : index
    %c0_104 = arith.constant 0 : index
    %c0_105 = arith.constant 0 : index
    %159 = vector.load %arg6[%c0_103, %c0_104, %c0_105] : memref<1x22x128xf32, #tpu.memory_space<vmem>>, vector<1x22x128xf32>
    %c0_106 = arith.constant 0 : index
    %c0_107 = arith.constant 0 : index
    %c0_108 = arith.constant 0 : index
    %160 = vector.load %arg7[%c0_106, %c0_107, %c0_108] : memref<1x22x128xf32, #tpu.memory_space<vmem>>, vector<1x22x128xf32>
    %c0_109 = arith.constant 0 : index
    %161 = memref.load %arg4[%c0_109] : memref<98xf32, #tpu.memory_space<smem>>
    %c1 = arith.constant 1 : index
    %162 = memref.load %arg4[%c1] : memref<98xf32, #tpu.memory_space<smem>>
    %c2 = arith.constant 2 : index
    %163 = memref.load %arg4[%c2] : memref<98xf32, #tpu.memory_space<smem>>
    %c3_110 = arith.constant 3 : index
    %164 = memref.load %arg4[%c3_110] : memref<98xf32, #tpu.memory_space<smem>>
    %c4_111 = arith.constant 4 : index
    %165 = memref.load %arg4[%c4_111] : memref<98xf32, #tpu.memory_space<smem>>
    %c5_112 = arith.constant 5 : index
    %166 = memref.load %arg4[%c5_112] : memref<98xf32, #tpu.memory_space<smem>>
    %c6_113 = arith.constant 6 : index
    %167 = memref.load %arg4[%c6_113] : memref<98xf32, #tpu.memory_space<smem>>
    %c7_114 = arith.constant 7 : index
    %168 = memref.load %arg4[%c7_114] : memref<98xf32, #tpu.memory_space<smem>>
    %c8_115 = arith.constant 8 : index
    %169 = memref.load %arg4[%c8_115] : memref<98xf32, #tpu.memory_space<smem>>
    %c9_116 = arith.constant 9 : index
    %170 = memref.load %arg4[%c9_116] : memref<98xf32, #tpu.memory_space<smem>>
    %c10_117 = arith.constant 10 : index
    %171 = memref.load %arg4[%c10_117] : memref<98xf32, #tpu.memory_space<smem>>
    %c11_118 = arith.constant 11 : index
    %172 = memref.load %arg4[%c11_118] : memref<98xf32, #tpu.memory_space<smem>>
    %c12_119 = arith.constant 12 : index
    %173 = memref.load %arg4[%c12_119] : memref<98xf32, #tpu.memory_space<smem>>
    %c13_120 = arith.constant 13 : index
    %174 = memref.load %arg4[%c13_120] : memref<98xf32, #tpu.memory_space<smem>>
    %c14_121 = arith.constant 14 : index
    %175 = memref.load %arg4[%c14_121] : memref<98xf32, #tpu.memory_space<smem>>
    %c15_122 = arith.constant 15 : index
    %176 = memref.load %arg4[%c15_122] : memref<98xf32, #tpu.memory_space<smem>>
    %c16_123 = arith.constant 16 : index
    %177 = memref.load %arg4[%c16_123] : memref<98xf32, #tpu.memory_space<smem>>
    %c17_124 = arith.constant 17 : index
    %178 = memref.load %arg4[%c17_124] : memref<98xf32, #tpu.memory_space<smem>>
    %c18_125 = arith.constant 18 : index
    %179 = memref.load %arg4[%c18_125] : memref<98xf32, #tpu.memory_space<smem>>
    %c19 = arith.constant 19 : index
    %180 = memref.load %arg4[%c19] : memref<98xf32, #tpu.memory_space<smem>>
    %c20 = arith.constant 20 : index
    %181 = memref.load %arg4[%c20] : memref<98xf32, #tpu.memory_space<smem>>
    %c21 = arith.constant 21 : index
    %182 = memref.load %arg4[%c21] : memref<98xf32, #tpu.memory_space<smem>>
    %c22 = arith.constant 22 : index
    %183 = memref.load %arg4[%c22] : memref<98xf32, #tpu.memory_space<smem>>
    %c23 = arith.constant 23 : index
    %184 = memref.load %arg4[%c23] : memref<98xf32, #tpu.memory_space<smem>>
    %c24 = arith.constant 24 : index
    %185 = memref.load %arg4[%c24] : memref<98xf32, #tpu.memory_space<smem>>
    %c25 = arith.constant 25 : index
    %186 = memref.load %arg4[%c25] : memref<98xf32, #tpu.memory_space<smem>>
    %c26 = arith.constant 26 : index
    %187 = memref.load %arg4[%c26] : memref<98xf32, #tpu.memory_space<smem>>
    %c27 = arith.constant 27 : index
    %188 = memref.load %arg4[%c27] : memref<98xf32, #tpu.memory_space<smem>>
    %c28 = arith.constant 28 : index
    %189 = memref.load %arg4[%c28] : memref<98xf32, #tpu.memory_space<smem>>
    %c29 = arith.constant 29 : index
    %190 = memref.load %arg4[%c29] : memref<98xf32, #tpu.memory_space<smem>>
    %c30 = arith.constant 30 : index
    %191 = memref.load %arg4[%c30] : memref<98xf32, #tpu.memory_space<smem>>
    %c31 = arith.constant 31 : index
    %192 = memref.load %arg4[%c31] : memref<98xf32, #tpu.memory_space<smem>>
    %c32 = arith.constant 32 : index
    %193 = memref.load %arg4[%c32] : memref<98xf32, #tpu.memory_space<smem>>
    %c33 = arith.constant 33 : index
    %194 = memref.load %arg4[%c33] : memref<98xf32, #tpu.memory_space<smem>>
    %c34 = arith.constant 34 : index
    %195 = memref.load %arg4[%c34] : memref<98xf32, #tpu.memory_space<smem>>
    %c35 = arith.constant 35 : index
    %196 = memref.load %arg4[%c35] : memref<98xf32, #tpu.memory_space<smem>>
    %c36 = arith.constant 36 : index
    %197 = memref.load %arg4[%c36] : memref<98xf32, #tpu.memory_space<smem>>
    %c37 = arith.constant 37 : index
    %198 = memref.load %arg4[%c37] : memref<98xf32, #tpu.memory_space<smem>>
    %c38 = arith.constant 38 : index
    %199 = memref.load %arg4[%c38] : memref<98xf32, #tpu.memory_space<smem>>
    %c39 = arith.constant 39 : index
    %200 = memref.load %arg4[%c39] : memref<98xf32, #tpu.memory_space<smem>>
    %c40 = arith.constant 40 : index
    %201 = memref.load %arg4[%c40] : memref<98xf32, #tpu.memory_space<smem>>
    %c41 = arith.constant 41 : index
    %202 = memref.load %arg4[%c41] : memref<98xf32, #tpu.memory_space<smem>>
    %c42 = arith.constant 42 : index
    %203 = memref.load %arg4[%c42] : memref<98xf32, #tpu.memory_space<smem>>
    %c43 = arith.constant 43 : index
    %204 = memref.load %arg4[%c43] : memref<98xf32, #tpu.memory_space<smem>>
    %c44 = arith.constant 44 : index
    %205 = memref.load %arg4[%c44] : memref<98xf32, #tpu.memory_space<smem>>
    %c45 = arith.constant 45 : index
    %206 = memref.load %arg4[%c45] : memref<98xf32, #tpu.memory_space<smem>>
    %c46 = arith.constant 46 : index
    %207 = memref.load %arg4[%c46] : memref<98xf32, #tpu.memory_space<smem>>
    %c47 = arith.constant 47 : index
    %208 = memref.load %arg4[%c47] : memref<98xf32, #tpu.memory_space<smem>>
    %c48 = arith.constant 48 : index
    %209 = memref.load %arg4[%c48] : memref<98xf32, #tpu.memory_space<smem>>
    %c49 = arith.constant 49 : index
    %210 = memref.load %arg4[%c49] : memref<98xf32, #tpu.memory_space<smem>>
    %c50 = arith.constant 50 : index
    %211 = memref.load %arg4[%c50] : memref<98xf32, #tpu.memory_space<smem>>
    %c51 = arith.constant 51 : index
    %212 = memref.load %arg4[%c51] : memref<98xf32, #tpu.memory_space<smem>>
    %c52 = arith.constant 52 : index
    %213 = memref.load %arg4[%c52] : memref<98xf32, #tpu.memory_space<smem>>
    %c53 = arith.constant 53 : index
    %214 = memref.load %arg4[%c53] : memref<98xf32, #tpu.memory_space<smem>>
    %c54 = arith.constant 54 : index
    %215 = memref.load %arg4[%c54] : memref<98xf32, #tpu.memory_space<smem>>
    %c55 = arith.constant 55 : index
    %216 = memref.load %arg4[%c55] : memref<98xf32, #tpu.memory_space<smem>>
    %c56 = arith.constant 56 : index
    %217 = memref.load %arg4[%c56] : memref<98xf32, #tpu.memory_space<smem>>
    %c57 = arith.constant 57 : index
    %218 = memref.load %arg4[%c57] : memref<98xf32, #tpu.memory_space<smem>>
    %c58 = arith.constant 58 : index
    %219 = memref.load %arg4[%c58] : memref<98xf32, #tpu.memory_space<smem>>
    %c59 = arith.constant 59 : index
    %220 = memref.load %arg4[%c59] : memref<98xf32, #tpu.memory_space<smem>>
    %c60 = arith.constant 60 : index
    %221 = memref.load %arg4[%c60] : memref<98xf32, #tpu.memory_space<smem>>
    %c61 = arith.constant 61 : index
    %222 = memref.load %arg4[%c61] : memref<98xf32, #tpu.memory_space<smem>>
    %c62 = arith.constant 62 : index
    %223 = memref.load %arg4[%c62] : memref<98xf32, #tpu.memory_space<smem>>
    %c63 = arith.constant 63 : index
    %224 = memref.load %arg4[%c63] : memref<98xf32, #tpu.memory_space<smem>>
    %c64 = arith.constant 64 : index
    %225 = memref.load %arg4[%c64] : memref<98xf32, #tpu.memory_space<smem>>
    %c65 = arith.constant 65 : index
    %226 = memref.load %arg4[%c65] : memref<98xf32, #tpu.memory_space<smem>>
    %c66 = arith.constant 66 : index
    %227 = memref.load %arg4[%c66] : memref<98xf32, #tpu.memory_space<smem>>
    %c67 = arith.constant 67 : index
    %228 = memref.load %arg4[%c67] : memref<98xf32, #tpu.memory_space<smem>>
    %c68 = arith.constant 68 : index
    %229 = memref.load %arg4[%c68] : memref<98xf32, #tpu.memory_space<smem>>
    %c69 = arith.constant 69 : index
    %230 = memref.load %arg4[%c69] : memref<98xf32, #tpu.memory_space<smem>>
    %c70 = arith.constant 70 : index
    %231 = memref.load %arg4[%c70] : memref<98xf32, #tpu.memory_space<smem>>
    %c71 = arith.constant 71 : index
    %232 = memref.load %arg4[%c71] : memref<98xf32, #tpu.memory_space<smem>>
    %c72 = arith.constant 72 : index
    %233 = memref.load %arg4[%c72] : memref<98xf32, #tpu.memory_space<smem>>
    %c73 = arith.constant 73 : index
    %234 = memref.load %arg4[%c73] : memref<98xf32, #tpu.memory_space<smem>>
    %c74 = arith.constant 74 : index
    %235 = memref.load %arg4[%c74] : memref<98xf32, #tpu.memory_space<smem>>
    %c75 = arith.constant 75 : index
    %236 = memref.load %arg4[%c75] : memref<98xf32, #tpu.memory_space<smem>>
    %c76 = arith.constant 76 : index
    %237 = memref.load %arg4[%c76] : memref<98xf32, #tpu.memory_space<smem>>
    %c77 = arith.constant 77 : index
    %238 = memref.load %arg4[%c77] : memref<98xf32, #tpu.memory_space<smem>>
    %c78 = arith.constant 78 : index
    %239 = memref.load %arg4[%c78] : memref<98xf32, #tpu.memory_space<smem>>
    %c79 = arith.constant 79 : index
    %240 = memref.load %arg4[%c79] : memref<98xf32, #tpu.memory_space<smem>>
    %c80 = arith.constant 80 : index
    %241 = memref.load %arg4[%c80] : memref<98xf32, #tpu.memory_space<smem>>
    %c81 = arith.constant 81 : index
    %242 = memref.load %arg4[%c81] : memref<98xf32, #tpu.memory_space<smem>>
    %c82 = arith.constant 82 : index
    %243 = memref.load %arg4[%c82] : memref<98xf32, #tpu.memory_space<smem>>
    %c83 = arith.constant 83 : index
    %244 = memref.load %arg4[%c83] : memref<98xf32, #tpu.memory_space<smem>>
    %c84 = arith.constant 84 : index
    %245 = memref.load %arg4[%c84] : memref<98xf32, #tpu.memory_space<smem>>
    %c85 = arith.constant 85 : index
    %246 = memref.load %arg4[%c85] : memref<98xf32, #tpu.memory_space<smem>>
    %c86 = arith.constant 86 : index
    %247 = memref.load %arg4[%c86] : memref<98xf32, #tpu.memory_space<smem>>
    %c87 = arith.constant 87 : index
    %248 = memref.load %arg4[%c87] : memref<98xf32, #tpu.memory_space<smem>>
    %c88 = arith.constant 88 : index
    %249 = memref.load %arg4[%c88] : memref<98xf32, #tpu.memory_space<smem>>
    %c89 = arith.constant 89 : index
    %250 = memref.load %arg4[%c89] : memref<98xf32, #tpu.memory_space<smem>>
    %c90 = arith.constant 90 : index
    %251 = memref.load %arg4[%c90] : memref<98xf32, #tpu.memory_space<smem>>
    %c91 = arith.constant 91 : index
    %252 = memref.load %arg4[%c91] : memref<98xf32, #tpu.memory_space<smem>>
    %c92 = arith.constant 92 : index
    %253 = memref.load %arg4[%c92] : memref<98xf32, #tpu.memory_space<smem>>
    %c93 = arith.constant 93 : index
    %254 = memref.load %arg4[%c93] : memref<98xf32, #tpu.memory_space<smem>>
    %c94 = arith.constant 94 : index
    %255 = memref.load %arg4[%c94] : memref<98xf32, #tpu.memory_space<smem>>
    %c95 = arith.constant 95 : index
    %256 = memref.load %arg4[%c95] : memref<98xf32, #tpu.memory_space<smem>>
    %c96 = arith.constant 96 : index
    %257 = memref.load %arg4[%c96] : memref<98xf32, #tpu.memory_space<smem>>
    %c97 = arith.constant 97 : index
    %258 = memref.load %arg4[%c97] : memref<98xf32, #tpu.memory_space<smem>>
    %cst_126 = arith.constant 0.000000e+00 : f32
    %259 = vector.broadcast %cst_126 : f32 to vector<1x16x16xf32>
    %cst_127 = arith.constant 0.000000e+00 : f32
    %260 = vector.broadcast %cst_127 : f32 to vector<1x16x16xf32>
    %cst_128 = arith.constant 0.000000e+00 : f32
    %261 = vector.broadcast %cst_128 : f32 to vector<1x16x16xf32>
    %cst_129 = arith.constant 0.000000e+00 : f32
    %262 = vector.broadcast %cst_129 : f32 to vector<1x16x16xf32>
    %263 = vector.extract_strided_slice %159 {offsets = [0, 0, 0], sizes = [1, 22, 16], strides = [1, 1, 1]} : vector<1x22x128xf32> to vector<1x22x16xf32>
    %264 = vector.extract_strided_slice %160 {offsets = [0, 0, 0], sizes = [1, 22, 16], strides = [1, 1, 1]} : vector<1x22x128xf32> to vector<1x22x16xf32>
    %265 = vector.extract_strided_slice %263 {offsets = [0, 0, 0], sizes = [1, 16, 16], strides = [1, 1, 1]} : vector<1x22x16xf32> to vector<1x16x16xf32>
    %266 = vector.broadcast %161 : f32 to vector<1x16x16xf32>
    %267 = arith.mulf %266, %265 : vector<1x16x16xf32>
    %268 = arith.addf %259, %267 : vector<1x16x16xf32>
    %269 = vector.extract_strided_slice %264 {offsets = [0, 0, 0], sizes = [1, 16, 16], strides = [1, 1, 1]} : vector<1x22x16xf32> to vector<1x16x16xf32>
    %270 = vector.broadcast %210 : f32 to vector<1x16x16xf32>
    %271 = arith.mulf %270, %269 : vector<1x16x16xf32>
    %272 = arith.addf %268, %271 : vector<1x16x16xf32>
    %273 = vector.extract_strided_slice %263 {offsets = [0, 1, 0], sizes = [1, 16, 16], strides = [1, 1, 1]} : vector<1x22x16xf32> to vector<1x16x16xf32>
    %274 = vector.broadcast %168 : f32 to vector<1x16x16xf32>
    %275 = arith.mulf %274, %273 : vector<1x16x16xf32>
    %276 = arith.addf %262, %275 : vector<1x16x16xf32>
    %277 = vector.extract_strided_slice %264 {offsets = [0, 1, 0], sizes = [1, 16, 16], strides = [1, 1, 1]} : vector<1x22x16xf32> to vector<1x16x16xf32>
    %278 = vector.broadcast %217 : f32 to vector<1x16x16xf32>
    %279 = arith.mulf %278, %277 : vector<1x16x16xf32>
    %280 = arith.addf %276, %279 : vector<1x16x16xf32>
    %281 = vector.extract_strided_slice %263 {offsets = [0, 2, 0], sizes = [1, 16, 16], strides = [1, 1, 1]} : vector<1x22x16xf32> to vector<1x16x16xf32>
    %282 = vector.broadcast %175 : f32 to vector<1x16x16xf32>
    %283 = arith.mulf %282, %281 : vector<1x16x16xf32>
    %284 = arith.addf %261, %283 : vector<1x16x16xf32>
    %285 = vector.extract_strided_slice %264 {offsets = [0, 2, 0], sizes = [1, 16, 16], strides = [1, 1, 1]} : vector<1x22x16xf32> to vector<1x16x16xf32>
    %286 = vector.broadcast %224 : f32 to vector<1x16x16xf32>
    %287 = arith.mulf %286, %285 : vector<1x16x16xf32>
    %288 = arith.addf %284, %287 : vector<1x16x16xf32>
    %289 = vector.extract_strided_slice %263 {offsets = [0, 3, 0], sizes = [1, 16, 16], strides = [1, 1, 1]} : vector<1x22x16xf32> to vector<1x16x16xf32>
    %290 = vector.broadcast %182 : f32 to vector<1x16x16xf32>
    %291 = arith.mulf %290, %289 : vector<1x16x16xf32>
    %292 = arith.addf %260, %291 : vector<1x16x16xf32>
    %293 = vector.extract_strided_slice %264 {offsets = [0, 3, 0], sizes = [1, 16, 16], strides = [1, 1, 1]} : vector<1x22x16xf32> to vector<1x16x16xf32>
    %294 = vector.broadcast %231 : f32 to vector<1x16x16xf32>
    %295 = arith.mulf %294, %293 : vector<1x16x16xf32>
    %296 = arith.addf %292, %295 : vector<1x16x16xf32>
    %297 = vector.extract_strided_slice %263 {offsets = [0, 4, 0], sizes = [1, 16, 16], strides = [1, 1, 1]} : vector<1x22x16xf32> to vector<1x16x16xf32>
    %298 = vector.broadcast %189 : f32 to vector<1x16x16xf32>
    %299 = arith.mulf %298, %297 : vector<1x16x16xf32>
    %300 = arith.addf %272, %299 : vector<1x16x16xf32>
    %301 = vector.extract_strided_slice %264 {offsets = [0, 4, 0], sizes = [1, 16, 16], strides = [1, 1, 1]} : vector<1x22x16xf32> to vector<1x16x16xf32>
    %302 = vector.broadcast %238 : f32 to vector<1x16x16xf32>
    %303 = arith.mulf %302, %301 : vector<1x16x16xf32>
    %304 = arith.addf %300, %303 : vector<1x16x16xf32>
    %305 = vector.extract_strided_slice %263 {offsets = [0, 5, 0], sizes = [1, 16, 16], strides = [1, 1, 1]} : vector<1x22x16xf32> to vector<1x16x16xf32>
    %306 = vector.broadcast %196 : f32 to vector<1x16x16xf32>
    %307 = arith.mulf %306, %305 : vector<1x16x16xf32>
    %308 = arith.addf %280, %307 : vector<1x16x16xf32>
    %309 = vector.extract_strided_slice %264 {offsets = [0, 5, 0], sizes = [1, 16, 16], strides = [1, 1, 1]} : vector<1x22x16xf32> to vector<1x16x16xf32>
    %310 = vector.broadcast %245 : f32 to vector<1x16x16xf32>
    %311 = arith.mulf %310, %309 : vector<1x16x16xf32>
    %312 = arith.addf %308, %311 : vector<1x16x16xf32>
    %313 = vector.extract_strided_slice %263 {offsets = [0, 6, 0], sizes = [1, 16, 16], strides = [1, 1, 1]} : vector<1x22x16xf32> to vector<1x16x16xf32>
    %314 = vector.broadcast %203 : f32 to vector<1x16x16xf32>
    %315 = arith.mulf %314, %313 : vector<1x16x16xf32>
    %316 = arith.addf %288, %315 : vector<1x16x16xf32>
    %317 = vector.extract_strided_slice %264 {offsets = [0, 6, 0], sizes = [1, 16, 16], strides = [1, 1, 1]} : vector<1x22x16xf32> to vector<1x16x16xf32>
    %318 = vector.broadcast %252 : f32 to vector<1x16x16xf32>
    %319 = arith.mulf %318, %317 : vector<1x16x16xf32>
    %320 = arith.addf %316, %319 : vector<1x16x16xf32>
    %321 = vector.extract_strided_slice %159 {offsets = [0, 0, 1], sizes = [1, 22, 16], strides = [1, 1, 1]} : vector<1x22x128xf32> to vector<1x22x16xf32>
    %322 = vector.extract_strided_slice %160 {offsets = [0, 0, 1], sizes = [1, 22, 16], strides = [1, 1, 1]} : vector<1x22x128xf32> to vector<1x22x16xf32>
    %323 = vector.extract_strided_slice %321 {offsets = [0, 0, 0], sizes = [1, 16, 16], strides = [1, 1, 1]} : vector<1x22x16xf32> to vector<1x16x16xf32>
    %324 = vector.broadcast %162 : f32 to vector<1x16x16xf32>
    %325 = arith.mulf %324, %323 : vector<1x16x16xf32>
    %326 = arith.addf %296, %325 : vector<1x16x16xf32>
    %327 = vector.extract_strided_slice %322 {offsets = [0, 0, 0], sizes = [1, 16, 16], strides = [1, 1, 1]} : vector<1x22x16xf32> to vector<1x16x16xf32>
    %328 = vector.broadcast %211 : f32 to vector<1x16x16xf32>
    %329 = arith.mulf %328, %327 : vector<1x16x16xf32>
    %330 = arith.addf %326, %329 : vector<1x16x16xf32>
    %331 = vector.extract_strided_slice %321 {offsets = [0, 1, 0], sizes = [1, 16, 16], strides = [1, 1, 1]} : vector<1x22x16xf32> to vector<1x16x16xf32>
    %332 = vector.broadcast %169 : f32 to vector<1x16x16xf32>
    %333 = arith.mulf %332, %331 : vector<1x16x16xf32>
    %334 = arith.addf %304, %333 : vector<1x16x16xf32>
    %335 = vector.extract_strided_slice %322 {offsets = [0, 1, 0], sizes = [1, 16, 16], strides = [1, 1, 1]} : vector<1x22x16xf32> to vector<1x16x16xf32>
    %336 = vector.broadcast %218 : f32 to vector<1x16x16xf32>
    %337 = arith.mulf %336, %335 : vector<1x16x16xf32>
    %338 = arith.addf %334, %337 : vector<1x16x16xf32>
    %339 = vector.extract_strided_slice %321 {offsets = [0, 2, 0], sizes = [1, 16, 16], strides = [1, 1, 1]} : vector<1x22x16xf32> to vector<1x16x16xf32>
    %340 = vector.broadcast %176 : f32 to vector<1x16x16xf32>
    %341 = arith.mulf %340, %339 : vector<1x16x16xf32>
    %342 = arith.addf %312, %341 : vector<1x16x16xf32>
    %343 = vector.extract_strided_slice %322 {offsets = [0, 2, 0], sizes = [1, 16, 16], strides = [1, 1, 1]} : vector<1x22x16xf32> to vector<1x16x16xf32>
    %344 = vector.broadcast %225 : f32 to vector<1x16x16xf32>
    %345 = arith.mulf %344, %343 : vector<1x16x16xf32>
    %346 = arith.addf %342, %345 : vector<1x16x16xf32>
    %347 = vector.extract_strided_slice %321 {offsets = [0, 3, 0], sizes = [1, 16, 16], strides = [1, 1, 1]} : vector<1x22x16xf32> to vector<1x16x16xf32>
    %348 = vector.broadcast %183 : f32 to vector<1x16x16xf32>
    %349 = arith.mulf %348, %347 : vector<1x16x16xf32>
    %350 = arith.addf %320, %349 : vector<1x16x16xf32>
    %351 = vector.extract_strided_slice %322 {offsets = [0, 3, 0], sizes = [1, 16, 16], strides = [1, 1, 1]} : vector<1x22x16xf32> to vector<1x16x16xf32>
    %352 = vector.broadcast %232 : f32 to vector<1x16x16xf32>
    %353 = arith.mulf %352, %351 : vector<1x16x16xf32>
    %354 = arith.addf %350, %353 : vector<1x16x16xf32>
    %355 = vector.extract_strided_slice %321 {offsets = [0, 4, 0], sizes = [1, 16, 16], strides = [1, 1, 1]} : vector<1x22x16xf32> to vector<1x16x16xf32>
    %356 = vector.broadcast %190 : f32 to vector<1x16x16xf32>
    %357 = arith.mulf %356, %355 : vector<1x16x16xf32>
    %358 = arith.addf %330, %357 : vector<1x16x16xf32>
    %359 = vector.extract_strided_slice %322 {offsets = [0, 4, 0], sizes = [1, 16, 16], strides = [1, 1, 1]} : vector<1x22x16xf32> to vector<1x16x16xf32>
    %360 = vector.broadcast %239 : f32 to vector<1x16x16xf32>
    %361 = arith.mulf %360, %359 : vector<1x16x16xf32>
    %362 = arith.addf %358, %361 : vector<1x16x16xf32>
    %363 = vector.extract_strided_slice %321 {offsets = [0, 5, 0], sizes = [1, 16, 16], strides = [1, 1, 1]} : vector<1x22x16xf32> to vector<1x16x16xf32>
    %364 = vector.broadcast %197 : f32 to vector<1x16x16xf32>
    %365 = arith.mulf %364, %363 : vector<1x16x16xf32>
    %366 = arith.addf %338, %365 : vector<1x16x16xf32>
    %367 = vector.extract_strided_slice %322 {offsets = [0, 5, 0], sizes = [1, 16, 16], strides = [1, 1, 1]} : vector<1x22x16xf32> to vector<1x16x16xf32>
    %368 = vector.broadcast %246 : f32 to vector<1x16x16xf32>
    %369 = arith.mulf %368, %367 : vector<1x16x16xf32>
    %370 = arith.addf %366, %369 : vector<1x16x16xf32>
    %371 = vector.extract_strided_slice %321 {offsets = [0, 6, 0], sizes = [1, 16, 16], strides = [1, 1, 1]} : vector<1x22x16xf32> to vector<1x16x16xf32>
    %372 = vector.broadcast %204 : f32 to vector<1x16x16xf32>
    %373 = arith.mulf %372, %371 : vector<1x16x16xf32>
    %374 = arith.addf %346, %373 : vector<1x16x16xf32>
    %375 = vector.extract_strided_slice %322 {offsets = [0, 6, 0], sizes = [1, 16, 16], strides = [1, 1, 1]} : vector<1x22x16xf32> to vector<1x16x16xf32>
    %376 = vector.broadcast %253 : f32 to vector<1x16x16xf32>
    %377 = arith.mulf %376, %375 : vector<1x16x16xf32>
    %378 = arith.addf %374, %377 : vector<1x16x16xf32>
    %379 = vector.extract_strided_slice %159 {offsets = [0, 0, 2], sizes = [1, 22, 16], strides = [1, 1, 1]} : vector<1x22x128xf32> to vector<1x22x16xf32>
    %380 = vector.extract_strided_slice %160 {offsets = [0, 0, 2], sizes = [1, 22, 16], strides = [1, 1, 1]} : vector<1x22x128xf32> to vector<1x22x16xf32>
    %381 = vector.extract_strided_slice %379 {offsets = [0, 0, 0], sizes = [1, 16, 16], strides = [1, 1, 1]} : vector<1x22x16xf32> to vector<1x16x16xf32>
    %382 = vector.broadcast %163 : f32 to vector<1x16x16xf32>
    %383 = arith.mulf %382, %381 : vector<1x16x16xf32>
    %384 = arith.addf %354, %383 : vector<1x16x16xf32>
    %385 = vector.extract_strided_slice %380 {offsets = [0, 0, 0], sizes = [1, 16, 16], strides = [1, 1, 1]} : vector<1x22x16xf32> to vector<1x16x16xf32>
    %386 = vector.broadcast %212 : f32 to vector<1x16x16xf32>
    %387 = arith.mulf %386, %385 : vector<1x16x16xf32>
    %388 = arith.addf %384, %387 : vector<1x16x16xf32>
    %389 = vector.extract_strided_slice %379 {offsets = [0, 1, 0], sizes = [1, 16, 16], strides = [1, 1, 1]} : vector<1x22x16xf32> to vector<1x16x16xf32>
    %390 = vector.broadcast %170 : f32 to vector<1x16x16xf32>
    %391 = arith.mulf %390, %389 : vector<1x16x16xf32>
    %392 = arith.addf %362, %391 : vector<1x16x16xf32>
    %393 = vector.extract_strided_slice %380 {offsets = [0, 1, 0], sizes = [1, 16, 16], strides = [1, 1, 1]} : vector<1x22x16xf32> to vector<1x16x16xf32>
    %394 = vector.broadcast %219 : f32 to vector<1x16x16xf32>
    %395 = arith.mulf %394, %393 : vector<1x16x16xf32>
    %396 = arith.addf %392, %395 : vector<1x16x16xf32>
    %397 = vector.extract_strided_slice %379 {offsets = [0, 2, 0], sizes = [1, 16, 16], strides = [1, 1, 1]} : vector<1x22x16xf32> to vector<1x16x16xf32>
    %398 = vector.broadcast %177 : f32 to vector<1x16x16xf32>
    %399 = arith.mulf %398, %397 : vector<1x16x16xf32>
    %400 = arith.addf %370, %399 : vector<1x16x16xf32>
    %401 = vector.extract_strided_slice %380 {offsets = [0, 2, 0], sizes = [1, 16, 16], strides = [1, 1, 1]} : vector<1x22x16xf32> to vector<1x16x16xf32>
    %402 = vector.broadcast %226 : f32 to vector<1x16x16xf32>
    %403 = arith.mulf %402, %401 : vector<1x16x16xf32>
    %404 = arith.addf %400, %403 : vector<1x16x16xf32>
    %405 = vector.extract_strided_slice %379 {offsets = [0, 3, 0], sizes = [1, 16, 16], strides = [1, 1, 1]} : vector<1x22x16xf32> to vector<1x16x16xf32>
    %406 = vector.broadcast %184 : f32 to vector<1x16x16xf32>
    %407 = arith.mulf %406, %405 : vector<1x16x16xf32>
    %408 = arith.addf %378, %407 : vector<1x16x16xf32>
    %409 = vector.extract_strided_slice %380 {offsets = [0, 3, 0], sizes = [1, 16, 16], strides = [1, 1, 1]} : vector<1x22x16xf32> to vector<1x16x16xf32>
    %410 = vector.broadcast %233 : f32 to vector<1x16x16xf32>
    %411 = arith.mulf %410, %409 : vector<1x16x16xf32>
    %412 = arith.addf %408, %411 : vector<1x16x16xf32>
    %413 = vector.extract_strided_slice %379 {offsets = [0, 4, 0], sizes = [1, 16, 16], strides = [1, 1, 1]} : vector<1x22x16xf32> to vector<1x16x16xf32>
    %414 = vector.broadcast %191 : f32 to vector<1x16x16xf32>
    %415 = arith.mulf %414, %413 : vector<1x16x16xf32>
    %416 = arith.addf %388, %415 : vector<1x16x16xf32>
    %417 = vector.extract_strided_slice %380 {offsets = [0, 4, 0], sizes = [1, 16, 16], strides = [1, 1, 1]} : vector<1x22x16xf32> to vector<1x16x16xf32>
    %418 = vector.broadcast %240 : f32 to vector<1x16x16xf32>
    %419 = arith.mulf %418, %417 : vector<1x16x16xf32>
    %420 = arith.addf %416, %419 : vector<1x16x16xf32>
    %421 = vector.extract_strided_slice %379 {offsets = [0, 5, 0], sizes = [1, 16, 16], strides = [1, 1, 1]} : vector<1x22x16xf32> to vector<1x16x16xf32>
    %422 = vector.broadcast %198 : f32 to vector<1x16x16xf32>
    %423 = arith.mulf %422, %421 : vector<1x16x16xf32>
    %424 = arith.addf %396, %423 : vector<1x16x16xf32>
    %425 = vector.extract_strided_slice %380 {offsets = [0, 5, 0], sizes = [1, 16, 16], strides = [1, 1, 1]} : vector<1x22x16xf32> to vector<1x16x16xf32>
    %426 = vector.broadcast %247 : f32 to vector<1x16x16xf32>
    %427 = arith.mulf %426, %425 : vector<1x16x16xf32>
    %428 = arith.addf %424, %427 : vector<1x16x16xf32>
    %429 = vector.extract_strided_slice %379 {offsets = [0, 6, 0], sizes = [1, 16, 16], strides = [1, 1, 1]} : vector<1x22x16xf32> to vector<1x16x16xf32>
    %430 = vector.broadcast %205 : f32 to vector<1x16x16xf32>
    %431 = arith.mulf %430, %429 : vector<1x16x16xf32>
    %432 = arith.addf %404, %431 : vector<1x16x16xf32>
    %433 = vector.extract_strided_slice %380 {offsets = [0, 6, 0], sizes = [1, 16, 16], strides = [1, 1, 1]} : vector<1x22x16xf32> to vector<1x16x16xf32>
    %434 = vector.broadcast %254 : f32 to vector<1x16x16xf32>
    %435 = arith.mulf %434, %433 : vector<1x16x16xf32>
    %436 = arith.addf %432, %435 : vector<1x16x16xf32>
    %437 = vector.extract_strided_slice %159 {offsets = [0, 0, 3], sizes = [1, 22, 16], strides = [1, 1, 1]} : vector<1x22x128xf32> to vector<1x22x16xf32>
    %438 = vector.extract_strided_slice %160 {offsets = [0, 0, 3], sizes = [1, 22, 16], strides = [1, 1, 1]} : vector<1x22x128xf32> to vector<1x22x16xf32>
    %439 = vector.extract_strided_slice %437 {offsets = [0, 0, 0], sizes = [1, 16, 16], strides = [1, 1, 1]} : vector<1x22x16xf32> to vector<1x16x16xf32>
    %440 = vector.broadcast %164 : f32 to vector<1x16x16xf32>
    %441 = arith.mulf %440, %439 : vector<1x16x16xf32>
    %442 = arith.addf %412, %441 : vector<1x16x16xf32>
    %443 = vector.extract_strided_slice %438 {offsets = [0, 0, 0], sizes = [1, 16, 16], strides = [1, 1, 1]} : vector<1x22x16xf32> to vector<1x16x16xf32>
    %444 = vector.broadcast %213 : f32 to vector<1x16x16xf32>
    %445 = arith.mulf %444, %443 : vector<1x16x16xf32>
    %446 = arith.addf %442, %445 : vector<1x16x16xf32>
    %447 = vector.extract_strided_slice %437 {offsets = [0, 1, 0], sizes = [1, 16, 16], strides = [1, 1, 1]} : vector<1x22x16xf32> to vector<1x16x16xf32>
    %448 = vector.broadcast %171 : f32 to vector<1x16x16xf32>
    %449 = arith.mulf %448, %447 : vector<1x16x16xf32>
    %450 = arith.addf %420, %449 : vector<1x16x16xf32>
    %451 = vector.extract_strided_slice %438 {offsets = [0, 1, 0], sizes = [1, 16, 16], strides = [1, 1, 1]} : vector<1x22x16xf32> to vector<1x16x16xf32>
    %452 = vector.broadcast %220 : f32 to vector<1x16x16xf32>
    %453 = arith.mulf %452, %451 : vector<1x16x16xf32>
    %454 = arith.addf %450, %453 : vector<1x16x16xf32>
    %455 = vector.extract_strided_slice %437 {offsets = [0, 2, 0], sizes = [1, 16, 16], strides = [1, 1, 1]} : vector<1x22x16xf32> to vector<1x16x16xf32>
    %456 = vector.broadcast %178 : f32 to vector<1x16x16xf32>
    %457 = arith.mulf %456, %455 : vector<1x16x16xf32>
    %458 = arith.addf %428, %457 : vector<1x16x16xf32>
    %459 = vector.extract_strided_slice %438 {offsets = [0, 2, 0], sizes = [1, 16, 16], strides = [1, 1, 1]} : vector<1x22x16xf32> to vector<1x16x16xf32>
    %460 = vector.broadcast %227 : f32 to vector<1x16x16xf32>
    %461 = arith.mulf %460, %459 : vector<1x16x16xf32>
    %462 = arith.addf %458, %461 : vector<1x16x16xf32>
    %463 = vector.extract_strided_slice %437 {offsets = [0, 3, 0], sizes = [1, 16, 16], strides = [1, 1, 1]} : vector<1x22x16xf32> to vector<1x16x16xf32>
    %464 = vector.broadcast %185 : f32 to vector<1x16x16xf32>
    %465 = arith.mulf %464, %463 : vector<1x16x16xf32>
    %466 = arith.addf %436, %465 : vector<1x16x16xf32>
    %467 = vector.extract_strided_slice %438 {offsets = [0, 3, 0], sizes = [1, 16, 16], strides = [1, 1, 1]} : vector<1x22x16xf32> to vector<1x16x16xf32>
    %468 = vector.broadcast %234 : f32 to vector<1x16x16xf32>
    %469 = arith.mulf %468, %467 : vector<1x16x16xf32>
    %470 = arith.addf %466, %469 : vector<1x16x16xf32>
    %471 = vector.extract_strided_slice %437 {offsets = [0, 4, 0], sizes = [1, 16, 16], strides = [1, 1, 1]} : vector<1x22x16xf32> to vector<1x16x16xf32>
    %472 = vector.broadcast %192 : f32 to vector<1x16x16xf32>
    %473 = arith.mulf %472, %471 : vector<1x16x16xf32>
    %474 = arith.addf %446, %473 : vector<1x16x16xf32>
    %475 = vector.extract_strided_slice %438 {offsets = [0, 4, 0], sizes = [1, 16, 16], strides = [1, 1, 1]} : vector<1x22x16xf32> to vector<1x16x16xf32>
    %476 = vector.broadcast %241 : f32 to vector<1x16x16xf32>
    %477 = arith.mulf %476, %475 : vector<1x16x16xf32>
    %478 = arith.addf %474, %477 : vector<1x16x16xf32>
    %479 = vector.extract_strided_slice %437 {offsets = [0, 5, 0], sizes = [1, 16, 16], strides = [1, 1, 1]} : vector<1x22x16xf32> to vector<1x16x16xf32>
    %480 = vector.broadcast %199 : f32 to vector<1x16x16xf32>
    %481 = arith.mulf %480, %479 : vector<1x16x16xf32>
    %482 = arith.addf %454, %481 : vector<1x16x16xf32>
    %483 = vector.extract_strided_slice %438 {offsets = [0, 5, 0], sizes = [1, 16, 16], strides = [1, 1, 1]} : vector<1x22x16xf32> to vector<1x16x16xf32>
    %484 = vector.broadcast %248 : f32 to vector<1x16x16xf32>
    %485 = arith.mulf %484, %483 : vector<1x16x16xf32>
    %486 = arith.addf %482, %485 : vector<1x16x16xf32>
    %487 = vector.extract_strided_slice %437 {offsets = [0, 6, 0], sizes = [1, 16, 16], strides = [1, 1, 1]} : vector<1x22x16xf32> to vector<1x16x16xf32>
    %488 = vector.broadcast %206 : f32 to vector<1x16x16xf32>
    %489 = arith.mulf %488, %487 : vector<1x16x16xf32>
    %490 = arith.addf %462, %489 : vector<1x16x16xf32>
    %491 = vector.extract_strided_slice %438 {offsets = [0, 6, 0], sizes = [1, 16, 16], strides = [1, 1, 1]} : vector<1x22x16xf32> to vector<1x16x16xf32>
    %492 = vector.broadcast %255 : f32 to vector<1x16x16xf32>
    %493 = arith.mulf %492, %491 : vector<1x16x16xf32>
    %494 = arith.addf %490, %493 : vector<1x16x16xf32>
    %495 = vector.extract_strided_slice %159 {offsets = [0, 0, 4], sizes = [1, 22, 16], strides = [1, 1, 1]} : vector<1x22x128xf32> to vector<1x22x16xf32>
    %496 = vector.extract_strided_slice %160 {offsets = [0, 0, 4], sizes = [1, 22, 16], strides = [1, 1, 1]} : vector<1x22x128xf32> to vector<1x22x16xf32>
    %497 = vector.extract_strided_slice %495 {offsets = [0, 0, 0], sizes = [1, 16, 16], strides = [1, 1, 1]} : vector<1x22x16xf32> to vector<1x16x16xf32>
    %498 = vector.broadcast %165 : f32 to vector<1x16x16xf32>
    %499 = arith.mulf %498, %497 : vector<1x16x16xf32>
    %500 = arith.addf %470, %499 : vector<1x16x16xf32>
    %501 = vector.extract_strided_slice %496 {offsets = [0, 0, 0], sizes = [1, 16, 16], strides = [1, 1, 1]} : vector<1x22x16xf32> to vector<1x16x16xf32>
    %502 = vector.broadcast %214 : f32 to vector<1x16x16xf32>
    %503 = arith.mulf %502, %501 : vector<1x16x16xf32>
    %504 = arith.addf %500, %503 : vector<1x16x16xf32>
    %505 = vector.extract_strided_slice %495 {offsets = [0, 1, 0], sizes = [1, 16, 16], strides = [1, 1, 1]} : vector<1x22x16xf32> to vector<1x16x16xf32>
    %506 = vector.broadcast %172 : f32 to vector<1x16x16xf32>
    %507 = arith.mulf %506, %505 : vector<1x16x16xf32>
    %508 = arith.addf %478, %507 : vector<1x16x16xf32>
    %509 = vector.extract_strided_slice %496 {offsets = [0, 1, 0], sizes = [1, 16, 16], strides = [1, 1, 1]} : vector<1x22x16xf32> to vector<1x16x16xf32>
    %510 = vector.broadcast %221 : f32 to vector<1x16x16xf32>
    %511 = arith.mulf %510, %509 : vector<1x16x16xf32>
    %512 = arith.addf %508, %511 : vector<1x16x16xf32>
    %513 = vector.extract_strided_slice %495 {offsets = [0, 2, 0], sizes = [1, 16, 16], strides = [1, 1, 1]} : vector<1x22x16xf32> to vector<1x16x16xf32>
    %514 = vector.broadcast %179 : f32 to vector<1x16x16xf32>
    %515 = arith.mulf %514, %513 : vector<1x16x16xf32>
    %516 = arith.addf %486, %515 : vector<1x16x16xf32>
    %517 = vector.extract_strided_slice %496 {offsets = [0, 2, 0], sizes = [1, 16, 16], strides = [1, 1, 1]} : vector<1x22x16xf32> to vector<1x16x16xf32>
    %518 = vector.broadcast %228 : f32 to vector<1x16x16xf32>
    %519 = arith.mulf %518, %517 : vector<1x16x16xf32>
    %520 = arith.addf %516, %519 : vector<1x16x16xf32>
    %521 = vector.extract_strided_slice %495 {offsets = [0, 3, 0], sizes = [1, 16, 16], strides = [1, 1, 1]} : vector<1x22x16xf32> to vector<1x16x16xf32>
    %522 = vector.broadcast %186 : f32 to vector<1x16x16xf32>
    %523 = arith.mulf %522, %521 : vector<1x16x16xf32>
    %524 = arith.addf %494, %523 : vector<1x16x16xf32>
    %525 = vector.extract_strided_slice %496 {offsets = [0, 3, 0], sizes = [1, 16, 16], strides = [1, 1, 1]} : vector<1x22x16xf32> to vector<1x16x16xf32>
    %526 = vector.broadcast %235 : f32 to vector<1x16x16xf32>
    %527 = arith.mulf %526, %525 : vector<1x16x16xf32>
    %528 = arith.addf %524, %527 : vector<1x16x16xf32>
    %529 = vector.extract_strided_slice %495 {offsets = [0, 4, 0], sizes = [1, 16, 16], strides = [1, 1, 1]} : vector<1x22x16xf32> to vector<1x16x16xf32>
    %530 = vector.broadcast %193 : f32 to vector<1x16x16xf32>
    %531 = arith.mulf %530, %529 : vector<1x16x16xf32>
    %532 = arith.addf %504, %531 : vector<1x16x16xf32>
    %533 = vector.extract_strided_slice %496 {offsets = [0, 4, 0], sizes = [1, 16, 16], strides = [1, 1, 1]} : vector<1x22x16xf32> to vector<1x16x16xf32>
    %534 = vector.broadcast %242 : f32 to vector<1x16x16xf32>
    %535 = arith.mulf %534, %533 : vector<1x16x16xf32>
    %536 = arith.addf %532, %535 : vector<1x16x16xf32>
    %537 = vector.extract_strided_slice %495 {offsets = [0, 5, 0], sizes = [1, 16, 16], strides = [1, 1, 1]} : vector<1x22x16xf32> to vector<1x16x16xf32>
    %538 = vector.broadcast %200 : f32 to vector<1x16x16xf32>
    %539 = arith.mulf %538, %537 : vector<1x16x16xf32>
    %540 = arith.addf %512, %539 : vector<1x16x16xf32>
    %541 = vector.extract_strided_slice %496 {offsets = [0, 5, 0], sizes = [1, 16, 16], strides = [1, 1, 1]} : vector<1x22x16xf32> to vector<1x16x16xf32>
    %542 = vector.broadcast %249 : f32 to vector<1x16x16xf32>
    %543 = arith.mulf %542, %541 : vector<1x16x16xf32>
    %544 = arith.addf %540, %543 : vector<1x16x16xf32>
    %545 = vector.extract_strided_slice %495 {offsets = [0, 6, 0], sizes = [1, 16, 16], strides = [1, 1, 1]} : vector<1x22x16xf32> to vector<1x16x16xf32>
    %546 = vector.broadcast %207 : f32 to vector<1x16x16xf32>
    %547 = arith.mulf %546, %545 : vector<1x16x16xf32>
    %548 = arith.addf %520, %547 : vector<1x16x16xf32>
    %549 = vector.extract_strided_slice %496 {offsets = [0, 6, 0], sizes = [1, 16, 16], strides = [1, 1, 1]} : vector<1x22x16xf32> to vector<1x16x16xf32>
    %550 = vector.broadcast %256 : f32 to vector<1x16x16xf32>
    %551 = arith.mulf %550, %549 : vector<1x16x16xf32>
    %552 = arith.addf %548, %551 : vector<1x16x16xf32>
    %553 = vector.extract_strided_slice %159 {offsets = [0, 0, 5], sizes = [1, 22, 16], strides = [1, 1, 1]} : vector<1x22x128xf32> to vector<1x22x16xf32>
    %554 = vector.extract_strided_slice %160 {offsets = [0, 0, 5], sizes = [1, 22, 16], strides = [1, 1, 1]} : vector<1x22x128xf32> to vector<1x22x16xf32>
    %555 = vector.extract_strided_slice %553 {offsets = [0, 0, 0], sizes = [1, 16, 16], strides = [1, 1, 1]} : vector<1x22x16xf32> to vector<1x16x16xf32>
    %556 = vector.broadcast %166 : f32 to vector<1x16x16xf32>
    %557 = arith.mulf %556, %555 : vector<1x16x16xf32>
    %558 = arith.addf %528, %557 : vector<1x16x16xf32>
    %559 = vector.extract_strided_slice %554 {offsets = [0, 0, 0], sizes = [1, 16, 16], strides = [1, 1, 1]} : vector<1x22x16xf32> to vector<1x16x16xf32>
    %560 = vector.broadcast %215 : f32 to vector<1x16x16xf32>
    %561 = arith.mulf %560, %559 : vector<1x16x16xf32>
    %562 = arith.addf %558, %561 : vector<1x16x16xf32>
    %563 = vector.extract_strided_slice %553 {offsets = [0, 1, 0], sizes = [1, 16, 16], strides = [1, 1, 1]} : vector<1x22x16xf32> to vector<1x16x16xf32>
    %564 = vector.broadcast %173 : f32 to vector<1x16x16xf32>
    %565 = arith.mulf %564, %563 : vector<1x16x16xf32>
    %566 = arith.addf %536, %565 : vector<1x16x16xf32>
    %567 = vector.extract_strided_slice %554 {offsets = [0, 1, 0], sizes = [1, 16, 16], strides = [1, 1, 1]} : vector<1x22x16xf32> to vector<1x16x16xf32>
    %568 = vector.broadcast %222 : f32 to vector<1x16x16xf32>
    %569 = arith.mulf %568, %567 : vector<1x16x16xf32>
    %570 = arith.addf %566, %569 : vector<1x16x16xf32>
    %571 = vector.extract_strided_slice %553 {offsets = [0, 2, 0], sizes = [1, 16, 16], strides = [1, 1, 1]} : vector<1x22x16xf32> to vector<1x16x16xf32>
    %572 = vector.broadcast %180 : f32 to vector<1x16x16xf32>
    %573 = arith.mulf %572, %571 : vector<1x16x16xf32>
    %574 = arith.addf %544, %573 : vector<1x16x16xf32>
    %575 = vector.extract_strided_slice %554 {offsets = [0, 2, 0], sizes = [1, 16, 16], strides = [1, 1, 1]} : vector<1x22x16xf32> to vector<1x16x16xf32>
    %576 = vector.broadcast %229 : f32 to vector<1x16x16xf32>
    %577 = arith.mulf %576, %575 : vector<1x16x16xf32>
    %578 = arith.addf %574, %577 : vector<1x16x16xf32>
    %579 = vector.extract_strided_slice %553 {offsets = [0, 3, 0], sizes = [1, 16, 16], strides = [1, 1, 1]} : vector<1x22x16xf32> to vector<1x16x16xf32>
    %580 = vector.broadcast %187 : f32 to vector<1x16x16xf32>
    %581 = arith.mulf %580, %579 : vector<1x16x16xf32>
    %582 = arith.addf %552, %581 : vector<1x16x16xf32>
    %583 = vector.extract_strided_slice %554 {offsets = [0, 3, 0], sizes = [1, 16, 16], strides = [1, 1, 1]} : vector<1x22x16xf32> to vector<1x16x16xf32>
    %584 = vector.broadcast %236 : f32 to vector<1x16x16xf32>
    %585 = arith.mulf %584, %583 : vector<1x16x16xf32>
    %586 = arith.addf %582, %585 : vector<1x16x16xf32>
    %587 = vector.extract_strided_slice %553 {offsets = [0, 4, 0], sizes = [1, 16, 16], strides = [1, 1, 1]} : vector<1x22x16xf32> to vector<1x16x16xf32>
    %588 = vector.broadcast %194 : f32 to vector<1x16x16xf32>
    %589 = arith.mulf %588, %587 : vector<1x16x16xf32>
    %590 = arith.addf %562, %589 : vector<1x16x16xf32>
    %591 = vector.extract_strided_slice %554 {offsets = [0, 4, 0], sizes = [1, 16, 16], strides = [1, 1, 1]} : vector<1x22x16xf32> to vector<1x16x16xf32>
    %592 = vector.broadcast %243 : f32 to vector<1x16x16xf32>
    %593 = arith.mulf %592, %591 : vector<1x16x16xf32>
    %594 = arith.addf %590, %593 : vector<1x16x16xf32>
    %595 = vector.extract_strided_slice %553 {offsets = [0, 5, 0], sizes = [1, 16, 16], strides = [1, 1, 1]} : vector<1x22x16xf32> to vector<1x16x16xf32>
    %596 = vector.broadcast %201 : f32 to vector<1x16x16xf32>
    %597 = arith.mulf %596, %595 : vector<1x16x16xf32>
    %598 = arith.addf %570, %597 : vector<1x16x16xf32>
    %599 = vector.extract_strided_slice %554 {offsets = [0, 5, 0], sizes = [1, 16, 16], strides = [1, 1, 1]} : vector<1x22x16xf32> to vector<1x16x16xf32>
    %600 = vector.broadcast %250 : f32 to vector<1x16x16xf32>
    %601 = arith.mulf %600, %599 : vector<1x16x16xf32>
    %602 = arith.addf %598, %601 : vector<1x16x16xf32>
    %603 = vector.extract_strided_slice %553 {offsets = [0, 6, 0], sizes = [1, 16, 16], strides = [1, 1, 1]} : vector<1x22x16xf32> to vector<1x16x16xf32>
    %604 = vector.broadcast %208 : f32 to vector<1x16x16xf32>
    %605 = arith.mulf %604, %603 : vector<1x16x16xf32>
    %606 = arith.addf %578, %605 : vector<1x16x16xf32>
    %607 = vector.extract_strided_slice %554 {offsets = [0, 6, 0], sizes = [1, 16, 16], strides = [1, 1, 1]} : vector<1x22x16xf32> to vector<1x16x16xf32>
    %608 = vector.broadcast %257 : f32 to vector<1x16x16xf32>
    %609 = arith.mulf %608, %607 : vector<1x16x16xf32>
    %610 = arith.addf %606, %609 : vector<1x16x16xf32>
    %611 = vector.extract_strided_slice %159 {offsets = [0, 0, 6], sizes = [1, 22, 16], strides = [1, 1, 1]} : vector<1x22x128xf32> to vector<1x22x16xf32>
    %612 = vector.extract_strided_slice %160 {offsets = [0, 0, 6], sizes = [1, 22, 16], strides = [1, 1, 1]} : vector<1x22x128xf32> to vector<1x22x16xf32>
    %613 = vector.extract_strided_slice %611 {offsets = [0, 0, 0], sizes = [1, 16, 16], strides = [1, 1, 1]} : vector<1x22x16xf32> to vector<1x16x16xf32>
    %614 = vector.broadcast %167 : f32 to vector<1x16x16xf32>
    %615 = arith.mulf %614, %613 : vector<1x16x16xf32>
    %616 = arith.addf %586, %615 : vector<1x16x16xf32>
    %617 = vector.extract_strided_slice %612 {offsets = [0, 0, 0], sizes = [1, 16, 16], strides = [1, 1, 1]} : vector<1x22x16xf32> to vector<1x16x16xf32>
    %618 = vector.broadcast %216 : f32 to vector<1x16x16xf32>
    %619 = arith.mulf %618, %617 : vector<1x16x16xf32>
    %620 = arith.addf %616, %619 : vector<1x16x16xf32>
    %621 = vector.extract_strided_slice %611 {offsets = [0, 1, 0], sizes = [1, 16, 16], strides = [1, 1, 1]} : vector<1x22x16xf32> to vector<1x16x16xf32>
    %622 = vector.broadcast %174 : f32 to vector<1x16x16xf32>
    %623 = arith.mulf %622, %621 : vector<1x16x16xf32>
    %624 = arith.addf %594, %623 : vector<1x16x16xf32>
    %625 = vector.extract_strided_slice %612 {offsets = [0, 1, 0], sizes = [1, 16, 16], strides = [1, 1, 1]} : vector<1x22x16xf32> to vector<1x16x16xf32>
    %626 = vector.broadcast %223 : f32 to vector<1x16x16xf32>
    %627 = arith.mulf %626, %625 : vector<1x16x16xf32>
    %628 = arith.addf %624, %627 : vector<1x16x16xf32>
    %629 = vector.extract_strided_slice %611 {offsets = [0, 2, 0], sizes = [1, 16, 16], strides = [1, 1, 1]} : vector<1x22x16xf32> to vector<1x16x16xf32>
    %630 = vector.broadcast %181 : f32 to vector<1x16x16xf32>
    %631 = arith.mulf %630, %629 : vector<1x16x16xf32>
    %632 = arith.addf %602, %631 : vector<1x16x16xf32>
    %633 = vector.extract_strided_slice %612 {offsets = [0, 2, 0], sizes = [1, 16, 16], strides = [1, 1, 1]} : vector<1x22x16xf32> to vector<1x16x16xf32>
    %634 = vector.broadcast %230 : f32 to vector<1x16x16xf32>
    %635 = arith.mulf %634, %633 : vector<1x16x16xf32>
    %636 = arith.addf %632, %635 : vector<1x16x16xf32>
    %637 = vector.extract_strided_slice %611 {offsets = [0, 3, 0], sizes = [1, 16, 16], strides = [1, 1, 1]} : vector<1x22x16xf32> to vector<1x16x16xf32>
    %638 = vector.broadcast %188 : f32 to vector<1x16x16xf32>
    %639 = arith.mulf %638, %637 : vector<1x16x16xf32>
    %640 = arith.addf %610, %639 : vector<1x16x16xf32>
    %641 = vector.extract_strided_slice %612 {offsets = [0, 3, 0], sizes = [1, 16, 16], strides = [1, 1, 1]} : vector<1x22x16xf32> to vector<1x16x16xf32>
    %642 = vector.broadcast %237 : f32 to vector<1x16x16xf32>
    %643 = arith.mulf %642, %641 : vector<1x16x16xf32>
    %644 = arith.addf %640, %643 : vector<1x16x16xf32>
    %645 = vector.extract_strided_slice %611 {offsets = [0, 4, 0], sizes = [1, 16, 16], strides = [1, 1, 1]} : vector<1x22x16xf32> to vector<1x16x16xf32>
    %646 = vector.broadcast %195 : f32 to vector<1x16x16xf32>
    %647 = arith.mulf %646, %645 : vector<1x16x16xf32>
    %648 = arith.addf %620, %647 : vector<1x16x16xf32>
    %649 = vector.extract_strided_slice %612 {offsets = [0, 4, 0], sizes = [1, 16, 16], strides = [1, 1, 1]} : vector<1x22x16xf32> to vector<1x16x16xf32>
    %650 = vector.broadcast %244 : f32 to vector<1x16x16xf32>
    %651 = arith.mulf %650, %649 : vector<1x16x16xf32>
    %652 = arith.addf %648, %651 : vector<1x16x16xf32>
    %653 = vector.extract_strided_slice %611 {offsets = [0, 5, 0], sizes = [1, 16, 16], strides = [1, 1, 1]} : vector<1x22x16xf32> to vector<1x16x16xf32>
    %654 = vector.broadcast %202 : f32 to vector<1x16x16xf32>
    %655 = arith.mulf %654, %653 : vector<1x16x16xf32>
    %656 = arith.addf %628, %655 : vector<1x16x16xf32>
    %657 = vector.extract_strided_slice %612 {offsets = [0, 5, 0], sizes = [1, 16, 16], strides = [1, 1, 1]} : vector<1x22x16xf32> to vector<1x16x16xf32>
    %658 = vector.broadcast %251 : f32 to vector<1x16x16xf32>
    %659 = arith.mulf %658, %657 : vector<1x16x16xf32>
    %660 = arith.addf %656, %659 : vector<1x16x16xf32>
    %661 = vector.extract_strided_slice %611 {offsets = [0, 6, 0], sizes = [1, 16, 16], strides = [1, 1, 1]} : vector<1x22x16xf32> to vector<1x16x16xf32>
    %662 = vector.broadcast %209 : f32 to vector<1x16x16xf32>
    %663 = arith.mulf %662, %661 : vector<1x16x16xf32>
    %664 = arith.addf %636, %663 : vector<1x16x16xf32>
    %665 = vector.extract_strided_slice %612 {offsets = [0, 6, 0], sizes = [1, 16, 16], strides = [1, 1, 1]} : vector<1x22x16xf32> to vector<1x16x16xf32>
    %666 = vector.broadcast %258 : f32 to vector<1x16x16xf32>
    %667 = arith.mulf %666, %665 : vector<1x16x16xf32>
    %668 = arith.addf %664, %667 : vector<1x16x16xf32>
    %669 = arith.addf %668, %660 : vector<1x16x16xf32>
    %670 = arith.addf %652, %644 : vector<1x16x16xf32>
    %671 = arith.addf %669, %670 : vector<1x16x16xf32>
    %672 = arith.negf %671 : vector<1x16x16xf32>
    %673 = math.exp %672 : vector<1x16x16xf32>
    %cst_130 = arith.constant 1.000000e+00 : f32
    %674 = vector.broadcast %cst_130 : f32 to vector<1x16x16xf32>
    %675 = arith.addf %674, %673 : vector<1x16x16xf32>
    %676 = arith.divf %674, %675 : vector<1x16x16xf32>
    %677 = vector.extract_strided_slice %676 {offsets = [0, 0, 0], sizes = [1, 1, 16], strides = [1, 1, 1]} : vector<1x16x16xf32> to vector<1x1x16xf32>
    %678 = vector.shape_cast %677 : vector<1x1x16xf32> to vector<1x16xf32>
    %c0_131 = arith.constant 0 : index
    %c0_132 = arith.constant 0 : index
    %c0_133 = arith.constant 0 : index
    %679 = vector.load %arg8[%c0_131, %c0_132, %c0_133] : memref<1x1x256xf32, #tpu.memory_space<vmem>>, vector<1x1x16xf32>
    %680 = vector.shape_cast %679 : vector<1x1x16xf32> to vector<1x16xf32>
    %681 = vector.shape_cast %678 : vector<1x16xf32> to vector<1x1x16xf32>
    tpu.vector_store %arg8[%c0_131, %c0_132, %c0_133], %681 {strides = array<i32>} : memref<1x1x256xf32, #tpu.memory_space<vmem>>, vector<1x1x16xf32>,
    %682 = vector.extract_strided_slice %676 {offsets = [0, 1, 0], sizes = [1, 1, 16], strides = [1, 1, 1]} : vector<1x16x16xf32> to vector<1x1x16xf32>
    %683 = vector.shape_cast %682 : vector<1x1x16xf32> to vector<1x16xf32>
    %c0_134 = arith.constant 0 : index
    %c0_135 = arith.constant 0 : index
    %c16_136 = arith.constant 16 : index
    %684 = vector.load %arg8[%c0_134, %c0_135, %c16_136] : memref<1x1x256xf32, #tpu.memory_space<vmem>>, vector<1x1x16xf32>
    %685 = vector.shape_cast %684 : vector<1x1x16xf32> to vector<1x16xf32>
    %686 = vector.shape_cast %683 : vector<1x16xf32> to vector<1x1x16xf32>
    tpu.vector_store %arg8[%c0_134, %c0_135, %c16_136], %686 {strides = array<i32>} : memref<1x1x256xf32, #tpu.memory_space<vmem>>, vector<1x1x16xf32>,
    %687 = vector.extract_strided_slice %676 {offsets = [0, 2, 0], sizes = [1, 1, 16], strides = [1, 1, 1]} : vector<1x16x16xf32> to vector<1x1x16xf32>
    %688 = vector.shape_cast %687 : vector<1x1x16xf32> to vector<1x16xf32>
    %c0_137 = arith.constant 0 : index
    %c0_138 = arith.constant 0 : index
    %c32_139 = arith.constant 32 : index
    %689 = vector.load %arg8[%c0_137, %c0_138, %c32_139] : memref<1x1x256xf32, #tpu.memory_space<vmem>>, vector<1x1x16xf32>
    %690 = vector.shape_cast %689 : vector<1x1x16xf32> to vector<1x16xf32>
    %691 = vector.shape_cast %688 : vector<1x16xf32> to vector<1x1x16xf32>
    tpu.vector_store %arg8[%c0_137, %c0_138, %c32_139], %691 {strides = array<i32>} : memref<1x1x256xf32, #tpu.memory_space<vmem>>, vector<1x1x16xf32>,
    %692 = vector.extract_strided_slice %676 {offsets = [0, 3, 0], sizes = [1, 1, 16], strides = [1, 1, 1]} : vector<1x16x16xf32> to vector<1x1x16xf32>
    %693 = vector.shape_cast %692 : vector<1x1x16xf32> to vector<1x16xf32>
    %c0_140 = arith.constant 0 : index
    %c0_141 = arith.constant 0 : index
    %c48_142 = arith.constant 48 : index
    %694 = vector.load %arg8[%c0_140, %c0_141, %c48_142] : memref<1x1x256xf32, #tpu.memory_space<vmem>>, vector<1x1x16xf32>
    %695 = vector.shape_cast %694 : vector<1x1x16xf32> to vector<1x16xf32>
    %696 = vector.shape_cast %693 : vector<1x16xf32> to vector<1x1x16xf32>
    tpu.vector_store %arg8[%c0_140, %c0_141, %c48_142], %696 {strides = array<i32>} : memref<1x1x256xf32, #tpu.memory_space<vmem>>, vector<1x1x16xf32>,
    %697 = vector.extract_strided_slice %676 {offsets = [0, 4, 0], sizes = [1, 1, 16], strides = [1, 1, 1]} : vector<1x16x16xf32> to vector<1x1x16xf32>
    %698 = vector.shape_cast %697 : vector<1x1x16xf32> to vector<1x16xf32>
    %c0_143 = arith.constant 0 : index
    %c0_144 = arith.constant 0 : index
    %c64_145 = arith.constant 64 : index
    %699 = vector.load %arg8[%c0_143, %c0_144, %c64_145] : memref<1x1x256xf32, #tpu.memory_space<vmem>>, vector<1x1x16xf32>
    %700 = vector.shape_cast %699 : vector<1x1x16xf32> to vector<1x16xf32>
    %701 = vector.shape_cast %698 : vector<1x16xf32> to vector<1x1x16xf32>
    tpu.vector_store %arg8[%c0_143, %c0_144, %c64_145], %701 {strides = array<i32>} : memref<1x1x256xf32, #tpu.memory_space<vmem>>, vector<1x1x16xf32>,
    %702 = vector.extract_strided_slice %676 {offsets = [0, 5, 0], sizes = [1, 1, 16], strides = [1, 1, 1]} : vector<1x16x16xf32> to vector<1x1x16xf32>
    %703 = vector.shape_cast %702 : vector<1x1x16xf32> to vector<1x16xf32>
    %c0_146 = arith.constant 0 : index
    %c0_147 = arith.constant 0 : index
    %c80_148 = arith.constant 80 : index
    %704 = vector.load %arg8[%c0_146, %c0_147, %c80_148] : memref<1x1x256xf32, #tpu.memory_space<vmem>>, vector<1x1x16xf32>
    %705 = vector.shape_cast %704 : vector<1x1x16xf32> to vector<1x16xf32>
    %706 = vector.shape_cast %703 : vector<1x16xf32> to vector<1x1x16xf32>
    tpu.vector_store %arg8[%c0_146, %c0_147, %c80_148], %706 {strides = array<i32>} : memref<1x1x256xf32, #tpu.memory_space<vmem>>, vector<1x1x16xf32>,
    %707 = vector.extract_strided_slice %676 {offsets = [0, 6, 0], sizes = [1, 1, 16], strides = [1, 1, 1]} : vector<1x16x16xf32> to vector<1x1x16xf32>
    %708 = vector.shape_cast %707 : vector<1x1x16xf32> to vector<1x16xf32>
    %c0_149 = arith.constant 0 : index
    %c0_150 = arith.constant 0 : index
    %c96_151 = arith.constant 96 : index
    %709 = vector.load %arg8[%c0_149, %c0_150, %c96_151] : memref<1x1x256xf32, #tpu.memory_space<vmem>>, vector<1x1x16xf32>
    %710 = vector.shape_cast %709 : vector<1x1x16xf32> to vector<1x16xf32>
    %711 = vector.shape_cast %708 : vector<1x16xf32> to vector<1x1x16xf32>
    tpu.vector_store %arg8[%c0_149, %c0_150, %c96_151], %711 {strides = array<i32>} : memref<1x1x256xf32, #tpu.memory_space<vmem>>, vector<1x1x16xf32>,
    %712 = vector.extract_strided_slice %676 {offsets = [0, 7, 0], sizes = [1, 1, 16], strides = [1, 1, 1]} : vector<1x16x16xf32> to vector<1x1x16xf32>
    %713 = vector.shape_cast %712 : vector<1x1x16xf32> to vector<1x16xf32>
    %c0_152 = arith.constant 0 : index
    %c0_153 = arith.constant 0 : index
    %c112 = arith.constant 112 : index
    %714 = vector.load %arg8[%c0_152, %c0_153, %c112] : memref<1x1x256xf32, #tpu.memory_space<vmem>>, vector<1x1x16xf32>
    %715 = vector.shape_cast %714 : vector<1x1x16xf32> to vector<1x16xf32>
    %716 = vector.shape_cast %713 : vector<1x16xf32> to vector<1x1x16xf32>
    tpu.vector_store %arg8[%c0_152, %c0_153, %c112], %716 {strides = array<i32>} : memref<1x1x256xf32, #tpu.memory_space<vmem>>, vector<1x1x16xf32>,
    %717 = vector.extract_strided_slice %676 {offsets = [0, 8, 0], sizes = [1, 1, 16], strides = [1, 1, 1]} : vector<1x16x16xf32> to vector<1x1x16xf32>
    %718 = vector.shape_cast %717 : vector<1x1x16xf32> to vector<1x16xf32>
    %c0_154 = arith.constant 0 : index
    %c0_155 = arith.constant 0 : index
    %c128 = arith.constant 128 : index
    %719 = vector.load %arg8[%c0_154, %c0_155, %c128] : memref<1x1x256xf32, #tpu.memory_space<vmem>>, vector<1x1x16xf32>
    %720 = vector.shape_cast %719 : vector<1x1x16xf32> to vector<1x16xf32>
    %721 = vector.shape_cast %718 : vector<1x16xf32> to vector<1x1x16xf32>
    tpu.vector_store %arg8[%c0_154, %c0_155, %c128], %721 {strides = array<i32>} : memref<1x1x256xf32, #tpu.memory_space<vmem>>, vector<1x1x16xf32>,
    %722 = vector.extract_strided_slice %676 {offsets = [0, 9, 0], sizes = [1, 1, 16], strides = [1, 1, 1]} : vector<1x16x16xf32> to vector<1x1x16xf32>
    %723 = vector.shape_cast %722 : vector<1x1x16xf32> to vector<1x16xf32>
    %c0_156 = arith.constant 0 : index
    %c0_157 = arith.constant 0 : index
    %c144 = arith.constant 144 : index
    %724 = vector.load %arg8[%c0_156, %c0_157, %c144] : memref<1x1x256xf32, #tpu.memory_space<vmem>>, vector<1x1x16xf32>
    %725 = vector.shape_cast %724 : vector<1x1x16xf32> to vector<1x16xf32>
    %726 = vector.shape_cast %723 : vector<1x16xf32> to vector<1x1x16xf32>
    tpu.vector_store %arg8[%c0_156, %c0_157, %c144], %726 {strides = array<i32>} : memref<1x1x256xf32, #tpu.memory_space<vmem>>, vector<1x1x16xf32>,
    %727 = vector.extract_strided_slice %676 {offsets = [0, 10, 0], sizes = [1, 1, 16], strides = [1, 1, 1]} : vector<1x16x16xf32> to vector<1x1x16xf32>
    %728 = vector.shape_cast %727 : vector<1x1x16xf32> to vector<1x16xf32>
    %c0_158 = arith.constant 0 : index
    %c0_159 = arith.constant 0 : index
    %c160 = arith.constant 160 : index
    %729 = vector.load %arg8[%c0_158, %c0_159, %c160] : memref<1x1x256xf32, #tpu.memory_space<vmem>>, vector<1x1x16xf32>
    %730 = vector.shape_cast %729 : vector<1x1x16xf32> to vector<1x16xf32>
    %731 = vector.shape_cast %728 : vector<1x16xf32> to vector<1x1x16xf32>
    tpu.vector_store %arg8[%c0_158, %c0_159, %c160], %731 {strides = array<i32>} : memref<1x1x256xf32, #tpu.memory_space<vmem>>, vector<1x1x16xf32>,
    %732 = vector.extract_strided_slice %676 {offsets = [0, 11, 0], sizes = [1, 1, 16], strides = [1, 1, 1]} : vector<1x16x16xf32> to vector<1x1x16xf32>
    %733 = vector.shape_cast %732 : vector<1x1x16xf32> to vector<1x16xf32>
    %c0_160 = arith.constant 0 : index
    %c0_161 = arith.constant 0 : index
    %c176 = arith.constant 176 : index
    %734 = vector.load %arg8[%c0_160, %c0_161, %c176] : memref<1x1x256xf32, #tpu.memory_space<vmem>>, vector<1x1x16xf32>
    %735 = vector.shape_cast %734 : vector<1x1x16xf32> to vector<1x16xf32>
    %736 = vector.shape_cast %733 : vector<1x16xf32> to vector<1x1x16xf32>
    tpu.vector_store %arg8[%c0_160, %c0_161, %c176], %736 {strides = array<i32>} : memref<1x1x256xf32, #tpu.memory_space<vmem>>, vector<1x1x16xf32>,
    %737 = vector.extract_strided_slice %676 {offsets = [0, 12, 0], sizes = [1, 1, 16], strides = [1, 1, 1]} : vector<1x16x16xf32> to vector<1x1x16xf32>
    %738 = vector.shape_cast %737 : vector<1x1x16xf32> to vector<1x16xf32>
    %c0_162 = arith.constant 0 : index
    %c0_163 = arith.constant 0 : index
    %c192 = arith.constant 192 : index
    %739 = vector.load %arg8[%c0_162, %c0_163, %c192] : memref<1x1x256xf32, #tpu.memory_space<vmem>>, vector<1x1x16xf32>
    %740 = vector.shape_cast %739 : vector<1x1x16xf32> to vector<1x16xf32>
    %741 = vector.shape_cast %738 : vector<1x16xf32> to vector<1x1x16xf32>
    tpu.vector_store %arg8[%c0_162, %c0_163, %c192], %741 {strides = array<i32>} : memref<1x1x256xf32, #tpu.memory_space<vmem>>, vector<1x1x16xf32>,
    %742 = vector.extract_strided_slice %676 {offsets = [0, 13, 0], sizes = [1, 1, 16], strides = [1, 1, 1]} : vector<1x16x16xf32> to vector<1x1x16xf32>
    %743 = vector.shape_cast %742 : vector<1x1x16xf32> to vector<1x16xf32>
    %c0_164 = arith.constant 0 : index
    %c0_165 = arith.constant 0 : index
    %c208 = arith.constant 208 : index
    %744 = vector.load %arg8[%c0_164, %c0_165, %c208] : memref<1x1x256xf32, #tpu.memory_space<vmem>>, vector<1x1x16xf32>
    %745 = vector.shape_cast %744 : vector<1x1x16xf32> to vector<1x16xf32>
    %746 = vector.shape_cast %743 : vector<1x16xf32> to vector<1x1x16xf32>
    tpu.vector_store %arg8[%c0_164, %c0_165, %c208], %746 {strides = array<i32>} : memref<1x1x256xf32, #tpu.memory_space<vmem>>, vector<1x1x16xf32>,
    %747 = vector.extract_strided_slice %676 {offsets = [0, 14, 0], sizes = [1, 1, 16], strides = [1, 1, 1]} : vector<1x16x16xf32> to vector<1x1x16xf32>
    %748 = vector.shape_cast %747 : vector<1x1x16xf32> to vector<1x16xf32>
    %c0_166 = arith.constant 0 : index
    %c0_167 = arith.constant 0 : index
    %c224 = arith.constant 224 : index
    %749 = vector.load %arg8[%c0_166, %c0_167, %c224] : memref<1x1x256xf32, #tpu.memory_space<vmem>>, vector<1x1x16xf32>
    %750 = vector.shape_cast %749 : vector<1x1x16xf32> to vector<1x16xf32>
    %751 = vector.shape_cast %748 : vector<1x16xf32> to vector<1x1x16xf32>
    tpu.vector_store %arg8[%c0_166, %c0_167, %c224], %751 {strides = array<i32>} : memref<1x1x256xf32, #tpu.memory_space<vmem>>, vector<1x1x16xf32>,
    %752 = vector.extract_strided_slice %676 {offsets = [0, 15, 0], sizes = [1, 1, 16], strides = [1, 1, 1]} : vector<1x16x16xf32> to vector<1x1x16xf32>
    %753 = vector.shape_cast %752 : vector<1x1x16xf32> to vector<1x16xf32>
    %c0_168 = arith.constant 0 : index
    %c0_169 = arith.constant 0 : index
    %c240 = arith.constant 240 : index
    %754 = vector.load %arg8[%c0_168, %c0_169, %c240] : memref<1x1x256xf32, #tpu.memory_space<vmem>>, vector<1x1x16xf32>
    %755 = vector.shape_cast %754 : vector<1x1x16xf32> to vector<1x16xf32>
    %756 = vector.shape_cast %753 : vector<1x16xf32> to vector<1x1x16xf32>
    tpu.vector_store %arg8[%c0_168, %c0_169, %c240], %756 {strides = array<i32>} : memref<1x1x256xf32, #tpu.memory_space<vmem>>, vector<1x1x16xf32>,
    %c0_170 = arith.constant 0 : index
    %c0_171 = arith.constant 0 : index
    %c0_172 = arith.constant 0 : index
    %757 = vector.load %arg8[%c0_170, %c0_171, %c0_172] : memref<1x1x256xf32, #tpu.memory_space<vmem>>, vector<1x1x256xf32>
    %758 = vector.broadcast %757 : vector<1x1x256xf32> to vector<1x32x256xf32>
    %759 = arith.mulf %22, %758 : vector<1x32x256xf32>
    %760 = arith.addf %759, %0 : vector<1x32x256xf32>
    %cst_173 = arith.constant 0.000000e+00 : f32
    %761 = vector.broadcast %cst_173 : f32 to vector<1x32x256xf32>
    %762 = arith.maximumf %760, %761 : vector<1x32x256xf32>
    %c0_174 = arith.constant 0 : index
    %c0_175 = arith.constant 0 : index
    %c0_176 = arith.constant 0 : index
    %763 = vector.load %arg5[%c0_174, %c0_175, %c0_176] : memref<1x32x256xf32, #tpu.memory_space<vmem>>, vector<1x32x256xf32>
    tpu.vector_store %arg5[%c0_174, %c0_175, %c0_176], %762 {strides = array<i32>} : memref<1x32x256xf32, #tpu.memory_space<vmem>>, vector<1x32x256xf32>,
    return
  }
  func.func @transform_0(%arg0: i32) -> (i32, i32, i32) {
    %c0_i32 = arith.constant 0 : i32
    %c0_i32_0 = arith.constant 0 : i32
    %c0_i32_1 = arith.constant 0 : i32
    return %arg0, %c0_i32, %c0_i32_0 : i32, i32, i32
  }
  func.func @transform_1(%arg0: i32) -> (i32, i32) {
    %c0_i32 = arith.constant 0 : i32
    %c0_i32_0 = arith.constant 0 : i32
    %c0_i32_1 = arith.constant 0 : i32
    return %c0_i32, %c0_i32_0 : i32, i32
  }
  func.func @transform_2(%arg0: i32) -> (i32, i32) {
    %c0_i32 = arith.constant 0 : i32
    %c0_i32_0 = arith.constant 0 : i32
    %c0_i32_1 = arith.constant 0 : i32
    return %c0_i32, %c0_i32_0 : i32, i32
  }
  func.func @transform_3(%arg0: i32) -> i32 {
    %c0_i32 = arith.constant 0 : i32
    %c0_i32_0 = arith.constant 0 : i32
    return %c0_i32 : i32
  }
  func.func @transform_4(%arg0: i32) -> (i32, i32, i32) {
    %c0_i32 = arith.constant 0 : i32
    %c0_i32_0 = arith.constant 0 : i32
    %c0_i32_1 = arith.constant 0 : i32
    return %arg0, %c0_i32, %c0_i32_0 : i32, i32, i32
  }
}

</mosaic_0001>

<llo_original>
// kernel: tpu_custom_call.1
$region0: #{tpu_custom_call.1}
  #allocation0 [shape = 'u32[]', space=smem, size = 0x4, offset = 0x4, fixed_abs, tag = 'smem constant byte address 0x4 - core index']
  #allocation1 [shape = 'u32[144,128]{1,0:T(1,128)}', space=vmem, size = 0x12000, scoped, tag = 'internal scratch']
  #allocation2 [shape = 'f32[1,22,128]{2,1,0:T(8,128)}', space=vmem, size = 0x3000, scoped, tag = 'scratch operand']
  #allocation3 [shape = 'f32[1,22,128]{2,1,0:T(8,128)}', space=vmem, size = 0x3000, scoped, tag = 'scratch operand']
  #allocation4 [shape = 'f32[1,1,256]{2,1,0:T(1,128)}', space=vmem, size = 0x400, scoped, tag = 'scratch operand']
  %s0 = inlined_call_operand.hbm [shape: f32[2,32,256], index: 0, kind: input, shape index: {}]
  %s1 = inlined_call_operand.vmem [shape: f32[32,2], index: 1, kind: input, shape index: {}]
  %s2 = inlined_call_operand.vmem [shape: f32[2,32], index: 2, kind: input, shape index: {}]
  %s3 = inlined_call_operand.vmem [shape: f32[98], index: 3, kind: input, shape index: {}]
  %s4 = inlined_call_operand.hbm [shape: f32[2,32,256], index: 4, kind: output, shape index: {}]
  %s5 = sld [smem:[#allocation0]]
  $region57: #{tpu_custom_call.1} parent=0
    _
  %s7 = ssub.s32 1, %s5
  %s8 = scalar_select 0, %s7, %s5
  $region1: #{tpu_custom_call.1} parent=0
    #allocation5 [shape = 'u8[65536]{0}', space=vmem, size = 0x10000, scoped, tag = 'input window, operand 0']
    #allocation6 [shape = 's32[2]{0}', space=sflag, size = 0x8, scoped, tag = 'scoped memory for tpu_custom_call.1']
    #allocation7 [shape = 's32[2]{0}', space=sflag, size = 0x8, scoped, tag = 'scoped memory for tpu_custom_call.1']
    #allocation8 [shape = 's32[2]{0}', space=sflag, size = 0x8, scoped, tag = 'scoped memory for tpu_custom_call.1']
    #allocation9 [shape = 'u8[512]{0}', space=smem, size = 0x200, scoped, tag = 'input window, operand 3, single buffered']
    #allocation10 [shape = 'u8[65536]{0}', space=vmem, size = 0x10000, scoped, tag = 'output window, operand 0']
    %9 = vsyncpa [#allocation6], 0
    %s10 = scalar_lea.sflag [#allocation6], 1
    %11 = vsyncpa %s10, 0
    %12 = vsyncpa [#allocation8], 0
    %13 = vsyncpa [#allocation7], 0
    %s14 = scalar_lea.sflag [#allocation7], 1
    %15 = vsyncpa %s14, 0
    loop: start=0, step=1, limit=4
    $region2: #{tpu_custom_call.1} parent=1 // loop_pre_header
      _
    $region3: #{tpu_custom_call.1} parent=1 // loop_header
      %s17 = sphi 0, %s21
      %p18 = scmp.ge.s32.totalorder %s17, 4
      %s27 = sphi 0, %s29
      %s30 = sphi 0, %s27
      %s31 = sphi 0, %s30
      %s47 = sphi 0, %s31
      %s51 = sphi 0, %s51
      %s53 = sphi 0, %s51
      %s54 = sphi 0, %s53
      %s68 = sphi 0, %s54
      %s72 = sphi 0, %s72
      %s74 = sphi 0, %s72
      %s75 = sphi 0, %s74
      %s89 = sphi 0, %s75
      %s93 = sphi 0, %s93
      %s95 = sphi 0, %s93
      %s96 = sphi 0, %s95
      %s110 = sphi 0, %s96
      %s116 = sphi 0, %s118
      %s119 = sphi 0, %s116
      %s120 = sphi 0, %s119
      %s136 = sphi 0, %s120
    $region4: #{tpu_custom_call.1} parent=1 // loop_header_branch
      %20 = sbr.rel (%p18) target = $region8
    $region5: #{tpu_custom_call.1} parent=1 // loop_body
      %s22 = ssub.s32 %s17, 1
      %s23 = ssub.s32 %s17, 2
      %s24 = sadd.s32 %s17, 1
      %s25 = ssub.s32 %s17, %s24
      %p26 = scmp.eq.s32.totalorder %s25, 0
      %s28 = sadd.s32 %s27, 1
      %s29 = scalar_select %p26, %s27, %s28
      %p32 = pneg %p26
      %p33 = scmp.eq.s32.totalorder %s17, 1
      %p34 = por %p32, %p33
      %p35 = scmp.ne.s32.totalorder %s27, %s30
      %p36 = scmp.eq.s32.totalorder %s17, 0
      %p37 = por %p35, %p36
      %p38 = scmp.ne.s32.totalorder %s27, %s30
      %p39 = scmp.eq.s32.totalorder %s22, 1
      %p40 = por %p38, %p39
      %p41 = scmp.ne.s32.totalorder %s30, %s31
      %p42 = scmp.eq.s32.totalorder %s22, 0
      %p43 = por %p41, %p42
      %p44 = scmp.ne.s32.totalorder %s30, %s31
      %p45 = scmp.eq.s32.totalorder %s23, 1
      %p46 = por %p44, %p45
      %p48 = scmp.ne.s32.totalorder %s31, %s47
      %p49 = scmp.eq.s32.totalorder %s23, 0
      %p50 = por %p48, %p49
      %s52 = sadd.s32 %s51, 1
      %p55 = scmp.eq.s32.totalorder %s17, 1
      %p56 = scmp.ne.s32.totalorder %s51, %s53
      %p57 = scmp.eq.s32.totalorder %s17, 0
      %p58 = por %p56, %p57
      %p59 = scmp.ne.s32.totalorder %s51, %s53
      %p60 = scmp.eq.s32.totalorder %s22, 1
      %p61 = por %p59, %p60
      %p62 = scmp.ne.s32.totalorder %s53, %s54
      %p63 = scmp.eq.s32.totalorder %s22, 0
      %p64 = por %p62, %p63
      %p65 = scmp.ne.s32.totalorder %s53, %s54
      %p66 = scmp.eq.s32.totalorder %s23, 1
      %p67 = por %p65, %p66
      %p69 = scmp.ne.s32.totalorder %s54, %s68
      %p70 = scmp.eq.s32.totalorder %s23, 0
      %p71 = por %p69, %p70
      %s73 = sadd.s32 %s72, 1
      %p76 = scmp.eq.s32.totalorder %s17, 1
      %p77 = scmp.ne.s32.totalorder %s72, %s74
      %p78 = scmp.eq.s32.totalorder %s17, 0
      %p79 = por %p77, %p78
      %p80 = scmp.ne.s32.totalorder %s72, %s74
      %p81 = scmp.eq.s32.totalorder %s22, 1
      %p82 = por %p80, %p81
      %p83 = scmp.ne.s32.totalorder %s74, %s75
      %p84 = scmp.eq.s32.totalorder %s22, 0
      %p85 = por %p83, %p84
      %p86 = scmp.ne.s32.totalorder %s74, %s75
      %p87 = scmp.eq.s32.totalorder %s23, 1
      %p88 = por %p86, %p87
      %p90 = scmp.ne.s32.totalorder %s75, %s89
      %p91 = scmp.eq.s32.totalorder %s23, 0
      %p92 = por %p90, %p91
      %s94 = sadd.s32 %s93, 1
      %p97 = scmp.eq.s32.totalorder %s17, 1
      %p98 = scmp.ne.s32.totalorder %s93, %s95
      %p99 = scmp.eq.s32.totalorder %s17, 0
      %p100 = por %p98, %p99
      %p101 = scmp.ne.s32.totalorder %s93, %s95
      %p102 = scmp.eq.s32.totalorder %s22, 1
      %p103 = por %p101, %p102
      %p104 = scmp.ne.s32.totalorder %s95, %s96
      %p105 = scmp.eq.s32.totalorder %s22, 0
      %p106 = por %p104, %p105
      %p107 = scmp.ne.s32.totalorder %s95, %s96
      %p108 = scmp.eq.s32.totalorder %s23, 1
      %p109 = por %p107, %p108
      %p111 = scmp.ne.s32.totalorder %s96, %s110
      %p112 = scmp.eq.s32.totalorder %s23, 0
      %p113 = por %p111, %p112
      %s114 = ssub.s32 %s17, %s24
      %p115 = scmp.eq.s32.totalorder %s114, 0
      %s117 = sadd.s32 %s116, 1
      %s118 = scalar_select %p115, %s116, %s117
      %p121 = pneg %p115
      %p122 = scmp.eq.s32.totalorder %s17, 1
      %p123 = por %p121, %p122
      %p124 = scmp.ne.s32.totalorder %s116, %s119
      %p125 = scmp.eq.s32.totalorder %s17, 0
      %p126 = por %p124, %p125
      %p127 = scmp.ne.s32.totalorder %s116, %s119
      %p128 = scmp.eq.s32.totalorder %s22, 1
      %p129 = por %p127, %p128
      %p130 = scmp.ne.s32.totalorder %s119, %s120
      %p131 = scmp.eq.s32.totalorder %s22, 0
      %p132 = por %p130, %p131
      %p133 = scmp.ne.s32.totalorder %s119, %s120
      %p134 = scmp.eq.s32.totalorder %s23, 1
      %p135 = por %p133, %p134
      %p137 = scmp.ne.s32.totalorder %s120, %s136
      %p138 = scmp.eq.s32.totalorder %s23, 0
      %p139 = por %p137, %p138
      %p140 = scmp.le.s32.totalorder 1, %s17
      %p141 = scmp.lt.s32.totalorder %s17, 3
      %p142 = pnand %p140, %p141
      %p143 = pneg %p142
      // Predicated region
      $region9: #{tpu_custom_call.1} parent=5 // pred_check
        _
      $region10: #{tpu_custom_call.1} parent=5 // pred_check_branch
        %145 = sbr.rel (%p142) target = $region12
      $region11: #{tpu_custom_call.1} parent=5 // pred_region
        %s146 = ssub.s32 %s17, 1
        // Predicated region
        $region13: #{tpu_custom_call.1} parent=11 // pred_check
          %p147 = pneg %p64
        $region14: #{tpu_custom_call.1} parent=11 // pred_check_branch
          %149 = sbr.rel (%p147) target = $region16
        $region15: #{tpu_custom_call.1} parent=11 // pred_region
          _
        $region16: #{tpu_custom_call.1} parent=11 // pred_fallthru
          _
        // Predicated region
        $region17: #{tpu_custom_call.1} parent=11 // pred_check
          %p150 = pneg %p85
        $region18: #{tpu_custom_call.1} parent=11 // pred_check_branch
          %152 = sbr.rel (%p150) target = $region20
        $region19: #{tpu_custom_call.1} parent=11 // pred_region
          _
        $region20: #{tpu_custom_call.1} parent=11 // pred_fallthru
          _
        // Predicated region
        $region21: #{tpu_custom_call.1} parent=11 // pred_check
          %p153 = pneg %p106
        $region22: #{tpu_custom_call.1} parent=11 // pred_check_branch
          %155 = sbr.rel (%p153) target = $region24
        $region23: #{tpu_custom_call.1} parent=11 // pred_region
          %s157 = ssub.s32 16, 16
          %158 = vsyncadd [#allocation8], %s157
          %s160 = sshll.u32 %s3, 4
          %s161 = int_to_ptr.vmem [resolvable:$true] %s160
          %163 = dma.vmem_to_smem %s161, 16, [#allocation9], [#allocation8]
        $region24: #{tpu_custom_call.1} parent=11 // pred_fallthru
          _
      $region12: #{tpu_custom_call.1} parent=5 // pred_fallthru
        _
      %p164 = scmp.lt.s32.totalorder %s17, 2
      // Predicated region
      $region25: #{tpu_custom_call.1} parent=5 // pred_check
        %p165 = pneg %p164
      $region26: #{tpu_custom_call.1} parent=5 // pred_check_branch
        %167 = sbr.rel (%p165) target = $region28
      $region27: #{tpu_custom_call.1} parent=5 // pred_region
        // Predicated region
        $region29: #{tpu_custom_call.1} parent=27 // pred_check
          %p168 = pneg %p37
        $region30: #{tpu_custom_call.1} parent=27 // pred_check_branch
          %170 = sbr.rel (%p168) target = $region32
        $region31: #{tpu_custom_call.1} parent=27 // pred_region
          %s171 = sand.u32 %s27, 1
          %s172 = scalar_lea.sflag [#allocation6], %s171
          %s173 = sand.u32 %s27, 1
          %s174 = smul.addr %s173, 64
          %s175 = scalar_lea.vmem [#allocation5], %s174
          %s177 = ssub.s32 1024, 1024
          %178 = vsyncadd %s172, %s177
          %s179 = smul.addr %s17, 8
          %s180 = smul.addr %s179, 128
          %s181 = scalar_lea.hbm %s0, %s180
          %s182 = sshll.u32 %s175, 4
          %s183 = int_to_ptr.vmem [resolvable:$true] %s182
          %188 = dma.hbm_to_vmem [thread:$0]  %s181, 1024, %s183, %s172, 256, 256, 16
        $region32: #{tpu_custom_call.1} parent=27 // pred_fallthru
          _
      $region28: #{tpu_custom_call.1} parent=5 // pred_fallthru
        _
      %p189 = scmp.le.s32.totalorder 1, %s17
      %p190 = scmp.lt.s32.totalorder %s17, 3
      %p191 = pnand %p189, %p190
      %p192 = pneg %p191
      // Predicated region
      $region33: #{tpu_custom_call.1} parent=5 // pred_check
        _
      $region34: #{tpu_custom_call.1} parent=5 // pred_check_branch
        %194 = sbr.rel (%p191) target = $region36
      $region35: #{tpu_custom_call.1} parent=5 // pred_region
        %s195 = ssub.s32 %s17, 1
        %s196 = sand.u32 %s30, 1
        %s197 = scalar_lea.sflag [#allocation6], %s196
        %s198 = sand.u32 %s30, 1
        %s199 = smul.addr %s198, 64
        %s200 = scalar_lea.vmem [#allocation5], %s199
        // Predicated region
        $region37: #{tpu_custom_call.1} parent=35 // pred_check
          %p201 = pneg %p43
        $region38: #{tpu_custom_call.1} parent=35 // pred_check_branch
          %203 = sbr.rel (%p201) target = $region40
        $region39: #{tpu_custom_call.1} parent=35 // pred_region
          %204 = dma.done %s197, 1024
        $region40: #{tpu_custom_call.1} parent=35 // pred_fallthru
          _
        // Predicated region
        $region41: #{tpu_custom_call.1} parent=35 // pred_check
          %p205 = pneg %p106
        $region42: #{tpu_custom_call.1} parent=35 // pred_check_branch
          %207 = sbr.rel (%p205) target = $region44
        $region43: #{tpu_custom_call.1} parent=35 // pred_region
          %208 = dma.done [#allocation8], 16
        $region44: #{tpu_custom_call.1} parent=35 // pred_fallthru
          _
        %209 = sfence
        %s210 = sand.u32 %s30, 1
        %s211 = scalar_lea.sflag [#allocation6], %s210
        %s212 = sand.u32 %s30, 1
        %s213 = smul.addr %s212, 64
        %s214 = scalar_lea.vmem [#allocation5], %s213
        %p215 = pneg %p43
        %p216 = pneg %p40
        %p217 = pneg %p64
        %p218 = pneg %p61
        %p219 = pneg %p85
        %p220 = pneg %p82
        %p221 = pneg %p106
        %p222 = pneg %p103
        %p223 = pneg %p132
        %p224 = pneg %p129
        %s225 = sand.u32 %s119, 1
        %s226 = scalar_lea.sflag [#allocation7], %s225
        %s227 = sand.u32 %s119, 1
        %s228 = smul.addr %s227, 64
        %s229 = scalar_lea.vmem [#allocation10], %s228
        %v230 = vld [vmem:[%s200] sm:$0xff]
        %v231 = vld [vmem:[%s200 + $0x8] sm:$0xff]
        %v232 = vld [vmem:[%s200 + $0x10] sm:$0xff]
        %v233 = vld [vmem:[%s200 + $0x18] sm:$0xff]
        %v234 = vld [vmem:[%s200 + $0x20] sm:$0xff]
        %v235 = vld [vmem:[%s200 + $0x28] sm:$0xff]
        %v236 = vld [vmem:[%s200 + $0x30] sm:$0xff]
        %v237 = vld [vmem:[%s200 + $0x38] sm:$0xff]
        %v238 = vadd.f32 %v230, %v231
        %239 = vadd.xlane.f32.xlu0 %v238
        %v240 = vpop.xlane.xlu0 %239
        %v241 = vadd.f32 %v232, %v233
        %242 = vadd.xlane.f32.xlu0 %v241
        %v243 = vpop.xlane.xlu0 %242
        %v244 = vadd.f32 %v234, %v235
        %245 = vadd.xlane.f32.xlu0 %v244
        %v246 = vpop.xlane.xlu0 %245
        %v247 = vadd.f32 %v236, %v237
        %248 = vadd.xlane.f32.xlu0 %v247
        %v249 = vpop.xlane.xlu0 %248
        %v250 = vrcp.pop 256.0
        %v251 = vmul.f32 %v240, %v250
        %v252 = vmul.f32 %v243, %v250
        %v253 = vmul.f32 %v246, %v250
        %v254 = vmul.f32 %v249, %v250
        %v255 = vmax.f32 %v230, %v231
        %256 = vmax.xlane.f32.xlu0 %v255
        %v257 = vpop.xlane.xlu0 %256
        %v258 = vmax.f32 %v232, %v233
        %259 = vmax.xlane.f32.xlu0 %v258
        %v260 = vpop.xlane.xlu0 %259
        %v261 = vmax.f32 %v234, %v235
        %262 = vmax.xlane.f32.xlu0 %v261
        %v263 = vpop.xlane.xlu0 %262
        %v264 = vmax.f32 %v236, %v237
        %265 = vmax.xlane.f32.xlu0 %v264
        %v266 = vpop.xlane.xlu0 %265
        %v271 = vlaneseq
        %v272 = vand.u32 %v271, 127
        %v273 = vlaneseq
        %v274 = vshrl.u32 %v273, 7
        %v275 = vsub.s32 %v272, %v274
        %v276 = vrot.slane %v251, %v275
        %v277 = vadd.s32 %v272, 4294967288
        %v278 = vlaneseq
        %v279 = vshrl.u32 %v278, 7
        %v280 = vsub.s32 %v277, %v279
        %v281 = vrot.slane %v252, %v280
        %vm282 = vcmask 130112
        %v283 = vsel %vm282, %v281, %v276
        %v284 = vadd.s32 %v272, 4294967280
        %v285 = vlaneseq
        %v286 = vshrl.u32 %v285, 7
        %v287 = vsub.s32 %v284, %v286
        %v288 = vrot.slane %v253, %v287
        %vm289 = vcmask 195712
        %v290 = vsel %vm289, %v288, %v283
        %v291 = vadd.s32 %v272, 4294967272
        %v292 = vlaneseq
        %v293 = vshrl.u32 %v292, 7
        %v294 = vsub.s32 %v291, %v293
        %v295 = vrot.slane %v254, %v294
        %vm296 = vcmask 261312
        %v297 = vsel %vm296, %v295, %v290
        %v303 = vlaneseq
        %v304 = vshrl.u32 %v303, 7
        %v305 = vsub.s32 %v272, %v304
        %v306 = vrot.slane %v257, %v305
        %v307 = vlaneseq
        %v308 = vshrl.u32 %v307, 7
        %v309 = vsub.s32 %v277, %v308
        %v310 = vrot.slane %v260, %v309
        %v311 = vsel %vm282, %v310, %v306
        %v312 = vlaneseq
        %v313 = vshrl.u32 %v312, 7
        %v314 = vsub.s32 %v284, %v313
        %v315 = vrot.slane %v263, %v314
        %v316 = vsel %vm289, %v315, %v311
        %v317 = vlaneseq
        %v318 = vshrl.u32 %v317, 7
        %v319 = vsub.s32 %v291, %v318
        %v320 = vrot.slane %v266, %v319
        %v321 = vsel %vm296, %v320, %v316
        %vm323 = vcmask 1040384
        %v324 = vsel %vm323, %v297, %v321
        %v325 = vld [vmem:[%s1] sm:$0xff]
        %v326 = vld [vmem:[%s1 + $0x8] sm:$0xff]
        %v327 = vld [vmem:[%s1 + $0x10] sm:$0xff]
        %v328 = vld [vmem:[%s1 + $0x18] sm:$0xff]
        %vm329 = vcmask 261120
        %v331 = vsel %vm329, %v324, 0
        %333 = vmatprep.subr.mxu0 0.0
        %334 = vmatpush1.msra.mxu0 0.0
        %335 = vmatprep.subr.mxu0 0.0
        %336 = vmatpush1.msra.mxu0 0.0
        %337 = vmatprep.subr.mxu0 0.0
        %338 = vmatpush1.msra.mxu0 0.0
        %339 = vmatprep.subr.mxu0 0.0
        %340 = vmatpush1.msra.mxu0 0.0
        %341 = vmatprep.subr.mxu0 0.0
        %342 = vmatpush1.msra.mxu0 0.0
        %343 = vmatprep.subr.mxu0 0.0
        %344 = vmatpush1.msra.mxu0 0.0
        %345 = vmatprep.subr.mxu0 0.0
        %346 = vmatpush1.msra.mxu0 0.0
        %347 = vmatprep.subr.mxu0 0.0
        %348 = vmatpush1.msra.mxu0 0.0
        %349 = vmatprep.subr.mxu0 0.0
        %350 = vmatpush1.msra.mxu0 0.0
        %351 = vmatprep.subr.mxu0 0.0
        %352 = vmatpush1.msra.mxu0 0.0
        %353 = vmatprep.subr.mxu0 0.0
        %354 = vmatpush1.msra.mxu0 0.0
        %355 = vmatprep.subr.mxu0 0.0
        %356 = vmatpush1.msra.mxu0 0.0
        %357 = vmatprep.subr.mxu0 0.0
        %358 = vmatpush1.msra.mxu0 %v328
        %359 = vmatprep.subr.mxu0 0.0
        %360 = vmatpush1.msra.mxu0 %v327
        %361 = vmatprep.subr.mxu0 0.0
        %362 = vmatpush1.msra.mxu0 %v326
        %363 = vmatprep.subr.mxu0 0.0
        %364 = vmatpush1.msra.mxu0 %v325
        %365 = vmatprep.subr.mxu0 0.0
        %366 = vmatpush2.msra.mxu0 0.0
        %367 = vmatprep.subr.mxu0 0.0
        %368 = vmatpush2.msra.mxu0 0.0
        %369 = vmatprep.subr.mxu0 0.0
        %370 = vmatpush2.msra.mxu0 0.0
        %371 = vmatprep.subr.mxu0 0.0
        %372 = vmatpush2.msra.mxu0 0.0
        %373 = vmatprep.subr.mxu0 0.0
        %374 = vmatpush2.msra.mxu0 0.0
        %375 = vmatprep.subr.mxu0 0.0
        %376 = vmatpush2.msra.mxu0 0.0
        %377 = vmatprep.subr.mxu0 0.0
        %378 = vmatpush2.msra.mxu0 0.0
        %379 = vmatprep.subr.mxu0 0.0
        %380 = vmatpush2.msra.mxu0 0.0
        %381 = vmatprep.subr.mxu0 0.0
        %382 = vmatpush2.msra.mxu0 0.0
        %383 = vmatprep.subr.mxu0 0.0
        %384 = vmatpush2.msra.mxu0 0.0
        %385 = vmatprep.subr.mxu0 0.0
        %386 = vmatpush2.msra.mxu0 0.0
        %387 = vmatprep.subr.mxu0 0.0
        %388 = vmatpush2.msra.mxu0 0.0
        %389 = vmatprep.subr.mxu0 0.0
        %390 = vmatpush2.msra.mxu0 0.0
        %391 = vmatprep.subr.mxu0 0.0
        %392 = vmatpush2.msra.mxu0 0.0
        %393 = vmatprep.subr.mxu0 0.0
        %394 = vmatpush2.msra.mxu0 0.0
        %395 = vmatprep.subr.mxu0 0.0
        %396 = vmatpush2.msra.mxu0 0.0
        %397 = vmatprep.mubr.f32.mxu0 0.0
        %398 = vmatmul.mubr.f32.gmra.mxu0 %v331
        %v399 = vpop.f32.mrf.mxu0
        %v400 = vadd.f32 0.0, %v399
        %v401 = vpop.f32.mrf.mxu0
        %402 = vdwg.mxu0
        %v403 = vmax.f32 %v400, 0.0
        %v404 = vld [vmem:[%s2] sm:$0x3]
        %vm405 = vcmask 15360
        %v407 = vsel %vm405, %v403, 0
        %vm409 = vcmask 1041408
        %v411 = vsel %vm409, %v404, 0
        %413 = vmatprep.subr.mxu0 0.0
        %414 = vmatpush1.msra.mxu0 0.0
        %415 = vmatprep.subr.mxu0 0.0
        %416 = vmatpush1.msra.mxu0 0.0
        %417 = vmatprep.subr.mxu0 0.0
        %418 = vmatpush1.msra.mxu0 0.0
        %419 = vmatprep.subr.mxu0 0.0
        %420 = vmatpush1.msra.mxu0 0.0
        %421 = vmatprep.subr.mxu0 0.0
        %422 = vmatpush1.msra.mxu0 0.0
        %423 = vmatprep.subr.mxu0 0.0
        %424 = vmatpush1.msra.mxu0 0.0
        %425 = vmatprep.subr.mxu0 0.0
        %426 = vmatpush1.msra.mxu0 0.0
        %427 = vmatprep.subr.mxu0 0.0
        %428 = vmatpush1.msra.mxu0 0.0
        %429 = vmatprep.subr.mxu0 0.0
        %430 = vmatpush1.msra.mxu0 0.0
        %431 = vmatprep.subr.mxu0 0.0
        %432 = vmatpush1.msra.mxu0 0.0
        %433 = vmatprep.subr.mxu0 0.0
        %434 = vmatpush1.msra.mxu0 0.0
        %435 = vmatprep.subr.mxu0 0.0
        %436 = vmatpush1.msra.mxu0 0.0
        %437 = vmatprep.subr.mxu0 0.0
        %438 = vmatpush1.msra.mxu0 0.0
        %439 = vmatprep.subr.mxu0 0.0
        %440 = vmatpush1.msra.mxu0 0.0
        %441 = vmatprep.subr.mxu0 0.0
        %442 = vmatpush1.msra.mxu0 0.0
        %443 = vmatprep.subr.mxu0 0.0
        %444 = vmatpush1.msra.mxu0 %v411
        %445 = vmatprep.subr.mxu0 0.0
        %446 = vmatpush2.msra.mxu0 0.0
        %447 = vmatprep.subr.mxu0 0.0
        %448 = vmatpush2.msra.mxu0 0.0
        %449 = vmatprep.subr.mxu0 0.0
        %450 = vmatpush2.msra.mxu0 0.0
        %451 = vmatprep.subr.mxu0 0.0
        %452 = vmatpush2.msra.mxu0 0.0
        %453 = vmatprep.subr.mxu0 0.0
        %454 = vmatpush2.msra.mxu0 0.0
        %455 = vmatprep.subr.mxu0 0.0
        %456 = vmatpush2.msra.mxu0 0.0
        %457 = vmatprep.subr.mxu0 0.0
        %458 = vmatpush2.msra.mxu0 0.0
        %459 = vmatprep.subr.mxu0 0.0
        %460 = vmatpush2.msra.mxu0 0.0
        %461 = vmatprep.subr.mxu0 0.0
        %462 = vmatpush2.msra.mxu0 0.0
        %463 = vmatprep.subr.mxu0 0.0
        %464 = vmatpush2.msra.mxu0 0.0
        %465 = vmatprep.subr.mxu0 0.0
        %466 = vmatpush2.msra.mxu0 0.0
        %467 = vmatprep.subr.mxu0 0.0
        %468 = vmatpush2.msra.mxu0 0.0
        %469 = vmatprep.subr.mxu0 0.0
        %470 = vmatpush2.msra.mxu0 0.0
        %471 = vmatprep.subr.mxu0 0.0
        %472 = vmatpush2.msra.mxu0 0.0
        %473 = vmatprep.subr.mxu0 0.0
        %474 = vmatpush2.msra.mxu0 0.0
        %475 = vmatprep.subr.mxu0 0.0
        %476 = vmatpush2.msra.mxu0 0.0
        %477 = vmatprep.mubr.f32.mxu0 0.0
        %478 = vmatmul.mubr.f32.gmra.mxu0 %v407
        %v479 = vpop.f32.mrf.mxu0
        %v480 = vadd.f32 0.0, %v479
        %v481 = vpop.f32.mrf.mxu0
        %482 = vdwg.mxu0
        %v484 = vrot.slane %v480, 1
        %v486 = vadd.f32 %v480, %v484
        %v487 = vxor.u32 %v486, 2147483648
        %v488 = vmul.f32 %v487, 1.442695
        %v489 = vpow.pop %v488
        %v490 = vadd.f32 %v489, 1.0
        %v491 = vrcp.pop %v490
        %v492 = vmul.f32 1.0, %v491
        %v493 = vlaneseq
        %v494 = vshrl.u32 %v493, 7
        %v495 = vsub.s32 0, %v494
        %v496 = vrot.slane %v492, %v495
        %498 = vbcast.lane.b32.xlu0 %v496, 256
        %v499 = vpop.permute.xlu0 %498
        %s501 = sor.u32 256, 8
        %502 = vbcast.lane.b32.xlu0 %v496, %s501
        %v503 = vpop.permute.xlu0 %502
        %s505 = sor.u32 256, 16
        %506 = vbcast.lane.b32.xlu0 %v496, %s505
        %v507 = vpop.permute.xlu0 %506
        %s509 = sor.u32 256, 24
        %510 = vbcast.lane.b32.xlu0 %v496, %s509
        %v511 = vpop.permute.xlu0 %510
        %v512 = vmul.f32 %v230, %v499
        %v513 = vmul.f32 %v231, %v499
        %v514 = vmul.f32 %v232, %v503
        %v515 = vmul.f32 %v233, %v503
        %v516 = vmul.f32 %v234, %v507
        %v517 = vmul.f32 %v235, %v507
        %v518 = vmul.f32 %v236, %v511
        %v519 = vmul.f32 %v237, %v511
        %v520 = vadd.f32 %v512, %v514
        %v521 = vadd.f32 %v520, %v516
        %v522 = vadd.f32 %v521, %v518
        %v523 = vrot.slane %v522, 4
        %v524 = vadd.f32 %v522, %v523
        %v525 = vrot.slane %v524, 2
        %v526 = vadd.f32 %v524, %v525
        %v527 = vrot.slane %v526, 1
        %v528 = vadd.f32 %v526, %v527
        %v529 = vadd.f32 %v513, %v515
        %v530 = vadd.f32 %v529, %v517
        %v531 = vadd.f32 %v530, %v519
        %v532 = vrot.slane %v531, 4
        %v533 = vadd.f32 %v531, %v532
        %v534 = vrot.slane %v533, 2
        %v535 = vadd.f32 %v533, %v534
        %v536 = vrot.slane %v535, 1
        %v537 = vadd.f32 %v535, %v536
        %v538 = vrcp.pop 32.0
        %v539 = vmul.f32 %v528, %v538
        %v540 = vmul.f32 %v537, %v538
        %v541 = vmax.f32 %v512, %v516
        %v542 = vmax.f32 %v514, %v518
        %v543 = vmax.f32 %v541, %v542
        %v544 = vrot.slane %v543, 4
        %v545 = vmax.f32 %v543, %v544
        %v546 = vrot.slane %v545, 2
        %v547 = vmax.f32 %v545, %v546
        %v548 = vrot.slane %v547, 1
        %v549 = vmax.f32 %v547, %v548
        %v550 = vmax.f32 %v513, %v517
        %v551 = vmax.f32 %v515, %v519
        %v552 = vmax.f32 %v550, %v551
        %v553 = vrot.slane %v552, 4
        %v554 = vmax.f32 %v552, %v553
        %v555 = vrot.slane %v554, 2
        %v556 = vmax.f32 %v554, %v555
        %v557 = vrot.slane %v556, 1
        %v558 = vmax.f32 %v556, %v557
        %559 = vst [vmem:[#allocation2] sm:$0xff] 0.0
        %560 = vst [vmem:[#allocation2 + $0x8] sm:$0xff] 0.0
        %561 = vst [vmem:[#allocation2 + $0x10] sm:$0x3f] 0.0
        %562 = vst [vmem:[#allocation3] sm:$0xff] 0.0
        %563 = vst [vmem:[#allocation3 + $0x8] sm:$0xff] 0.0
        %564 = vst [vmem:[#allocation3 + $0x10] sm:$0x3f] 0.0
        %566 = vrot.lane.b32.xlu0 %v539, 3
        %v567 = vpop.permute.xlu0 %566
        %vm569 = vcmask 147480
        %570 = vst.msk [vmem:[#allocation2 + $0x3] sm:$0x1] %vm569, %v567
        %572 = vrot.lane.b32.xlu0 %v549, 3
        %v573 = vpop.permute.xlu0 %572
        %575 = vst.msk [vmem:[#allocation3 + $0x3] sm:$0x1] %vm569, %v573
        %576 = vrot.lane.b32.xlu0 %v539, 115
        %v577 = vpop.permute.xlu0 %576
        %579 = vst.msk [vmem:[#allocation2 + $0x4] sm:$0x1] %vm569, %v577
        %580 = vrot.lane.b32.xlu0 %v549, 115
        %v581 = vpop.permute.xlu0 %580
        %583 = vst.msk [vmem:[#allocation3 + $0x4] sm:$0x1] %vm569, %v581
        %584 = vrot.lane.b32.xlu0 %v539, 99
        %v585 = vpop.permute.xlu0 %584
        %587 = vst.msk [vmem:[#allocation2 + $0x5] sm:$0x1] %vm569, %v585
        %588 = vrot.lane.b32.xlu0 %v549, 99
        %v589 = vpop.permute.xlu0 %588
        %591 = vst.msk [vmem:[#allocation3 + $0x5] sm:$0x1] %vm569, %v589
        %592 = vrot.lane.b32.xlu0 %v539, 83
        %v593 = vpop.permute.xlu0 %592
        %595 = vst.msk [vmem:[#allocation2 + $0x6] sm:$0x1] %vm569, %v593
        %596 = vrot.lane.b32.xlu0 %v549, 83
        %v597 = vpop.permute.xlu0 %596
        %599 = vst.msk [vmem:[#allocation3 + $0x6] sm:$0x1] %vm569, %v597
        %600 = vrot.lane.b32.xlu0 %v539, 67
        %v601 = vpop.permute.xlu0 %600
        %603 = vst.msk [vmem:[#allocation2 + $0x7] sm:$0x1] %vm569, %v601
        %604 = vrot.lane.b32.xlu0 %v549, 67
        %v605 = vpop.permute.xlu0 %604
        %607 = vst.msk [vmem:[#allocation3 + $0x7] sm:$0x1] %vm569, %v605
        %608 = vrot.lane.b32.xlu0 %v539, 51
        %v609 = vpop.permute.xlu0 %608
        %611 = vst.msk [vmem:[#allocation2 + $0x8] sm:$0x1] %vm569, %v609
        %612 = vrot.lane.b32.xlu0 %v549, 51
        %v613 = vpop.permute.xlu0 %612
        %615 = vst.msk [vmem:[#allocation3 + $0x8] sm:$0x1] %vm569, %v613
        %616 = vrot.lane.b32.xlu0 %v539, 35
        %v617 = vpop.permute.xlu0 %616
        %619 = vst.msk [vmem:[#allocation2 + $0x9] sm:$0x1] %vm569, %v617
        %620 = vrot.lane.b32.xlu0 %v549, 35
        %v621 = vpop.permute.xlu0 %620
        %623 = vst.msk [vmem:[#allocation3 + $0x9] sm:$0x1] %vm569, %v621
        %624 = vrot.lane.b32.xlu0 %v539, 19
        %v625 = vpop.permute.xlu0 %624
        %627 = vst.msk [vmem:[#allocation2 + $0xa] sm:$0x1] %vm569, %v625
        %628 = vrot.lane.b32.xlu0 %v549, 19
        %v629 = vpop.permute.xlu0 %628
        %631 = vst.msk [vmem:[#allocation3 + $0xa] sm:$0x1] %vm569, %v629
        %633 = vrot.lane.b32.xlu0 %v540, 3
        %v634 = vpop.permute.xlu0 %633
        %636 = vst.msk [vmem:[#allocation2 + $0xb] sm:$0x1] %vm569, %v634
        %638 = vrot.lane.b32.xlu0 %v558, 3
        %v639 = vpop.permute.xlu0 %638
        %641 = vst.msk [vmem:[#allocation3 + $0xb] sm:$0x1] %vm569, %v639
        %642 = vrot.lane.b32.xlu0 %v540, 115
        %v643 = vpop.permute.xlu0 %642
        %645 = vst.msk [vmem:[#allocation2 + $0xc] sm:$0x1] %vm569, %v643
        %646 = vrot.lane.b32.xlu0 %v558, 115
        %v647 = vpop.permute.xlu0 %646
        %649 = vst.msk [vmem:[#allocation3 + $0xc] sm:$0x1] %vm569, %v647
        %650 = vrot.lane.b32.xlu0 %v540, 99
        %v651 = vpop.permute.xlu0 %650
        %653 = vst.msk [vmem:[#allocation2 + $0xd] sm:$0x1] %vm569, %v651
        %654 = vrot.lane.b32.xlu0 %v558, 99
        %v655 = vpop.permute.xlu0 %654
        %657 = vst.msk [vmem:[#allocation3 + $0xd] sm:$0x1] %vm569, %v655
        %658 = vrot.lane.b32.xlu0 %v540, 83
        %v659 = vpop.permute.xlu0 %658
        %661 = vst.msk [vmem:[#allocation2 + $0xe] sm:$0x1] %vm569, %v659
        %662 = vrot.lane.b32.xlu0 %v558, 83
        %v663 = vpop.permute.xlu0 %662
        %665 = vst.msk [vmem:[#allocation3 + $0xe] sm:$0x1] %vm569, %v663
        %666 = vrot.lane.b32.xlu0 %v540, 67
        %v667 = vpop.permute.xlu0 %666
        %669 = vst.msk [vmem:[#allocation2 + $0xf] sm:$0x1] %vm569, %v667
        %670 = vrot.lane.b32.xlu0 %v558, 67
        %v671 = vpop.permute.xlu0 %670
        %673 = vst.msk [vmem:[#allocation3 + $0xf] sm:$0x1] %vm569, %v671
        %674 = vrot.lane.b32.xlu0 %v540, 51
        %v675 = vpop.permute.xlu0 %674
        %677 = vst.msk [vmem:[#allocation2 + $0x10] sm:$0x1] %vm569, %v675
        %678 = vrot.lane.b32.xlu0 %v558, 51
        %v679 = vpop.permute.xlu0 %678
        %681 = vst.msk [vmem:[#allocation3 + $0x10] sm:$0x1] %vm569, %v679
        %682 = vrot.lane.b32.xlu0 %v540, 35
        %v683 = vpop.permute.xlu0 %682
        %685 = vst.msk [vmem:[#allocation2 + $0x11] sm:$0x1] %vm569, %v683
        %686 = vrot.lane.b32.xlu0 %v558, 35
        %v687 = vpop.permute.xlu0 %686
        %689 = vst.msk [vmem:[#allocation3 + $0x11] sm:$0x1] %vm569, %v687
        %690 = vrot.lane.b32.xlu0 %v540, 19
        %v691 = vpop.permute.xlu0 %690
        %693 = vst.msk [vmem:[#allocation2 + $0x12] sm:$0x1] %vm569, %v691
        %694 = vrot.lane.b32.xlu0 %v558, 19
        %v695 = vpop.permute.xlu0 %694
        %697 = vst.msk [vmem:[#allocation3 + $0x12] sm:$0x1] %vm569, %v695
        %v698 = vld [vmem:[#allocation2] sm:$0xff]
        %v699 = vld [vmem:[#allocation2 + $0x8] sm:$0xff]
        %v700 = vld [vmem:[#allocation2 + $0x10] sm:$0x3f]
        %v701 = vld [vmem:[#allocation3] sm:$0xff]
        %v702 = vld [vmem:[#allocation3 + $0x8] sm:$0xff]
        %v703 = vld [vmem:[#allocation3 + $0x10] sm:$0x3f]
        %s704 = sld [smem:[#allocation9]]
        %s705 = sld [smem:[#allocation9 + $0x1]]
        %s706 = sld [smem:[#allocation9 + $0x2]]
        %s707 = sld [smem:[#allocation9 + $0x3]]
        %s708 = sld [smem:[#allocation9 + $0x4]]
        %s709 = sld [smem:[#allocation9 + $0x5]]
        %s710 = sld [smem:[#allocation9 + $0x6]]
        %s711 = sld [smem:[#allocation9 + $0x7]]
        %s712 = sld [smem:[#allocation9 + $0x8]]
        %s713 = sld [smem:[#allocation9 + $0x9]]
        %s714 = sld [smem:[#allocation9 + $0xa]]
        %s715 = sld [smem:[#allocation9 + $0xb]]
        %s716 = sld [smem:[#allocation9 + $0xc]]
        %s717 = sld [smem:[#allocation9 + $0xd]]
        %s718 = sld [smem:[#allocation9 + $0xe]]
        %s719 = sld [smem:[#allocation9 + $0xf]]
        %s720 = sld [smem:[#allocation9 + $0x10]]
        %s721 = sld [smem:[#allocation9 + $0x11]]
        %s722 = sld [smem:[#allocation9 + $0x12]]
        %s723 = sld [smem:[#allocation9 + $0x13]]
        %s724 = sld [smem:[#allocation9 + $0x14]]
        %s725 = sld [smem:[#allocation9 + $0x15]]
        %s726 = sld [smem:[#allocation9 + $0x16]]
        %s727 = sld [smem:[#allocation9 + $0x17]]
        %s728 = sld [smem:[#allocation9 + $0x18]]
        %s729 = sld [smem:[#allocation9 + $0x19]]
        %s730 = sld [smem:[#allocation9 + $0x1a]]
        %s731 = sld [smem:[#allocation9 + $0x1b]]
        %s732 = sld [smem:[#allocation9 + $0x1c]]
        %s733 = sld [smem:[#allocation9 + $0x1d]]
        %s734 = sld [smem:[#allocation9 + $0x1e]]
        %s735 = sld [smem:[#allocation9 + $0x1f]]
        %s736 = sld [smem:[#allocation9 + $0x20]]
        %s737 = sld [smem:[#allocation9 + $0x21]]
        %s738 = sld [smem:[#allocation9 + $0x22]]
        %s739 = sld [smem:[#allocation9 + $0x23]]
        %s740 = sld [smem:[#allocation9 + $0x24]]
        %s741 = sld [smem:[#allocation9 + $0x25]]
        %s742 = sld [smem:[#allocation9 + $0x26]]
        %s743 = sld [smem:[#allocation9 + $0x27]]
        %s744 = sld [smem:[#allocation9 + $0x28]]
        %s745 = sld [smem:[#allocation9 + $0x29]]
        %s746 = sld [smem:[#allocation9 + $0x2a]]
        %s747 = sld [smem:[#allocation9 + $0x2b]]
        %s748 = sld [smem:[#allocation9 + $0x2c]]
        %s749 = sld [smem:[#allocation9 + $0x2d]]
        %s750 = sld [smem:[#allocation9 + $0x2e]]
        %s751 = sld [smem:[#allocation9 + $0x2f]]
        %s752 = sld [smem:[#allocation9 + $0x30]]
        %s753 = sld [smem:[#allocation9 + $0x31]]
        %s754 = sld [smem:[#allocation9 + $0x32]]
        %s755 = sld [smem:[#allocation9 + $0x33]]
        %s756 = sld [smem:[#allocation9 + $0x34]]
        %s757 = sld [smem:[#allocation9 + $0x35]]
        %s758 = sld [smem:[#allocation9 + $0x36]]
        %s759 = sld [smem:[#allocation9 + $0x37]]
        %s760 = sld [smem:[#allocation9 + $0x38]]
        %s761 = sld [smem:[#allocation9 + $0x39]]
        %s762 = sld [smem:[#allocation9 + $0x3a]]
        %s763 = sld [smem:[#allocation9 + $0x3b]]
        %s764 = sld [smem:[#allocation9 + $0x3c]]
        %s765 = sld [smem:[#allocation9 + $0x3d]]
        %s766 = sld [smem:[#allocation9 + $0x3e]]
        %s767 = sld [smem:[#allocation9 + $0x3f]]
        %s768 = sld [smem:[#allocation9 + $0x40]]
        %s769 = sld [smem:[#allocation9 + $0x41]]
        %s770 = sld [smem:[#allocation9 + $0x42]]
        %s771 = sld [smem:[#allocation9 + $0x43]]
        %s772 = sld [smem:[#allocation9 + $0x44]]
        %s773 = sld [smem:[#allocation9 + $0x45]]
        %s774 = sld [smem:[#allocation9 + $0x46]]
        %s775 = sld [smem:[#allocation9 + $0x47]]
        %s776 = sld [smem:[#allocation9 + $0x48]]
        %s777 = sld [smem:[#allocation9 + $0x49]]
        %s778 = sld [smem:[#allocation9 + $0x4a]]
        %s779 = sld [smem:[#allocation9 + $0x4b]]
        %s780 = sld [smem:[#allocation9 + $0x4c]]
        %s781 = sld [smem:[#allocation9 + $0x4d]]
        %s782 = sld [smem:[#allocation9 + $0x4e]]
        %s783 = sld [smem:[#allocation9 + $0x4f]]
        %s784 = sld [smem:[#allocation9 + $0x50]]
        %s785 = sld [smem:[#allocation9 + $0x51]]
        %s786 = sld [smem:[#allocation9 + $0x52]]
        %s787 = sld [smem:[#allocation9 + $0x53]]
        %s788 = sld [smem:[#allocation9 + $0x54]]
        %s789 = sld [smem:[#allocation9 + $0x55]]
        %s790 = sld [smem:[#allocation9 + $0x56]]
        %s791 = sld [smem:[#allocation9 + $0x57]]
        %s792 = sld [smem:[#allocation9 + $0x58]]
        %s793 = sld [smem:[#allocation9 + $0x59]]
        %s794 = sld [smem:[#allocation9 + $0x5a]]
        %s795 = sld [smem:[#allocation9 + $0x5b]]
        %s796 = sld [smem:[#allocation9 + $0x5c]]
        %s797 = sld [smem:[#allocation9 + $0x5d]]
        %s798 = sld [smem:[#allocation9 + $0x5e]]
        %s799 = sld [smem:[#allocation9 + $0x5f]]
        %s800 = sld [smem:[#allocation9 + $0x60]]
        %s801 = sld [smem:[#allocation9 + $0x61]]
        %v802 = vstv %s704
        %v803 = vmul.f32 %v802, %v698
        %v804 = vmul.f32 %v802, %v699
        %v805 = vadd.f32 %v803, 0.0
        %v806 = vadd.f32 %v804, 0.0
        %v807 = vstv %s753
        %v808 = vmul.f32 %v807, %v701
        %v809 = vmul.f32 %v807, %v702
        %v810 = vadd.f32 %v805, %v808
        %v811 = vadd.f32 %v806, %v809
        %v812 = vstv %s711
        %v813 = vmul.f32 %v812, %v698
        %v814 = vmul.f32 %v812, %v699
        %v815 = vmul.f32 %v812, %v700
        %v816 = vadd.f32 %v813, 0.0
        %v817 = vadd.f32 %v814, 0.0
        %v818 = vadd.f32 %v815, 0.0
        %v819 = vstv %s760
        %v820 = vmul.f32 %v819, %v701
        %v821 = vmul.f32 %v819, %v702
        %v822 = vmul.f32 %v819, %v703
        %v823 = vadd.f32 %v816, %v820
        %v824 = vadd.f32 %v817, %v821
        %v825 = vadd.f32 %v818, %v822
        %v826 = vstv %s718
        %v827 = vmul.f32 %v826, %v698
        %v828 = vmul.f32 %v826, %v699
        %v829 = vmul.f32 %v826, %v700
        %v830 = vadd.f32 %v827, 0.0
        %v831 = vadd.f32 %v828, 0.0
        %v832 = vadd.f32 %v829, 0.0
        %v833 = vstv %s767
        %v834 = vmul.f32 %v833, %v701
        %v835 = vmul.f32 %v833, %v702
        %v836 = vmul.f32 %v833, %v703
        %v837 = vadd.f32 %v830, %v834
        %v838 = vadd.f32 %v831, %v835
        %v839 = vadd.f32 %v832, %v836
        %v840 = vstv %s725
        %v841 = vmul.f32 %v840, %v698
        %v842 = vmul.f32 %v840, %v699
        %v843 = vmul.f32 %v840, %v700
        %v844 = vadd.f32 %v841, 0.0
        %v845 = vadd.f32 %v842, 0.0
        %v846 = vadd.f32 %v843, 0.0
        %v847 = vstv %s774
        %v848 = vmul.f32 %v847, %v701
        %v849 = vmul.f32 %v847, %v702
        %v850 = vmul.f32 %v847, %v703
        %v851 = vadd.f32 %v844, %v848
        %v852 = vadd.f32 %v845, %v849
        %v853 = vadd.f32 %v846, %v850
        %v854 = vstv %s732
        %v855 = vmul.f32 %v854, %v698
        %v856 = vmul.f32 %v854, %v699
        %v857 = vmul.f32 %v854, %v700
        %vm861 = vcmask 1043456
        %v862 = vrot.slane %v855, 4
        %v863 = vrot.slane %v856, 4
        %v864 = vsel %vm861, %v862, %v863
        %v865 = vrot.slane %v857, 4
        %v866 = vsel %vm861, %v863, %v865
        %v869 = vadd.f32 %v810, %v864
        %v870 = vadd.f32 %v811, %v866
        %v871 = vstv %s781
        %v872 = vmul.f32 %v871, %v701
        %v873 = vmul.f32 %v871, %v702
        %v874 = vmul.f32 %v871, %v703
        %v878 = vrot.slane %v872, 4
        %v879 = vrot.slane %v873, 4
        %v880 = vsel %vm861, %v878, %v879
        %v881 = vrot.slane %v874, 4
        %v882 = vsel %vm861, %v879, %v881
        %v885 = vadd.f32 %v869, %v880
        %v886 = vadd.f32 %v870, %v882
        %v887 = vstv %s739
        %v888 = vmul.f32 %v887, %v698
        %v889 = vmul.f32 %v887, %v699
        %v890 = vmul.f32 %v887, %v700
        %v894 = vrot.slane %v888, 4
        %v895 = vrot.slane %v889, 4
        %v896 = vsel %vm861, %v894, %v895
        %v897 = vrot.slane %v890, 4
        %v898 = vsel %vm861, %v895, %v897
        %v902 = vadd.f32 %v823, %v896
        %v903 = vadd.f32 %v824, %v898
        %v904 = vadd.f32 %v825, %v897
        %v905 = vstv %s788
        %v906 = vmul.f32 %v905, %v701
        %v907 = vmul.f32 %v905, %v702
        %v908 = vmul.f32 %v905, %v703
        %v912 = vrot.slane %v906, 4
        %v913 = vrot.slane %v907, 4
        %v914 = vsel %vm861, %v912, %v913
        %v915 = vrot.slane %v908, 4
        %v916 = vsel %vm861, %v913, %v915
        %v920 = vadd.f32 %v902, %v914
        %v921 = vadd.f32 %v903, %v916
        %v922 = vadd.f32 %v904, %v915
        %v923 = vstv %s746
        %v924 = vmul.f32 %v923, %v698
        %v925 = vmul.f32 %v923, %v699
        %v926 = vmul.f32 %v923, %v700
        %v930 = vrot.slane %v924, 4
        %v931 = vrot.slane %v925, 4
        %v932 = vsel %vm861, %v930, %v931
        %v933 = vrot.slane %v926, 4
        %v934 = vsel %vm861, %v931, %v933
        %v938 = vadd.f32 %v837, %v932
        %v939 = vadd.f32 %v838, %v934
        %v940 = vadd.f32 %v839, %v933
        %v941 = vstv %s795
        %v942 = vmul.f32 %v941, %v701
        %v943 = vmul.f32 %v941, %v702
        %v944 = vmul.f32 %v941, %v703
        %v948 = vrot.slane %v942, 4
        %v949 = vrot.slane %v943, 4
        %v950 = vsel %vm861, %v948, %v949
        %v951 = vrot.slane %v944, 4
        %v952 = vsel %vm861, %v949, %v951
        %v956 = vadd.f32 %v938, %v950
        %v957 = vadd.f32 %v939, %v952
        %v958 = vadd.f32 %v940, %v951
        %v959 = vstv %s705
        %v960 = vmul.f32 %v959, %v698
        %v961 = vmul.f32 %v959, %v699
        %vm964 = vcmask 1042432
        %v965 = vrot.slane %v960, 5
        %v966 = vrot.slane %v961, 5
        %v967 = vsel %vm964, %v965, %v966
        %968 = vrot.lane.b32.xlu0 %v965, 127
        %v969 = vpop.permute.xlu0 %968
        %970 = vrot.lane.b32.xlu0 %v967, 127
        %v971 = vpop.permute.xlu0 %970
        %972 = vrot.lane.b32.xlu0 %v966, 127
        %v973 = vpop.permute.xlu0 %972
        %v977 = vadd.f32 %v851, %v969
        %v978 = vadd.f32 %v852, %v971
        %v979 = vadd.f32 %v853, %v973
        %v980 = vstv %s754
        %v981 = vmul.f32 %v980, %v701
        %v982 = vmul.f32 %v980, %v702
        %v985 = vrot.slane %v981, 5
        %v986 = vrot.slane %v982, 5
        %v987 = vsel %vm964, %v985, %v986
        %988 = vrot.lane.b32.xlu0 %v985, 127
        %v989 = vpop.permute.xlu0 %988
        %990 = vrot.lane.b32.xlu0 %v987, 127
        %v991 = vpop.permute.xlu0 %990
        %992 = vrot.lane.b32.xlu0 %v986, 127
        %v993 = vpop.permute.xlu0 %992
        %v997 = vadd.f32 %v977, %v989
        %v998 = vadd.f32 %v978, %v991
        %v999 = vadd.f32 %v979, %v993
        %v1000 = vstv %s712
        %v1001 = vmul.f32 %v1000, %v698
        %v1002 = vmul.f32 %v1000, %v699
        %v1003 = vmul.f32 %v1000, %v700
        %vm1007 = vcmask 1046528
        %v1008 = vrot.slane %v1001, 1
        %v1009 = vrot.slane %v1002, 1
        %v1010 = vsel %vm1007, %v1008, %v1009
        %v1011 = vrot.slane %v1003, 1
        %v1012 = vsel %vm1007, %v1009, %v1011
        %1013 = vrot.lane.b32.xlu0 %v1010, 127
        %v1014 = vpop.permute.xlu0 %1013
        %1015 = vrot.lane.b32.xlu0 %v1012, 127
        %v1016 = vpop.permute.xlu0 %1015
        %v1019 = vadd.f32 %v885, %v1014
        %v1020 = vadd.f32 %v886, %v1016
        %v1021 = vstv %s761
        %v1022 = vmul.f32 %v1021, %v701
        %v1023 = vmul.f32 %v1021, %v702
        %v1024 = vmul.f32 %v1021, %v703
        %v1028 = vrot.slane %v1022, 1
        %v1029 = vrot.slane %v1023, 1
        %v1030 = vsel %vm1007, %v1028, %v1029
        %v1031 = vrot.slane %v1024, 1
        %v1032 = vsel %vm1007, %v1029, %v1031
        %1033 = vrot.lane.b32.xlu0 %v1030, 127
        %v1034 = vpop.permute.xlu0 %1033
        %1035 = vrot.lane.b32.xlu0 %v1032, 127
        %v1036 = vpop.permute.xlu0 %1035
        %v1039 = vadd.f32 %v1019, %v1034
        %v1040 = vadd.f32 %v1020, %v1036
        %v1041 = vstv %s719
        %v1042 = vmul.f32 %v1041, %v698
        %v1043 = vmul.f32 %v1041, %v699
        %v1044 = vmul.f32 %v1041, %v700
        %v1048 = vrot.slane %v1042, 1
        %v1049 = vrot.slane %v1043, 1
        %v1050 = vsel %vm1007, %v1048, %v1049
        %v1051 = vrot.slane %v1044, 1
        %v1052 = vsel %vm1007, %v1049, %v1051
        %1053 = vrot.lane.b32.xlu0 %v1050, 127
        %v1054 = vpop.permute.xlu0 %1053
        %1055 = vrot.lane.b32.xlu0 %v1052, 127
        %v1056 = vpop.permute.xlu0 %1055
        %1057 = vrot.lane.b32.xlu0 %v1051, 127
        %v1058 = vpop.permute.xlu0 %1057
        %v1062 = vadd.f32 %v920, %v1054
        %v1063 = vadd.f32 %v921, %v1056
        %v1064 = vadd.f32 %v922, %v1058
        %v1065 = vstv %s768
        %v1066 = vmul.f32 %v1065, %v701
        %v1067 = vmul.f32 %v1065, %v702
        %v1068 = vmul.f32 %v1065, %v703
        %v1072 = vrot.slane %v1066, 1
        %v1073 = vrot.slane %v1067, 1
        %v1074 = vsel %vm1007, %v1072, %v1073
        %v1075 = vrot.slane %v1068, 1
        %v1076 = vsel %vm1007, %v1073, %v1075
        %1077 = vrot.lane.b32.xlu0 %v1074, 127
        %v1078 = vpop.permute.xlu0 %1077
        %1079 = vrot.lane.b32.xlu0 %v1076, 127
        %v1080 = vpop.permute.xlu0 %1079
        %1081 = vrot.lane.b32.xlu0 %v1075, 127
        %v1082 = vpop.permute.xlu0 %1081
        %v1086 = vadd.f32 %v1062, %v1078
        %v1087 = vadd.f32 %v1063, %v1080
        %v1088 = vadd.f32 %v1064, %v1082
        %v1089 = vstv %s726
        %v1090 = vmul.f32 %v1089, %v698
        %v1091 = vmul.f32 %v1089, %v699
        %v1092 = vmul.f32 %v1089, %v700
        %v1096 = vrot.slane %v1090, 1
        %v1097 = vrot.slane %v1091, 1
        %v1098 = vsel %vm1007, %v1096, %v1097
        %v1099 = vrot.slane %v1092, 1
        %v1100 = vsel %vm1007, %v1097, %v1099
        %1101 = vrot.lane.b32.xlu0 %v1098, 127
        %v1102 = vpop.permute.xlu0 %1101
        %1103 = vrot.lane.b32.xlu0 %v1100, 127
        %v1104 = vpop.permute.xlu0 %1103
        %1105 = vrot.lane.b32.xlu0 %v1099, 127
        %v1106 = vpop.permute.xlu0 %1105
        %v1110 = vadd.f32 %v956, %v1102
        %v1111 = vadd.f32 %v957, %v1104
        %v1112 = vadd.f32 %v958, %v1106
        %v1113 = vstv %s775
        %v1114 = vmul.f32 %v1113, %v701
        %v1115 = vmul.f32 %v1113, %v702
        %v1116 = vmul.f32 %v1113, %v703
        %v1120 = vrot.slane %v1114, 1
        %v1121 = vrot.slane %v1115, 1
        %v1122 = vsel %vm1007, %v1120, %v1121
        %v1123 = vrot.slane %v1116, 1
        %v1124 = vsel %vm1007, %v1121, %v1123
        %1125 = vrot.lane.b32.xlu0 %v1122, 127
        %v1126 = vpop.permute.xlu0 %1125
        %1127 = vrot.lane.b32.xlu0 %v1124, 127
        %v1128 = vpop.permute.xlu0 %1127
        %1129 = vrot.lane.b32.xlu0 %v1123, 127
        %v1130 = vpop.permute.xlu0 %1129
        %v1134 = vadd.f32 %v1110, %v1126
        %v1135 = vadd.f32 %v1111, %v1128
        %v1136 = vadd.f32 %v1112, %v1130
        %v1137 = vstv %s733
        %v1138 = vmul.f32 %v1137, %v698
        %v1139 = vmul.f32 %v1137, %v699
        %v1140 = vmul.f32 %v1137, %v700
        %v1144 = vrot.slane %v1138, 1
        %v1145 = vrot.slane %v1139, 1
        %v1146 = vsel %vm1007, %v1144, %v1145
        %v1147 = vrot.slane %v1140, 1
        %v1148 = vsel %vm1007, %v1145, %v1147
        %1149 = vrot.lane.b32.xlu0 %v1146, 127
        %v1150 = vpop.permute.xlu0 %1149
        %1151 = vrot.lane.b32.xlu0 %v1148, 127
        %v1152 = vpop.permute.xlu0 %1151
        %1153 = vrot.lane.b32.xlu0 %v1147, 127
        %v1154 = vpop.permute.xlu0 %1153
        %v1158 = vadd.f32 %v997, %v1150
        %v1159 = vadd.f32 %v998, %v1152
        %v1160 = vadd.f32 %v999, %v1154
        %v1161 = vstv %s782
        %v1162 = vmul.f32 %v1161, %v701
        %v1163 = vmul.f32 %v1161, %v702
        %v1164 = vmul.f32 %v1161, %v703
        %v1168 = vrot.slane %v1162, 1
        %v1169 = vrot.slane %v1163, 1
        %v1170 = vsel %vm1007, %v1168, %v1169
        %v1171 = vrot.slane %v1164, 1
        %v1172 = vsel %vm1007, %v1169, %v1171
        %1173 = vrot.lane.b32.xlu0 %v1170, 127
        %v1174 = vpop.permute.xlu0 %1173
        %1175 = vrot.lane.b32.xlu0 %v1172, 127
        %v1176 = vpop.permute.xlu0 %1175
        %1177 = vrot.lane.b32.xlu0 %v1171, 127
        %v1178 = vpop.permute.xlu0 %1177
        %v1182 = vadd.f32 %v1158, %v1174
        %v1183 = vadd.f32 %v1159, %v1176
        %v1184 = vadd.f32 %v1160, %v1178
        %v1185 = vstv %s740
        %v1186 = vmul.f32 %v1185, %v698
        %v1187 = vmul.f32 %v1185, %v699
        %v1188 = vmul.f32 %v1185, %v700
        %v1192 = vrot.slane %v1186, 5
        %v1193 = vrot.slane %v1187, 5
        %v1194 = vsel %vm964, %v1192, %v1193
        %v1195 = vrot.slane %v1188, 5
        %v1196 = vsel %vm964, %v1193, %v1195
        %1197 = vrot.lane.b32.xlu0 %v1194, 127
        %v1198 = vpop.permute.xlu0 %1197
        %1199 = vrot.lane.b32.xlu0 %v1196, 127
        %v1200 = vpop.permute.xlu0 %1199
        %v1203 = vadd.f32 %v1039, %v1198
        %v1204 = vadd.f32 %v1040, %v1200
        %v1205 = vstv %s789
        %v1206 = vmul.f32 %v1205, %v701
        %v1207 = vmul.f32 %v1205, %v702
        %v1208 = vmul.f32 %v1205, %v703
        %v1212 = vrot.slane %v1206, 5
        %v1213 = vrot.slane %v1207, 5
        %v1214 = vsel %vm964, %v1212, %v1213
        %v1215 = vrot.slane %v1208, 5
        %v1216 = vsel %vm964, %v1213, %v1215
        %1217 = vrot.lane.b32.xlu0 %v1214, 127
        %v1218 = vpop.permute.xlu0 %1217
        %1219 = vrot.lane.b32.xlu0 %v1216, 127
        %v1220 = vpop.permute.xlu0 %1219
        %v1223 = vadd.f32 %v1203, %v1218
        %v1224 = vadd.f32 %v1204, %v1220
        %v1225 = vstv %s747
        %v1226 = vmul.f32 %v1225, %v698
        %v1227 = vmul.f32 %v1225, %v699
        %v1228 = vmul.f32 %v1225, %v700
        %v1232 = vrot.slane %v1226, 5
        %v1233 = vrot.slane %v1227, 5
        %v1234 = vsel %vm964, %v1232, %v1233
        %v1235 = vrot.slane %v1228, 5
        %v1236 = vsel %vm964, %v1233, %v1235
        %1237 = vrot.lane.b32.xlu0 %v1234, 127
        %v1238 = vpop.permute.xlu0 %1237
        %1239 = vrot.lane.b32.xlu0 %v1236, 127
        %v1240 = vpop.permute.xlu0 %1239
        %1241 = vrot.lane.b32.xlu0 %v1235, 127
        %v1242 = vpop.permute.xlu0 %1241
        %v1246 = vadd.f32 %v1086, %v1238
        %v1247 = vadd.f32 %v1087, %v1240
        %v1248 = vadd.f32 %v1088, %v1242
        %v1249 = vstv %s796
        %v1250 = vmul.f32 %v1249, %v701
        %v1251 = vmul.f32 %v1249, %v702
        %v1252 = vmul.f32 %v1249, %v703
        %v1256 = vrot.slane %v1250, 5
        %v1257 = vrot.slane %v1251, 5
        %v1258 = vsel %vm964, %v1256, %v1257
        %v1259 = vrot.slane %v1252, 5
        %v1260 = vsel %vm964, %v1257, %v1259
        %1261 = vrot.lane.b32.xlu0 %v1258, 127
        %v1262 = vpop.permute.xlu0 %1261
        %1263 = vrot.lane.b32.xlu0 %v1260, 127
        %v1264 = vpop.permute.xlu0 %1263
        %1265 = vrot.lane.b32.xlu0 %v1259, 127
        %v1266 = vpop.permute.xlu0 %1265
        %v1270 = vadd.f32 %v1246, %v1262
        %v1271 = vadd.f32 %v1247, %v1264
        %v1272 = vadd.f32 %v1248, %v1266
        %v1273 = vstv %s706
        %v1274 = vmul.f32 %v1273, %v698
        %v1275 = vmul.f32 %v1273, %v699
        %v1278 = vrot.slane %v1274, 6
        %v1279 = vrot.slane %v1275, 6
        %v1280 = vsel %vm409, %v1278, %v1279
        %1281 = vrot.lane.b32.xlu0 %v1278, 126
        %v1282 = vpop.permute.xlu0 %1281
        %1283 = vrot.lane.b32.xlu0 %v1280, 126
        %v1284 = vpop.permute.xlu0 %1283
        %1285 = vrot.lane.b32.xlu0 %v1279, 126
        %v1286 = vpop.permute.xlu0 %1285
        %v1290 = vadd.f32 %v1134, %v1282
        %v1291 = vadd.f32 %v1135, %v1284
        %v1292 = vadd.f32 %v1136, %v1286
        %v1293 = vstv %s755
        %v1294 = vmul.f32 %v1293, %v701
        %v1295 = vmul.f32 %v1293, %v702
        %v1298 = vrot.slane %v1294, 6
        %v1299 = vrot.slane %v1295, 6
        %v1300 = vsel %vm409, %v1298, %v1299
        %1301 = vrot.lane.b32.xlu0 %v1298, 126
        %v1302 = vpop.permute.xlu0 %1301
        %1303 = vrot.lane.b32.xlu0 %v1300, 126
        %v1304 = vpop.permute.xlu0 %1303
        %1305 = vrot.lane.b32.xlu0 %v1299, 126
        %v1306 = vpop.permute.xlu0 %1305
        %v1310 = vadd.f32 %v1290, %v1302
        %v1311 = vadd.f32 %v1291, %v1304
        %v1312 = vadd.f32 %v1292, %v1306
        %v1313 = vstv %s713
        %v1314 = vmul.f32 %v1313, %v698
        %v1315 = vmul.f32 %v1313, %v699
        %v1316 = vmul.f32 %v1313, %v700
        %v1320 = vrot.slane %v1314, 6
        %v1321 = vrot.slane %v1315, 6
        %v1322 = vsel %vm409, %v1320, %v1321
        %v1323 = vrot.slane %v1316, 6
        %v1324 = vsel %vm409, %v1321, %v1323
        %1325 = vrot.lane.b32.xlu0 %v1320, 126
        %v1326 = vpop.permute.xlu0 %1325
        %1327 = vrot.lane.b32.xlu0 %v1322, 126
        %v1328 = vpop.permute.xlu0 %1327
        %1329 = vrot.lane.b32.xlu0 %v1324, 126
        %v1330 = vpop.permute.xlu0 %1329
        %v1334 = vadd.f32 %v1182, %v1326
        %v1335 = vadd.f32 %v1183, %v1328
        %v1336 = vadd.f32 %v1184, %v1330
        %v1337 = vstv %s762
        %v1338 = vmul.f32 %v1337, %v701
        %v1339 = vmul.f32 %v1337, %v702
        %v1340 = vmul.f32 %v1337, %v703
        %v1344 = vrot.slane %v1338, 6
        %v1345 = vrot.slane %v1339, 6
        %v1346 = vsel %vm409, %v1344, %v1345
        %v1347 = vrot.slane %v1340, 6
        %v1348 = vsel %vm409, %v1345, %v1347
        %1349 = vrot.lane.b32.xlu0 %v1344, 126
        %v1350 = vpop.permute.xlu0 %1349
        %1351 = vrot.lane.b32.xlu0 %v1346, 126
        %v1352 = vpop.permute.xlu0 %1351
        %1353 = vrot.lane.b32.xlu0 %v1348, 126
        %v1354 = vpop.permute.xlu0 %1353
        %v1358 = vadd.f32 %v1334, %v1350
        %v1359 = vadd.f32 %v1335, %v1352
        %v1360 = vadd.f32 %v1336, %v1354
        %v1361 = vstv %s720
        %v1362 = vmul.f32 %v1361, %v698
        %v1363 = vmul.f32 %v1361, %v699
        %v1364 = vmul.f32 %v1361, %v700
        %vm1368 = vcmask 1045504
        %v1369 = vrot.slane %v1362, 2
        %v1370 = vrot.slane %v1363, 2
        %v1371 = vsel %vm1368, %v1369, %v1370
        %v1372 = vrot.slane %v1364, 2
        %v1373 = vsel %vm1368, %v1370, %v1372
        %1374 = vrot.lane.b32.xlu0 %v1371, 126
        %v1375 = vpop.permute.xlu0 %1374
        %1376 = vrot.lane.b32.xlu0 %v1373, 126
        %v1377 = vpop.permute.xlu0 %1376
        %v1380 = vadd.f32 %v1223, %v1375
        %v1381 = vadd.f32 %v1224, %v1377
        %v1382 = vstv %s769
        %v1383 = vmul.f32 %v1382, %v701
        %v1384 = vmul.f32 %v1382, %v702
        %v1385 = vmul.f32 %v1382, %v703
        %v1389 = vrot.slane %v1383, 2
        %v1390 = vrot.slane %v1384, 2
        %v1391 = vsel %vm1368, %v1389, %v1390
        %v1392 = vrot.slane %v1385, 2
        %v1393 = vsel %vm1368, %v1390, %v1392
        %1394 = vrot.lane.b32.xlu0 %v1391, 126
        %v1395 = vpop.permute.xlu0 %1394
        %1396 = vrot.lane.b32.xlu0 %v1393, 126
        %v1397 = vpop.permute.xlu0 %1396
        %v1400 = vadd.f32 %v1380, %v1395
        %v1401 = vadd.f32 %v1381, %v1397
        %v1402 = vstv %s727
        %v1403 = vmul.f32 %v1402, %v698
        %v1404 = vmul.f32 %v1402, %v699
        %v1405 = vmul.f32 %v1402, %v700
        %v1409 = vrot.slane %v1403, 2
        %v1410 = vrot.slane %v1404, 2
        %v1411 = vsel %vm1368, %v1409, %v1410
        %v1412 = vrot.slane %v1405, 2
        %v1413 = vsel %vm1368, %v1410, %v1412
        %1414 = vrot.lane.b32.xlu0 %v1411, 126
        %v1415 = vpop.permute.xlu0 %1414
        %1416 = vrot.lane.b32.xlu0 %v1413, 126
        %v1417 = vpop.permute.xlu0 %1416
        %1418 = vrot.lane.b32.xlu0 %v1412, 126
        %v1419 = vpop.permute.xlu0 %1418
        %v1423 = vadd.f32 %v1270, %v1415
        %v1424 = vadd.f32 %v1271, %v1417
        %v1425 = vadd.f32 %v1272, %v1419
        %v1426 = vstv %s776
        %v1427 = vmul.f32 %v1426, %v701
        %v1428 = vmul.f32 %v1426, %v702
        %v1429 = vmul.f32 %v1426, %v703
        %v1433 = vrot.slane %v1427, 2
        %v1434 = vrot.slane %v1428, 2
        %v1435 = vsel %vm1368, %v1433, %v1434
        %v1436 = vrot.slane %v1429, 2
        %v1437 = vsel %vm1368, %v1434, %v1436
        %1438 = vrot.lane.b32.xlu0 %v1435, 126
        %v1439 = vpop.permute.xlu0 %1438
        %1440 = vrot.lane.b32.xlu0 %v1437, 126
        %v1441 = vpop.permute.xlu0 %1440
        %1442 = vrot.lane.b32.xlu0 %v1436, 126
        %v1443 = vpop.permute.xlu0 %1442
        %v1447 = vadd.f32 %v1423, %v1439
        %v1448 = vadd.f32 %v1424, %v1441
        %v1449 = vadd.f32 %v1425, %v1443
        %v1450 = vstv %s734
        %v1451 = vmul.f32 %v1450, %v698
        %v1452 = vmul.f32 %v1450, %v699
        %v1453 = vmul.f32 %v1450, %v700
        %v1457 = vrot.slane %v1451, 2
        %v1458 = vrot.slane %v1452, 2
        %v1459 = vsel %vm1368, %v1457, %v1458
        %v1460 = vrot.slane %v1453, 2
        %v1461 = vsel %vm1368, %v1458, %v1460
        %1462 = vrot.lane.b32.xlu0 %v1459, 126
        %v1463 = vpop.permute.xlu0 %1462
        %1464 = vrot.lane.b32.xlu0 %v1461, 126
        %v1465 = vpop.permute.xlu0 %1464
        %1466 = vrot.lane.b32.xlu0 %v1460, 126
        %v1467 = vpop.permute.xlu0 %1466
        %v1471 = vadd.f32 %v1310, %v1463
        %v1472 = vadd.f32 %v1311, %v1465
        %v1473 = vadd.f32 %v1312, %v1467
        %v1474 = vstv %s783
        %v1475 = vmul.f32 %v1474, %v701
        %v1476 = vmul.f32 %v1474, %v702
        %v1477 = vmul.f32 %v1474, %v703
        %v1481 = vrot.slane %v1475, 2
        %v1482 = vrot.slane %v1476, 2
        %v1483 = vsel %vm1368, %v1481, %v1482
        %v1484 = vrot.slane %v1477, 2
        %v1485 = vsel %vm1368, %v1482, %v1484
        %1486 = vrot.lane.b32.xlu0 %v1483, 126
        %v1487 = vpop.permute.xlu0 %1486
        %1488 = vrot.lane.b32.xlu0 %v1485, 126
        %v1489 = vpop.permute.xlu0 %1488
        %1490 = vrot.lane.b32.xlu0 %v1484, 126
        %v1491 = vpop.permute.xlu0 %1490
        %v1495 = vadd.f32 %v1471, %v1487
        %v1496 = vadd.f32 %v1472, %v1489
        %v1497 = vadd.f32 %v1473, %v1491
        %v1498 = vstv %s741
        %v1499 = vmul.f32 %v1498, %v698
        %v1500 = vmul.f32 %v1498, %v699
        %v1501 = vmul.f32 %v1498, %v700
        %v1505 = vrot.slane %v1499, 2
        %v1506 = vrot.slane %v1500, 2
        %v1507 = vsel %vm1368, %v1505, %v1506
        %v1508 = vrot.slane %v1501, 2
        %v1509 = vsel %vm1368, %v1506, %v1508
        %1510 = vrot.lane.b32.xlu0 %v1507, 126
        %v1511 = vpop.permute.xlu0 %1510
        %1512 = vrot.lane.b32.xlu0 %v1509, 126
        %v1513 = vpop.permute.xlu0 %1512
        %1514 = vrot.lane.b32.xlu0 %v1508, 126
        %v1515 = vpop.permute.xlu0 %1514
        %v1519 = vadd.f32 %v1358, %v1511
        %v1520 = vadd.f32 %v1359, %v1513
        %v1521 = vadd.f32 %v1360, %v1515
        %v1522 = vstv %s790
        %v1523 = vmul.f32 %v1522, %v701
        %v1524 = vmul.f32 %v1522, %v702
        %v1525 = vmul.f32 %v1522, %v703
        %v1529 = vrot.slane %v1523, 2
        %v1530 = vrot.slane %v1524, 2
        %v1531 = vsel %vm1368, %v1529, %v1530
        %v1532 = vrot.slane %v1525, 2
        %v1533 = vsel %vm1368, %v1530, %v1532
        %1534 = vrot.lane.b32.xlu0 %v1531, 126
        %v1535 = vpop.permute.xlu0 %1534
        %1536 = vrot.lane.b32.xlu0 %v1533, 126
        %v1537 = vpop.permute.xlu0 %1536
        %1538 = vrot.lane.b32.xlu0 %v1532, 126
        %v1539 = vpop.permute.xlu0 %1538
        %v1543 = vadd.f32 %v1519, %v1535
        %v1544 = vadd.f32 %v1520, %v1537
        %v1545 = vadd.f32 %v1521, %v1539
        %v1546 = vstv %s748
        %v1547 = vmul.f32 %v1546, %v698
        %v1548 = vmul.f32 %v1546, %v699
        %v1549 = vmul.f32 %v1546, %v700
        %v1553 = vrot.slane %v1547, 6
        %v1554 = vrot.slane %v1548, 6
        %v1555 = vsel %vm409, %v1553, %v1554
        %v1556 = vrot.slane %v1549, 6
        %v1557 = vsel %vm409, %v1554, %v1556
        %1558 = vrot.lane.b32.xlu0 %v1555, 126
        %v1559 = vpop.permute.xlu0 %1558
        %1560 = vrot.lane.b32.xlu0 %v1557, 126
        %v1561 = vpop.permute.xlu0 %1560
        %v1564 = vadd.f32 %v1400, %v1559
        %v1565 = vadd.f32 %v1401, %v1561
        %v1566 = vstv %s797
        %v1567 = vmul.f32 %v1566, %v701
        %v1568 = vmul.f32 %v1566, %v702
        %v1569 = vmul.f32 %v1566, %v703
        %v1573 = vrot.slane %v1567, 6
        %v1574 = vrot.slane %v1568, 6
        %v1575 = vsel %vm409, %v1573, %v1574
        %v1576 = vrot.slane %v1569, 6
        %v1577 = vsel %vm409, %v1574, %v1576
        %1578 = vrot.lane.b32.xlu0 %v1575, 126
        %v1579 = vpop.permute.xlu0 %1578
        %1580 = vrot.lane.b32.xlu0 %v1577, 126
        %v1581 = vpop.permute.xlu0 %1580
        %v1584 = vadd.f32 %v1564, %v1579
        %v1585 = vadd.f32 %v1565, %v1581
        %v1586 = vstv %s707
        %v1587 = vmul.f32 %v1586, %v698
        %v1588 = vmul.f32 %v1586, %v699
        %v1591 = vrot.slane %v1587, 7
        %v1592 = vrot.slane %v1588, 7
        %v1593 = vsel %vm323, %v1591, %v1592
        %1594 = vrot.lane.b32.xlu0 %v1591, 125
        %v1595 = vpop.permute.xlu0 %1594
        %1596 = vrot.lane.b32.xlu0 %v1593, 125
        %v1597 = vpop.permute.xlu0 %1596
        %1598 = vrot.lane.b32.xlu0 %v1592, 125
        %v1599 = vpop.permute.xlu0 %1598
        %v1603 = vadd.f32 %v1447, %v1595
        %v1604 = vadd.f32 %v1448, %v1597
        %v1605 = vadd.f32 %v1449, %v1599
        %v1606 = vstv %s756
        %v1607 = vmul.f32 %v1606, %v701
        %v1608 = vmul.f32 %v1606, %v702
        %v1611 = vrot.slane %v1607, 7
        %v1612 = vrot.slane %v1608, 7
        %v1613 = vsel %vm323, %v1611, %v1612
        %1614 = vrot.lane.b32.xlu0 %v1611, 125
        %v1615 = vpop.permute.xlu0 %1614
        %1616 = vrot.lane.b32.xlu0 %v1613, 125
        %v1617 = vpop.permute.xlu0 %1616
        %1618 = vrot.lane.b32.xlu0 %v1612, 125
        %v1619 = vpop.permute.xlu0 %1618
        %v1623 = vadd.f32 %v1603, %v1615
        %v1624 = vadd.f32 %v1604, %v1617
        %v1625 = vadd.f32 %v1605, %v1619
        %v1626 = vstv %s714
        %v1627 = vmul.f32 %v1626, %v698
        %v1628 = vmul.f32 %v1626, %v699
        %v1629 = vmul.f32 %v1626, %v700
        %v1633 = vrot.slane %v1627, 7
        %v1634 = vrot.slane %v1628, 7
        %v1635 = vsel %vm323, %v1633, %v1634
        %v1636 = vrot.slane %v1629, 7
        %v1637 = vsel %vm323, %v1634, %v1636
        %1638 = vrot.lane.b32.xlu0 %v1633, 125
        %v1639 = vpop.permute.xlu0 %1638
        %1640 = vrot.lane.b32.xlu0 %v1635, 125
        %v1641 = vpop.permute.xlu0 %1640
        %1642 = vrot.lane.b32.xlu0 %v1637, 125
        %v1643 = vpop.permute.xlu0 %1642
        %v1647 = vadd.f32 %v1495, %v1639
        %v1648 = vadd.f32 %v1496, %v1641
        %v1649 = vadd.f32 %v1497, %v1643
        %v1650 = vstv %s763
        %v1651 = vmul.f32 %v1650, %v701
        %v1652 = vmul.f32 %v1650, %v702
        %v1653 = vmul.f32 %v1650, %v703
        %v1657 = vrot.slane %v1651, 7
        %v1658 = vrot.slane %v1652, 7
        %v1659 = vsel %vm323, %v1657, %v1658
        %v1660 = vrot.slane %v1653, 7
        %v1661 = vsel %vm323, %v1658, %v1660
        %1662 = vrot.lane.b32.xlu0 %v1657, 125
        %v1663 = vpop.permute.xlu0 %1662
        %1664 = vrot.lane.b32.xlu0 %v1659, 125
        %v1665 = vpop.permute.xlu0 %1664
        %1666 = vrot.lane.b32.xlu0 %v1661, 125
        %v1667 = vpop.permute.xlu0 %1666
        %v1671 = vadd.f32 %v1647, %v1663
        %v1672 = vadd.f32 %v1648, %v1665
        %v1673 = vadd.f32 %v1649, %v1667
        %v1674 = vstv %s721
        %v1675 = vmul.f32 %v1674, %v698
        %v1676 = vmul.f32 %v1674, %v699
        %v1677 = vmul.f32 %v1674, %v700
        %v1681 = vrot.slane %v1675, 7
        %v1682 = vrot.slane %v1676, 7
        %v1683 = vsel %vm323, %v1681, %v1682
        %v1684 = vrot.slane %v1677, 7
        %v1685 = vsel %vm323, %v1682, %v1684
        %1686 = vrot.lane.b32.xlu0 %v1681, 125
        %v1687 = vpop.permute.xlu0 %1686
        %1688 = vrot.lane.b32.xlu0 %v1683, 125
        %v1689 = vpop.permute.xlu0 %1688
        %1690 = vrot.lane.b32.xlu0 %v1685, 125
        %v1691 = vpop.permute.xlu0 %1690
        %v1695 = vadd.f32 %v1543, %v1687
        %v1696 = vadd.f32 %v1544, %v1689
        %v1697 = vadd.f32 %v1545, %v1691
        %v1698 = vstv %s770
        %v1699 = vmul.f32 %v1698, %v701
        %v1700 = vmul.f32 %v1698, %v702
        %v1701 = vmul.f32 %v1698, %v703
        %v1705 = vrot.slane %v1699, 7
        %v1706 = vrot.slane %v1700, 7
        %v1707 = vsel %vm323, %v1705, %v1706
        %v1708 = vrot.slane %v1701, 7
        %v1709 = vsel %vm323, %v1706, %v1708
        %1710 = vrot.lane.b32.xlu0 %v1705, 125
        %v1711 = vpop.permute.xlu0 %1710
        %1712 = vrot.lane.b32.xlu0 %v1707, 125
        %v1713 = vpop.permute.xlu0 %1712
        %1714 = vrot.lane.b32.xlu0 %v1709, 125
        %v1715 = vpop.permute.xlu0 %1714
        %v1719 = vadd.f32 %v1695, %v1711
        %v1720 = vadd.f32 %v1696, %v1713
        %v1721 = vadd.f32 %v1697, %v1715
        %v1722 = vstv %s728
        %v1723 = vmul.f32 %v1722, %v698
        %v1724 = vmul.f32 %v1722, %v699
        %v1725 = vmul.f32 %v1722, %v700
        %vm1729 = vcmask 1044480
        %v1730 = vrot.slane %v1723, 3
        %v1731 = vrot.slane %v1724, 3
        %v1732 = vsel %vm1729, %v1730, %v1731
        %v1733 = vrot.slane %v1725, 3
        %v1734 = vsel %vm1729, %v1731, %v1733
        %1735 = vrot.lane.b32.xlu0 %v1732, 125
        %v1736 = vpop.permute.xlu0 %1735
        %1737 = vrot.lane.b32.xlu0 %v1734, 125
        %v1738 = vpop.permute.xlu0 %1737
        %v1741 = vadd.f32 %v1584, %v1736
        %v1742 = vadd.f32 %v1585, %v1738
        %v1743 = vstv %s777
        %v1744 = vmul.f32 %v1743, %v701
        %v1745 = vmul.f32 %v1743, %v702
        %v1746 = vmul.f32 %v1743, %v703
        %v1750 = vrot.slane %v1744, 3
        %v1751 = vrot.slane %v1745, 3
        %v1752 = vsel %vm1729, %v1750, %v1751
        %v1753 = vrot.slane %v1746, 3
        %v1754 = vsel %vm1729, %v1751, %v1753
        %1755 = vrot.lane.b32.xlu0 %v1752, 125
        %v1756 = vpop.permute.xlu0 %1755
        %1757 = vrot.lane.b32.xlu0 %v1754, 125
        %v1758 = vpop.permute.xlu0 %1757
        %v1761 = vadd.f32 %v1741, %v1756
        %v1762 = vadd.f32 %v1742, %v1758
        %v1763 = vstv %s735
        %v1764 = vmul.f32 %v1763, %v698
        %v1765 = vmul.f32 %v1763, %v699
        %v1766 = vmul.f32 %v1763, %v700
        %v1770 = vrot.slane %v1764, 3
        %v1771 = vrot.slane %v1765, 3
        %v1772 = vsel %vm1729, %v1770, %v1771
        %v1773 = vrot.slane %v1766, 3
        %v1774 = vsel %vm1729, %v1771, %v1773
        %1775 = vrot.lane.b32.xlu0 %v1772, 125
        %v1776 = vpop.permute.xlu0 %1775
        %1777 = vrot.lane.b32.xlu0 %v1774, 125
        %v1778 = vpop.permute.xlu0 %1777
        %1779 = vrot.lane.b32.xlu0 %v1773, 125
        %v1780 = vpop.permute.xlu0 %1779
        %v1784 = vadd.f32 %v1623, %v1776
        %v1785 = vadd.f32 %v1624, %v1778
        %v1786 = vadd.f32 %v1625, %v1780
        %v1787 = vstv %s784
        %v1788 = vmul.f32 %v1787, %v701
        %v1789 = vmul.f32 %v1787, %v702
        %v1790 = vmul.f32 %v1787, %v703
        %v1794 = vrot.slane %v1788, 3
        %v1795 = vrot.slane %v1789, 3
        %v1796 = vsel %vm1729, %v1794, %v1795
        %v1797 = vrot.slane %v1790, 3
        %v1798 = vsel %vm1729, %v1795, %v1797
        %1799 = vrot.lane.b32.xlu0 %v1796, 125
        %v1800 = vpop.permute.xlu0 %1799
        %1801 = vrot.lane.b32.xlu0 %v1798, 125
        %v1802 = vpop.permute.xlu0 %1801
        %1803 = vrot.lane.b32.xlu0 %v1797, 125
        %v1804 = vpop.permute.xlu0 %1803
        %v1808 = vadd.f32 %v1784, %v1800
        %v1809 = vadd.f32 %v1785, %v1802
        %v1810 = vadd.f32 %v1786, %v1804
        %v1811 = vstv %s742
        %v1812 = vmul.f32 %v1811, %v698
        %v1813 = vmul.f32 %v1811, %v699
        %v1814 = vmul.f32 %v1811, %v700
        %v1818 = vrot.slane %v1812, 3
        %v1819 = vrot.slane %v1813, 3
        %v1820 = vsel %vm1729, %v1818, %v1819
        %v1821 = vrot.slane %v1814, 3
        %v1822 = vsel %vm1729, %v1819, %v1821
        %1823 = vrot.lane.b32.xlu0 %v1820, 125
        %v1824 = vpop.permute.xlu0 %1823
        %1825 = vrot.lane.b32.xlu0 %v1822, 125
        %v1826 = vpop.permute.xlu0 %1825
        %1827 = vrot.lane.b32.xlu0 %v1821, 125
        %v1828 = vpop.permute.xlu0 %1827
        %v1832 = vadd.f32 %v1671, %v1824
        %v1833 = vadd.f32 %v1672, %v1826
        %v1834 = vadd.f32 %v1673, %v1828
        %v1835 = vstv %s791
        %v1836 = vmul.f32 %v1835, %v701
        %v1837 = vmul.f32 %v1835, %v702
        %v1838 = vmul.f32 %v1835, %v703
        %v1842 = vrot.slane %v1836, 3
        %v1843 = vrot.slane %v1837, 3
        %v1844 = vsel %vm1729, %v1842, %v1843
        %v1845 = vrot.slane %v1838, 3
        %v1846 = vsel %vm1729, %v1843, %v1845
        %1847 = vrot.lane.b32.xlu0 %v1844, 125
        %v1848 = vpop.permute.xlu0 %1847
        %1849 = vrot.lane.b32.xlu0 %v1846, 125
        %v1850 = vpop.permute.xlu0 %1849
        %1851 = vrot.lane.b32.xlu0 %v1845, 125
        %v1852 = vpop.permute.xlu0 %1851
        %v1856 = vadd.f32 %v1832, %v1848
        %v1857 = vadd.f32 %v1833, %v1850
        %v1858 = vadd.f32 %v1834, %v1852
        %v1859 = vstv %s749
        %v1860 = vmul.f32 %v1859, %v698
        %v1861 = vmul.f32 %v1859, %v699
        %v1862 = vmul.f32 %v1859, %v700
        %v1866 = vrot.slane %v1860, 3
        %v1867 = vrot.slane %v1861, 3
        %v1868 = vsel %vm1729, %v1866, %v1867
        %v1869 = vrot.slane %v1862, 3
        %v1870 = vsel %vm1729, %v1867, %v1869
        %1871 = vrot.lane.b32.xlu0 %v1868, 125
        %v1872 = vpop.permute.xlu0 %1871
        %1873 = vrot.lane.b32.xlu0 %v1870, 125
        %v1874 = vpop.permute.xlu0 %1873
        %1875 = vrot.lane.b32.xlu0 %v1869, 125
        %v1876 = vpop.permute.xlu0 %1875
        %v1880 = vadd.f32 %v1719, %v1872
        %v1881 = vadd.f32 %v1720, %v1874
        %v1882 = vadd.f32 %v1721, %v1876
        %v1883 = vstv %s798
        %v1884 = vmul.f32 %v1883, %v701
        %v1885 = vmul.f32 %v1883, %v702
        %v1886 = vmul.f32 %v1883, %v703
        %v1890 = vrot.slane %v1884, 3
        %v1891 = vrot.slane %v1885, 3
        %v1892 = vsel %vm1729, %v1890, %v1891
        %v1893 = vrot.slane %v1886, 3
        %v1894 = vsel %vm1729, %v1891, %v1893
        %1895 = vrot.lane.b32.xlu0 %v1892, 125
        %v1896 = vpop.permute.xlu0 %1895
        %1897 = vrot.lane.b32.xlu0 %v1894, 125
        %v1898 = vpop.permute.xlu0 %1897
        %1899 = vrot.lane.b32.xlu0 %v1893, 125
        %v1900 = vpop.permute.xlu0 %1899
        %v1904 = vadd.f32 %v1880, %v1896
        %v1905 = vadd.f32 %v1881, %v1898
        %v1906 = vadd.f32 %v1882, %v1900
        %v1907 = vstv %s708
        %v1908 = vmul.f32 %v1907, %v698
        %v1909 = vmul.f32 %v1907, %v699
        %1912 = vrot.lane.b32.xlu0 %v1908, 124
        %v1913 = vpop.permute.xlu0 %1912
        %1914 = vrot.lane.b32.xlu0 %v1909, 124
        %v1915 = vpop.permute.xlu0 %1914
        %v1918 = vadd.f32 %v1761, %v1913
        %v1919 = vadd.f32 %v1762, %v1915
        %v1920 = vstv %s757
        %v1921 = vmul.f32 %v1920, %v701
        %v1922 = vmul.f32 %v1920, %v702
        %1925 = vrot.lane.b32.xlu0 %v1921, 124
        %v1926 = vpop.permute.xlu0 %1925
        %1927 = vrot.lane.b32.xlu0 %v1922, 124
        %v1928 = vpop.permute.xlu0 %1927
        %v1931 = vadd.f32 %v1918, %v1926
        %v1932 = vadd.f32 %v1919, %v1928
        %v1933 = vstv %s715
        %v1934 = vmul.f32 %v1933, %v698
        %v1935 = vmul.f32 %v1933, %v699
        %v1936 = vmul.f32 %v1933, %v700
        %1940 = vrot.lane.b32.xlu0 %v1934, 124
        %v1941 = vpop.permute.xlu0 %1940
        %1942 = vrot.lane.b32.xlu0 %v1935, 124
        %v1943 = vpop.permute.xlu0 %1942
        %1944 = vrot.lane.b32.xlu0 %v1936, 124
        %v1945 = vpop.permute.xlu0 %1944
        %v1949 = vadd.f32 %v1808, %v1941
        %v1950 = vadd.f32 %v1809, %v1943
        %v1951 = vadd.f32 %v1810, %v1945
        %v1952 = vstv %s764
        %v1953 = vmul.f32 %v1952, %v701
        %v1954 = vmul.f32 %v1952, %v702
        %v1955 = vmul.f32 %v1952, %v703
        %1959 = vrot.lane.b32.xlu0 %v1953, 124
        %v1960 = vpop.permute.xlu0 %1959
        %1961 = vrot.lane.b32.xlu0 %v1954, 124
        %v1962 = vpop.permute.xlu0 %1961
        %1963 = vrot.lane.b32.xlu0 %v1955, 124
        %v1964 = vpop.permute.xlu0 %1963
        %v1968 = vadd.f32 %v1949, %v1960
        %v1969 = vadd.f32 %v1950, %v1962
        %v1970 = vadd.f32 %v1951, %v1964
        %v1971 = vstv %s722
        %v1972 = vmul.f32 %v1971, %v698
        %v1973 = vmul.f32 %v1971, %v699
        %v1974 = vmul.f32 %v1971, %v700
        %1978 = vrot.lane.b32.xlu0 %v1972, 124
        %v1979 = vpop.permute.xlu0 %1978
        %1980 = vrot.lane.b32.xlu0 %v1973, 124
        %v1981 = vpop.permute.xlu0 %1980
        %1982 = vrot.lane.b32.xlu0 %v1974, 124
        %v1983 = vpop.permute.xlu0 %1982
        %v1987 = vadd.f32 %v1856, %v1979
        %v1988 = vadd.f32 %v1857, %v1981
        %v1989 = vadd.f32 %v1858, %v1983
        %v1990 = vstv %s771
        %v1991 = vmul.f32 %v1990, %v701
        %v1992 = vmul.f32 %v1990, %v702
        %v1993 = vmul.f32 %v1990, %v703
        %1997 = vrot.lane.b32.xlu0 %v1991, 124
        %v1998 = vpop.permute.xlu0 %1997
        %1999 = vrot.lane.b32.xlu0 %v1992, 124
        %v2000 = vpop.permute.xlu0 %1999
        %2001 = vrot.lane.b32.xlu0 %v1993, 124
        %v2002 = vpop.permute.xlu0 %2001
        %v2006 = vadd.f32 %v1987, %v1998
        %v2007 = vadd.f32 %v1988, %v2000
        %v2008 = vadd.f32 %v1989, %v2002
        %v2009 = vstv %s729
        %v2010 = vmul.f32 %v2009, %v698
        %v2011 = vmul.f32 %v2009, %v699
        %v2012 = vmul.f32 %v2009, %v700
        %2016 = vrot.lane.b32.xlu0 %v2010, 124
        %v2017 = vpop.permute.xlu0 %2016
        %2018 = vrot.lane.b32.xlu0 %v2011, 124
        %v2019 = vpop.permute.xlu0 %2018
        %2020 = vrot.lane.b32.xlu0 %v2012, 124
        %v2021 = vpop.permute.xlu0 %2020
        %v2025 = vadd.f32 %v1904, %v2017
        %v2026 = vadd.f32 %v1905, %v2019
        %v2027 = vadd.f32 %v1906, %v2021
        %v2028 = vstv %s778
        %v2029 = vmul.f32 %v2028, %v701
        %v2030 = vmul.f32 %v2028, %v702
        %v2031 = vmul.f32 %v2028, %v703
        %2035 = vrot.lane.b32.xlu0 %v2029, 124
        %v2036 = vpop.permute.xlu0 %2035
        %2037 = vrot.lane.b32.xlu0 %v2030, 124
        %v2038 = vpop.permute.xlu0 %2037
        %2039 = vrot.lane.b32.xlu0 %v2031, 124
        %v2040 = vpop.permute.xlu0 %2039
        %v2044 = vadd.f32 %v2025, %v2036
        %v2045 = vadd.f32 %v2026, %v2038
        %v2046 = vadd.f32 %v2027, %v2040
        %v2047 = vstv %s736
        %v2048 = vmul.f32 %v2047, %v698
        %v2049 = vmul.f32 %v2047, %v699
        %v2050 = vmul.f32 %v2047, %v700
        %v2054 = vrot.slane %v2048, 4
        %v2055 = vrot.slane %v2049, 4
        %v2056 = vsel %vm861, %v2054, %v2055
        %v2057 = vrot.slane %v2050, 4
        %v2058 = vsel %vm861, %v2055, %v2057
        %2059 = vrot.lane.b32.xlu0 %v2056, 124
        %v2060 = vpop.permute.xlu0 %2059
        %2061 = vrot.lane.b32.xlu0 %v2058, 124
        %v2062 = vpop.permute.xlu0 %2061
        %v2065 = vadd.f32 %v1931, %v2060
        %v2066 = vadd.f32 %v1932, %v2062
        %v2067 = vstv %s785
        %v2068 = vmul.f32 %v2067, %v701
        %v2069 = vmul.f32 %v2067, %v702
        %v2070 = vmul.f32 %v2067, %v703
        %v2074 = vrot.slane %v2068, 4
        %v2075 = vrot.slane %v2069, 4
        %v2076 = vsel %vm861, %v2074, %v2075
        %v2077 = vrot.slane %v2070, 4
        %v2078 = vsel %vm861, %v2075, %v2077
        %2079 = vrot.lane.b32.xlu0 %v2076, 124
        %v2080 = vpop.permute.xlu0 %2079
        %2081 = vrot.lane.b32.xlu0 %v2078, 124
        %v2082 = vpop.permute.xlu0 %2081
        %v2085 = vadd.f32 %v2065, %v2080
        %v2086 = vadd.f32 %v2066, %v2082
        %v2087 = vstv %s743
        %v2088 = vmul.f32 %v2087, %v698
        %v2089 = vmul.f32 %v2087, %v699
        %v2090 = vmul.f32 %v2087, %v700
        %v2094 = vrot.slane %v2088, 4
        %v2095 = vrot.slane %v2089, 4
        %v2096 = vsel %vm861, %v2094, %v2095
        %v2097 = vrot.slane %v2090, 4
        %v2098 = vsel %vm861, %v2095, %v2097
        %2099 = vrot.lane.b32.xlu0 %v2096, 124
        %v2100 = vpop.permute.xlu0 %2099
        %2101 = vrot.lane.b32.xlu0 %v2098, 124
        %v2102 = vpop.permute.xlu0 %2101
        %2103 = vrot.lane.b32.xlu0 %v2097, 124
        %v2104 = vpop.permute.xlu0 %2103
        %v2108 = vadd.f32 %v1968, %v2100
        %v2109 = vadd.f32 %v1969, %v2102
        %v2110 = vadd.f32 %v1970, %v2104
        %v2111 = vstv %s792
        %v2112 = vmul.f32 %v2111, %v701
        %v2113 = vmul.f32 %v2111, %v702
        %v2114 = vmul.f32 %v2111, %v703
        %v2118 = vrot.slane %v2112, 4
        %v2119 = vrot.slane %v2113, 4
        %v2120 = vsel %vm861, %v2118, %v2119
        %v2121 = vrot.slane %v2114, 4
        %v2122 = vsel %vm861, %v2119, %v2121
        %2123 = vrot.lane.b32.xlu0 %v2120, 124
        %v2124 = vpop.permute.xlu0 %2123
        %2125 = vrot.lane.b32.xlu0 %v2122, 124
        %v2126 = vpop.permute.xlu0 %2125
        %2127 = vrot.lane.b32.xlu0 %v2121, 124
        %v2128 = vpop.permute.xlu0 %2127
        %v2132 = vadd.f32 %v2108, %v2124
        %v2133 = vadd.f32 %v2109, %v2126
        %v2134 = vadd.f32 %v2110, %v2128
        %v2135 = vstv %s750
        %v2136 = vmul.f32 %v2135, %v698
        %v2137 = vmul.f32 %v2135, %v699
        %v2138 = vmul.f32 %v2135, %v700
        %v2142 = vrot.slane %v2136, 4
        %v2143 = vrot.slane %v2137, 4
        %v2144 = vsel %vm861, %v2142, %v2143
        %v2145 = vrot.slane %v2138, 4
        %v2146 = vsel %vm861, %v2143, %v2145
        %2147 = vrot.lane.b32.xlu0 %v2144, 124
        %v2148 = vpop.permute.xlu0 %2147
        %2149 = vrot.lane.b32.xlu0 %v2146, 124
        %v2150 = vpop.permute.xlu0 %2149
        %2151 = vrot.lane.b32.xlu0 %v2145, 124
        %v2152 = vpop.permute.xlu0 %2151
        %v2156 = vadd.f32 %v2006, %v2148
        %v2157 = vadd.f32 %v2007, %v2150
        %v2158 = vadd.f32 %v2008, %v2152
        %v2159 = vstv %s799
        %v2160 = vmul.f32 %v2159, %v701
        %v2161 = vmul.f32 %v2159, %v702
        %v2162 = vmul.f32 %v2159, %v703
        %v2166 = vrot.slane %v2160, 4
        %v2167 = vrot.slane %v2161, 4
        %v2168 = vsel %vm861, %v2166, %v2167
        %v2169 = vrot.slane %v2162, 4
        %v2170 = vsel %vm861, %v2167, %v2169
        %2171 = vrot.lane.b32.xlu0 %v2168, 124
        %v2172 = vpop.permute.xlu0 %2171
        %2173 = vrot.lane.b32.xlu0 %v2170, 124
        %v2174 = vpop.permute.xlu0 %2173
        %2175 = vrot.lane.b32.xlu0 %v2169, 124
        %v2176 = vpop.permute.xlu0 %2175
        %v2180 = vadd.f32 %v2156, %v2172
        %v2181 = vadd.f32 %v2157, %v2174
        %v2182 = vadd.f32 %v2158, %v2176
        %v2183 = vstv %s709
        %v2184 = vmul.f32 %v2183, %v698
        %v2185 = vmul.f32 %v2183, %v699
        %v2188 = vrot.slane %v2184, 5
        %v2189 = vrot.slane %v2185, 5
        %v2190 = vsel %vm964, %v2188, %v2189
        %2191 = vrot.lane.b32.xlu0 %v2188, 123
        %v2192 = vpop.permute.xlu0 %2191
        %2193 = vrot.lane.b32.xlu0 %v2190, 123
        %v2194 = vpop.permute.xlu0 %2193
        %2195 = vrot.lane.b32.xlu0 %v2189, 123
        %v2196 = vpop.permute.xlu0 %2195
        %v2200 = vadd.f32 %v2044, %v2192
        %v2201 = vadd.f32 %v2045, %v2194
        %v2202 = vadd.f32 %v2046, %v2196
        %v2203 = vstv %s758
        %v2204 = vmul.f32 %v2203, %v701
        %v2205 = vmul.f32 %v2203, %v702
        %v2208 = vrot.slane %v2204, 5
        %v2209 = vrot.slane %v2205, 5
        %v2210 = vsel %vm964, %v2208, %v2209
        %2211 = vrot.lane.b32.xlu0 %v2208, 123
        %v2212 = vpop.permute.xlu0 %2211
        %2213 = vrot.lane.b32.xlu0 %v2210, 123
        %v2214 = vpop.permute.xlu0 %2213
        %2215 = vrot.lane.b32.xlu0 %v2209, 123
        %v2216 = vpop.permute.xlu0 %2215
        %v2220 = vadd.f32 %v2200, %v2212
        %v2221 = vadd.f32 %v2201, %v2214
        %v2222 = vadd.f32 %v2202, %v2216
        %v2223 = vstv %s716
        %v2224 = vmul.f32 %v2223, %v698
        %v2225 = vmul.f32 %v2223, %v699
        %v2226 = vmul.f32 %v2223, %v700
        %v2230 = vrot.slane %v2224, 1
        %v2231 = vrot.slane %v2225, 1
        %v2232 = vsel %vm1007, %v2230, %v2231
        %v2233 = vrot.slane %v2226, 1
        %v2234 = vsel %vm1007, %v2231, %v2233
        %2235 = vrot.lane.b32.xlu0 %v2232, 123
        %v2236 = vpop.permute.xlu0 %2235
        %2237 = vrot.lane.b32.xlu0 %v2234, 123
        %v2238 = vpop.permute.xlu0 %2237
        %v2241 = vadd.f32 %v2085, %v2236
        %v2242 = vadd.f32 %v2086, %v2238
        %v2243 = vstv %s765
        %v2244 = vmul.f32 %v2243, %v701
        %v2245 = vmul.f32 %v2243, %v702
        %v2246 = vmul.f32 %v2243, %v703
        %v2250 = vrot.slane %v2244, 1
        %v2251 = vrot.slane %v2245, 1
        %v2252 = vsel %vm1007, %v2250, %v2251
        %v2253 = vrot.slane %v2246, 1
        %v2254 = vsel %vm1007, %v2251, %v2253
        %2255 = vrot.lane.b32.xlu0 %v2252, 123
        %v2256 = vpop.permute.xlu0 %2255
        %2257 = vrot.lane.b32.xlu0 %v2254, 123
        %v2258 = vpop.permute.xlu0 %2257
        %v2261 = vadd.f32 %v2241, %v2256
        %v2262 = vadd.f32 %v2242, %v2258
        %v2263 = vstv %s723
        %v2264 = vmul.f32 %v2263, %v698
        %v2265 = vmul.f32 %v2263, %v699
        %v2266 = vmul.f32 %v2263, %v700
        %v2270 = vrot.slane %v2264, 1
        %v2271 = vrot.slane %v2265, 1
        %v2272 = vsel %vm1007, %v2270, %v2271
        %v2273 = vrot.slane %v2266, 1
        %v2274 = vsel %vm1007, %v2271, %v2273
        %2275 = vrot.lane.b32.xlu0 %v2272, 123
        %v2276 = vpop.permute.xlu0 %2275
        %2277 = vrot.lane.b32.xlu0 %v2274, 123
        %v2278 = vpop.permute.xlu0 %2277
        %2279 = vrot.lane.b32.xlu0 %v2273, 123
        %v2280 = vpop.permute.xlu0 %2279
        %v2284 = vadd.f32 %v2132, %v2276
        %v2285 = vadd.f32 %v2133, %v2278
        %v2286 = vadd.f32 %v2134, %v2280
        %v2287 = vstv %s772
        %v2288 = vmul.f32 %v2287, %v701
        %v2289 = vmul.f32 %v2287, %v702
        %v2290 = vmul.f32 %v2287, %v703
        %v2294 = vrot.slane %v2288, 1
        %v2295 = vrot.slane %v2289, 1
        %v2296 = vsel %vm1007, %v2294, %v2295
        %v2297 = vrot.slane %v2290, 1
        %v2298 = vsel %vm1007, %v2295, %v2297
        %2299 = vrot.lane.b32.xlu0 %v2296, 123
        %v2300 = vpop.permute.xlu0 %2299
        %2301 = vrot.lane.b32.xlu0 %v2298, 123
        %v2302 = vpop.permute.xlu0 %2301
        %2303 = vrot.lane.b32.xlu0 %v2297, 123
        %v2304 = vpop.permute.xlu0 %2303
        %v2308 = vadd.f32 %v2284, %v2300
        %v2309 = vadd.f32 %v2285, %v2302
        %v2310 = vadd.f32 %v2286, %v2304
        %v2311 = vstv %s730
        %v2312 = vmul.f32 %v2311, %v698
        %v2313 = vmul.f32 %v2311, %v699
        %v2314 = vmul.f32 %v2311, %v700
        %v2318 = vrot.slane %v2312, 1
        %v2319 = vrot.slane %v2313, 1
        %v2320 = vsel %vm1007, %v2318, %v2319
        %v2321 = vrot.slane %v2314, 1
        %v2322 = vsel %vm1007, %v2319, %v2321
        %2323 = vrot.lane.b32.xlu0 %v2320, 123
        %v2324 = vpop.permute.xlu0 %2323
        %2325 = vrot.lane.b32.xlu0 %v2322, 123
        %v2326 = vpop.permute.xlu0 %2325
        %2327 = vrot.lane.b32.xlu0 %v2321, 123
        %v2328 = vpop.permute.xlu0 %2327
        %v2332 = vadd.f32 %v2180, %v2324
        %v2333 = vadd.f32 %v2181, %v2326
        %v2334 = vadd.f32 %v2182, %v2328
        %v2335 = vstv %s779
        %v2336 = vmul.f32 %v2335, %v701
        %v2337 = vmul.f32 %v2335, %v702
        %v2338 = vmul.f32 %v2335, %v703
        %v2342 = vrot.slane %v2336, 1
        %v2343 = vrot.slane %v2337, 1
        %v2344 = vsel %vm1007, %v2342, %v2343
        %v2345 = vrot.slane %v2338, 1
        %v2346 = vsel %vm1007, %v2343, %v2345
        %2347 = vrot.lane.b32.xlu0 %v2344, 123
        %v2348 = vpop.permute.xlu0 %2347
        %2349 = vrot.lane.b32.xlu0 %v2346, 123
        %v2350 = vpop.permute.xlu0 %2349
        %2351 = vrot.lane.b32.xlu0 %v2345, 123
        %v2352 = vpop.permute.xlu0 %2351
        %v2356 = vadd.f32 %v2332, %v2348
        %v2357 = vadd.f32 %v2333, %v2350
        %v2358 = vadd.f32 %v2334, %v2352
        %v2359 = vstv %s737
        %v2360 = vmul.f32 %v2359, %v698
        %v2361 = vmul.f32 %v2359, %v699
        %v2362 = vmul.f32 %v2359, %v700
        %v2366 = vrot.slane %v2360, 1
        %v2367 = vrot.slane %v2361, 1
        %v2368 = vsel %vm1007, %v2366, %v2367
        %v2369 = vrot.slane %v2362, 1
        %v2370 = vsel %vm1007, %v2367, %v2369
        %2371 = vrot.lane.b32.xlu0 %v2368, 123
        %v2372 = vpop.permute.xlu0 %2371
        %2373 = vrot.lane.b32.xlu0 %v2370, 123
        %v2374 = vpop.permute.xlu0 %2373
        %2375 = vrot.lane.b32.xlu0 %v2369, 123
        %v2376 = vpop.permute.xlu0 %2375
        %v2380 = vadd.f32 %v2220, %v2372
        %v2381 = vadd.f32 %v2221, %v2374
        %v2382 = vadd.f32 %v2222, %v2376
        %v2383 = vstv %s786
        %v2384 = vmul.f32 %v2383, %v701
        %v2385 = vmul.f32 %v2383, %v702
        %v2386 = vmul.f32 %v2383, %v703
        %v2390 = vrot.slane %v2384, 1
        %v2391 = vrot.slane %v2385, 1
        %v2392 = vsel %vm1007, %v2390, %v2391
        %v2393 = vrot.slane %v2386, 1
        %v2394 = vsel %vm1007, %v2391, %v2393
        %2395 = vrot.lane.b32.xlu0 %v2392, 123
        %v2396 = vpop.permute.xlu0 %2395
        %2397 = vrot.lane.b32.xlu0 %v2394, 123
        %v2398 = vpop.permute.xlu0 %2397
        %2399 = vrot.lane.b32.xlu0 %v2393, 123
        %v2400 = vpop.permute.xlu0 %2399
        %v2404 = vadd.f32 %v2380, %v2396
        %v2405 = vadd.f32 %v2381, %v2398
        %v2406 = vadd.f32 %v2382, %v2400
        %v2407 = vstv %s744
        %v2408 = vmul.f32 %v2407, %v698
        %v2409 = vmul.f32 %v2407, %v699
        %v2410 = vmul.f32 %v2407, %v700
        %v2414 = vrot.slane %v2408, 5
        %v2415 = vrot.slane %v2409, 5
        %v2416 = vsel %vm964, %v2414, %v2415
        %v2417 = vrot.slane %v2410, 5
        %v2418 = vsel %vm964, %v2415, %v2417
        %2419 = vrot.lane.b32.xlu0 %v2416, 123
        %v2420 = vpop.permute.xlu0 %2419
        %2421 = vrot.lane.b32.xlu0 %v2418, 123
        %v2422 = vpop.permute.xlu0 %2421
        %v2425 = vadd.f32 %v2261, %v2420
        %v2426 = vadd.f32 %v2262, %v2422
        %v2427 = vstv %s793
        %v2428 = vmul.f32 %v2427, %v701
        %v2429 = vmul.f32 %v2427, %v702
        %v2430 = vmul.f32 %v2427, %v703
        %v2434 = vrot.slane %v2428, 5
        %v2435 = vrot.slane %v2429, 5
        %v2436 = vsel %vm964, %v2434, %v2435
        %v2437 = vrot.slane %v2430, 5
        %v2438 = vsel %vm964, %v2435, %v2437
        %2439 = vrot.lane.b32.xlu0 %v2436, 123
        %v2440 = vpop.permute.xlu0 %2439
        %2441 = vrot.lane.b32.xlu0 %v2438, 123
        %v2442 = vpop.permute.xlu0 %2441
        %v2445 = vadd.f32 %v2425, %v2440
        %v2446 = vadd.f32 %v2426, %v2442
        %v2447 = vstv %s751
        %v2448 = vmul.f32 %v2447, %v698
        %v2449 = vmul.f32 %v2447, %v699
        %v2450 = vmul.f32 %v2447, %v700
        %v2454 = vrot.slane %v2448, 5
        %v2455 = vrot.slane %v2449, 5
        %v2456 = vsel %vm964, %v2454, %v2455
        %v2457 = vrot.slane %v2450, 5
        %v2458 = vsel %vm964, %v2455, %v2457
        %2459 = vrot.lane.b32.xlu0 %v2456, 123
        %v2460 = vpop.permute.xlu0 %2459
        %2461 = vrot.lane.b32.xlu0 %v2458, 123
        %v2462 = vpop.permute.xlu0 %2461
        %2463 = vrot.lane.b32.xlu0 %v2457, 123
        %v2464 = vpop.permute.xlu0 %2463
        %v2468 = vadd.f32 %v2308, %v2460
        %v2469 = vadd.f32 %v2309, %v2462
        %v2470 = vadd.f32 %v2310, %v2464
        %v2471 = vstv %s800
        %v2472 = vmul.f32 %v2471, %v701
        %v2473 = vmul.f32 %v2471, %v702
        %v2474 = vmul.f32 %v2471, %v703
        %v2478 = vrot.slane %v2472, 5
        %v2479 = vrot.slane %v2473, 5
        %v2480 = vsel %vm964, %v2478, %v2479
        %v2481 = vrot.slane %v2474, 5
        %v2482 = vsel %vm964, %v2479, %v2481
        %2483 = vrot.lane.b32.xlu0 %v2480, 123
        %v2484 = vpop.permute.xlu0 %2483
        %2485 = vrot.lane.b32.xlu0 %v2482, 123
        %v2486 = vpop.permute.xlu0 %2485
        %2487 = vrot.lane.b32.xlu0 %v2481, 123
        %v2488 = vpop.permute.xlu0 %2487
        %v2492 = vadd.f32 %v2468, %v2484
        %v2493 = vadd.f32 %v2469, %v2486
        %v2494 = vadd.f32 %v2470, %v2488
        %v2495 = vstv %s710
        %v2496 = vmul.f32 %v2495, %v698
        %v2497 = vmul.f32 %v2495, %v699
        %v2500 = vrot.slane %v2496, 6
        %v2501 = vrot.slane %v2497, 6
        %v2502 = vsel %vm409, %v2500, %v2501
        %2503 = vrot.lane.b32.xlu0 %v2500, 122
        %v2504 = vpop.permute.xlu0 %2503
        %2505 = vrot.lane.b32.xlu0 %v2502, 122
        %v2506 = vpop.permute.xlu0 %2505
        %2507 = vrot.lane.b32.xlu0 %v2501, 122
        %v2508 = vpop.permute.xlu0 %2507
        %v2512 = vadd.f32 %v2356, %v2504
        %v2513 = vadd.f32 %v2357, %v2506
        %v2514 = vadd.f32 %v2358, %v2508
        %v2515 = vstv %s759
        %v2516 = vmul.f32 %v2515, %v701
        %v2517 = vmul.f32 %v2515, %v702
        %v2520 = vrot.slane %v2516, 6
        %v2521 = vrot.slane %v2517, 6
        %v2522 = vsel %vm409, %v2520, %v2521
        %2523 = vrot.lane.b32.xlu0 %v2520, 122
        %v2524 = vpop.permute.xlu0 %2523
        %2525 = vrot.lane.b32.xlu0 %v2522, 122
        %v2526 = vpop.permute.xlu0 %2525
        %2527 = vrot.lane.b32.xlu0 %v2521, 122
        %v2528 = vpop.permute.xlu0 %2527
        %v2532 = vadd.f32 %v2512, %v2524
        %v2533 = vadd.f32 %v2513, %v2526
        %v2534 = vadd.f32 %v2514, %v2528
        %v2535 = vstv %s717
        %v2536 = vmul.f32 %v2535, %v698
        %v2537 = vmul.f32 %v2535, %v699
        %v2538 = vmul.f32 %v2535, %v700
        %v2542 = vrot.slane %v2536, 6
        %v2543 = vrot.slane %v2537, 6
        %v2544 = vsel %vm409, %v2542, %v2543
        %v2545 = vrot.slane %v2538, 6
        %v2546 = vsel %vm409, %v2543, %v2545
        %2547 = vrot.lane.b32.xlu0 %v2542, 122
        %v2548 = vpop.permute.xlu0 %2547
        %2549 = vrot.lane.b32.xlu0 %v2544, 122
        %v2550 = vpop.permute.xlu0 %2549
        %2551 = vrot.lane.b32.xlu0 %v2546, 122
        %v2552 = vpop.permute.xlu0 %2551
        %v2556 = vadd.f32 %v2404, %v2548
        %v2557 = vadd.f32 %v2405, %v2550
        %v2558 = vadd.f32 %v2406, %v2552
        %v2559 = vstv %s766
        %v2560 = vmul.f32 %v2559, %v701
        %v2561 = vmul.f32 %v2559, %v702
        %v2562 = vmul.f32 %v2559, %v703
        %v2566 = vrot.slane %v2560, 6
        %v2567 = vrot.slane %v2561, 6
        %v2568 = vsel %vm409, %v2566, %v2567
        %v2569 = vrot.slane %v2562, 6
        %v2570 = vsel %vm409, %v2567, %v2569
        %2571 = vrot.lane.b32.xlu0 %v2566, 122
        %v2572 = vpop.permute.xlu0 %2571
        %2573 = vrot.lane.b32.xlu0 %v2568, 122
        %v2574 = vpop.permute.xlu0 %2573
        %2575 = vrot.lane.b32.xlu0 %v2570, 122
        %v2576 = vpop.permute.xlu0 %2575
        %v2580 = vadd.f32 %v2556, %v2572
        %v2581 = vadd.f32 %v2557, %v2574
        %v2582 = vadd.f32 %v2558, %v2576
        %v2583 = vstv %s724
        %v2584 = vmul.f32 %v2583, %v698
        %v2585 = vmul.f32 %v2583, %v699
        %v2586 = vmul.f32 %v2583, %v700
        %v2590 = vrot.slane %v2584, 2
        %v2591 = vrot.slane %v2585, 2
        %v2592 = vsel %vm1368, %v2590, %v2591
        %v2593 = vrot.slane %v2586, 2
        %v2594 = vsel %vm1368, %v2591, %v2593
        %2595 = vrot.lane.b32.xlu0 %v2592, 122
        %v2596 = vpop.permute.xlu0 %2595
        %2597 = vrot.lane.b32.xlu0 %v2594, 122
        %v2598 = vpop.permute.xlu0 %2597
        %v2601 = vadd.f32 %v2445, %v2596
        %v2602 = vadd.f32 %v2446, %v2598
        %v2603 = vstv %s773
        %v2604 = vmul.f32 %v2603, %v701
        %v2605 = vmul.f32 %v2603, %v702
        %v2606 = vmul.f32 %v2603, %v703
        %v2610 = vrot.slane %v2604, 2
        %v2611 = vrot.slane %v2605, 2
        %v2612 = vsel %vm1368, %v2610, %v2611
        %v2613 = vrot.slane %v2606, 2
        %v2614 = vsel %vm1368, %v2611, %v2613
        %2615 = vrot.lane.b32.xlu0 %v2612, 122
        %v2616 = vpop.permute.xlu0 %2615
        %2617 = vrot.lane.b32.xlu0 %v2614, 122
        %v2618 = vpop.permute.xlu0 %2617
        %v2621 = vadd.f32 %v2601, %v2616
        %v2622 = vadd.f32 %v2602, %v2618
        %v2623 = vstv %s731
        %v2624 = vmul.f32 %v2623, %v698
        %v2625 = vmul.f32 %v2623, %v699
        %v2626 = vmul.f32 %v2623, %v700
        %v2630 = vrot.slane %v2624, 2
        %v2631 = vrot.slane %v2625, 2
        %v2632 = vsel %vm1368, %v2630, %v2631
        %v2633 = vrot.slane %v2626, 2
        %v2634 = vsel %vm1368, %v2631, %v2633
        %2635 = vrot.lane.b32.xlu0 %v2632, 122
        %v2636 = vpop.permute.xlu0 %2635
        %2637 = vrot.lane.b32.xlu0 %v2634, 122
        %v2638 = vpop.permute.xlu0 %2637
        %2639 = vrot.lane.b32.xlu0 %v2633, 122
        %v2640 = vpop.permute.xlu0 %2639
        %v2644 = vadd.f32 %v2492, %v2636
        %v2645 = vadd.f32 %v2493, %v2638
        %v2646 = vadd.f32 %v2494, %v2640
        %v2647 = vstv %s780
        %v2648 = vmul.f32 %v2647, %v701
        %v2649 = vmul.f32 %v2647, %v702
        %v2650 = vmul.f32 %v2647, %v703
        %v2654 = vrot.slane %v2648, 2
        %v2655 = vrot.slane %v2649, 2
        %v2656 = vsel %vm1368, %v2654, %v2655
        %v2657 = vrot.slane %v2650, 2
        %v2658 = vsel %vm1368, %v2655, %v2657
        %2659 = vrot.lane.b32.xlu0 %v2656, 122
        %v2660 = vpop.permute.xlu0 %2659
        %2661 = vrot.lane.b32.xlu0 %v2658, 122
        %v2662 = vpop.permute.xlu0 %2661
        %2663 = vrot.lane.b32.xlu0 %v2657, 122
        %v2664 = vpop.permute.xlu0 %2663
        %v2668 = vadd.f32 %v2644, %v2660
        %v2669 = vadd.f32 %v2645, %v2662
        %v2670 = vadd.f32 %v2646, %v2664
        %v2671 = vstv %s738
        %v2672 = vmul.f32 %v2671, %v698
        %v2673 = vmul.f32 %v2671, %v699
        %v2674 = vmul.f32 %v2671, %v700
        %v2678 = vrot.slane %v2672, 2
        %v2679 = vrot.slane %v2673, 2
        %v2680 = vsel %vm1368, %v2678, %v2679
        %v2681 = vrot.slane %v2674, 2
        %v2682 = vsel %vm1368, %v2679, %v2681
        %2683 = vrot.lane.b32.xlu0 %v2680, 122
        %v2684 = vpop.permute.xlu0 %2683
        %2685 = vrot.lane.b32.xlu0 %v2682, 122
        %v2686 = vpop.permute.xlu0 %2685
        %2687 = vrot.lane.b32.xlu0 %v2681, 122
        %v2688 = vpop.permute.xlu0 %2687
        %v2692 = vadd.f32 %v2532, %v2684
        %v2693 = vadd.f32 %v2533, %v2686
        %v2694 = vadd.f32 %v2534, %v2688
        %v2695 = vstv %s787
        %v2696 = vmul.f32 %v2695, %v701
        %v2697 = vmul.f32 %v2695, %v702
        %v2698 = vmul.f32 %v2695, %v703
        %v2702 = vrot.slane %v2696, 2
        %v2703 = vrot.slane %v2697, 2
        %v2704 = vsel %vm1368, %v2702, %v2703
        %v2705 = vrot.slane %v2698, 2
        %v2706 = vsel %vm1368, %v2703, %v2705
        %2707 = vrot.lane.b32.xlu0 %v2704, 122
        %v2708 = vpop.permute.xlu0 %2707
        %2709 = vrot.lane.b32.xlu0 %v2706, 122
        %v2710 = vpop.permute.xlu0 %2709
        %2711 = vrot.lane.b32.xlu0 %v2705, 122
        %v2712 = vpop.permute.xlu0 %2711
        %v2716 = vadd.f32 %v2692, %v2708
        %v2717 = vadd.f32 %v2693, %v2710
        %v2718 = vadd.f32 %v2694, %v2712
        %v2719 = vstv %s745
        %v2720 = vmul.f32 %v2719, %v698
        %v2721 = vmul.f32 %v2719, %v699
        %v2722 = vmul.f32 %v2719, %v700
        %v2726 = vrot.slane %v2720, 2
        %v2727 = vrot.slane %v2721, 2
        %v2728 = vsel %vm1368, %v2726, %v2727
        %v2729 = vrot.slane %v2722, 2
        %v2730 = vsel %vm1368, %v2727, %v2729
        %2731 = vrot.lane.b32.xlu0 %v2728, 122
        %v2732 = vpop.permute.xlu0 %2731
        %2733 = vrot.lane.b32.xlu0 %v2730, 122
        %v2734 = vpop.permute.xlu0 %2733
        %2735 = vrot.lane.b32.xlu0 %v2729, 122
        %v2736 = vpop.permute.xlu0 %2735
        %v2740 = vadd.f32 %v2580, %v2732
        %v2741 = vadd.f32 %v2581, %v2734
        %v2742 = vadd.f32 %v2582, %v2736
        %v2743 = vstv %s794
        %v2744 = vmul.f32 %v2743, %v701
        %v2745 = vmul.f32 %v2743, %v702
        %v2746 = vmul.f32 %v2743, %v703
        %v2750 = vrot.slane %v2744, 2
        %v2751 = vrot.slane %v2745, 2
        %v2752 = vsel %vm1368, %v2750, %v2751
        %v2753 = vrot.slane %v2746, 2
        %v2754 = vsel %vm1368, %v2751, %v2753
        %2755 = vrot.lane.b32.xlu0 %v2752, 122
        %v2756 = vpop.permute.xlu0 %2755
        %2757 = vrot.lane.b32.xlu0 %v2754, 122
        %v2758 = vpop.permute.xlu0 %2757
        %2759 = vrot.lane.b32.xlu0 %v2753, 122
        %v2760 = vpop.permute.xlu0 %2759
        %v2764 = vadd.f32 %v2740, %v2756
        %v2765 = vadd.f32 %v2741, %v2758
        %v2766 = vadd.f32 %v2742, %v2760
        %v2767 = vstv %s752
        %v2768 = vmul.f32 %v2767, %v698
        %v2769 = vmul.f32 %v2767, %v699
        %v2770 = vmul.f32 %v2767, %v700
        %v2774 = vrot.slane %v2768, 6
        %v2775 = vrot.slane %v2769, 6
        %v2776 = vsel %vm409, %v2774, %v2775
        %v2777 = vrot.slane %v2770, 6
        %v2778 = vsel %vm409, %v2775, %v2777
        %2779 = vrot.lane.b32.xlu0 %v2776, 122
        %v2780 = vpop.permute.xlu0 %2779
        %2781 = vrot.lane.b32.xlu0 %v2778, 122
        %v2782 = vpop.permute.xlu0 %2781
        %v2785 = vadd.f32 %v2621, %v2780
        %v2786 = vadd.f32 %v2622, %v2782
        %v2787 = vstv %s801
        %v2788 = vmul.f32 %v2787, %v701
        %v2789 = vmul.f32 %v2787, %v702
        %v2790 = vmul.f32 %v2787, %v703
        %v2794 = vrot.slane %v2788, 6
        %v2795 = vrot.slane %v2789, 6
        %v2796 = vsel %vm409, %v2794, %v2795
        %v2797 = vrot.slane %v2790, 6
        %v2798 = vsel %vm409, %v2795, %v2797
        %2799 = vrot.lane.b32.xlu0 %v2796, 122
        %v2800 = vpop.permute.xlu0 %2799
        %2801 = vrot.lane.b32.xlu0 %v2798, 122
        %v2802 = vpop.permute.xlu0 %2801
        %v2805 = vadd.f32 %v2785, %v2800
        %v2806 = vadd.f32 %v2786, %v2802
        %v2810 = vrot.slane %v2764, 3
        %v2811 = vrot.slane %v2765, 3
        %v2812 = vsel %vm1729, %v2810, %v2811
        %v2813 = vrot.slane %v2766, 3
        %v2814 = vsel %vm1729, %v2811, %v2813
        %v2817 = vadd.f32 %v2805, %v2812
        %v2818 = vadd.f32 %v2806, %v2814
        %v2822 = vrot.slane %v2668, 7
        %v2823 = vrot.slane %v2669, 7
        %v2824 = vsel %vm323, %v2822, %v2823
        %v2825 = vrot.slane %v2670, 7
        %v2826 = vsel %vm323, %v2823, %v2825
        %v2830 = vadd.f32 %v2716, %v2822
        %v2831 = vadd.f32 %v2717, %v2824
        %v2832 = vadd.f32 %v2718, %v2826
        %v2836 = vrot.slane %v2830, 2
        %v2837 = vrot.slane %v2831, 2
        %v2838 = vsel %vm1368, %v2836, %v2837
        %v2839 = vrot.slane %v2832, 2
        %v2840 = vsel %vm1368, %v2837, %v2839
        %v2843 = vadd.f32 %v2817, %v2838
        %v2844 = vadd.f32 %v2818, %v2840
        %v2845 = vxor.u32 %v2843, 2147483648
        %v2846 = vxor.u32 %v2844, 2147483648
        %v2847 = vmul.f32 %v2845, 1.442695
        %v2848 = vpow.pop %v2847
        %v2849 = vmul.f32 %v2846, 1.442695
        %v2850 = vpow.pop %v2849
        %v2851 = vadd.f32 %v2848, 1.0
        %v2852 = vadd.f32 %v2850, 1.0
        %v2853 = vrcp.pop %v2851
        %v2854 = vmul.f32 1.0, %v2853
        %v2855 = vrcp.pop %v2852
        %v2856 = vmul.f32 1.0, %v2855
        %v2857 = vlaneseq
        %vm2858 = vcmp.ge.s32.totalorder %v2857, 0
        %vm2859 = vcmp.lt.s32.totalorder %v2857, 16
        %vm2860 = vmand %vm2858, %vm2859
        %2861 = vst.msk [vmem:[#allocation4] sm:$0x1] %vm2860, %v2854
        %v2864 = vunpack.c.l.s4 1966171168
        %v2865 = vunpack.c.0.s8 %v2864
        %v2866 = vlaneseq
        %v2867 = vshrl.u32 %v2866, 7
        %v2868 = vsub.s32 %v2865, %v2867
        %v2869 = vrot.slane %v2854, %v2868
        %v2870 = vcombine.high %v2869, %v2869
        %v2872 = vunpack.c.l.s4 1966171168
        %v2873 = vunpack.c.0.s8 %v2872
        %v2874 = vlaneseq
        %v2875 = vshrl.u32 %v2874, 7
        %v2876 = vsub.s32 %v2873, %v2875
        %v2877 = vrot.slane %v2869, %v2876
        %v2879 = vunpack.c.l.s4 1966171168
        %v2880 = vunpack.c.0.s8 %v2879
        %v2881 = vlaneseq
        %v2882 = vshrl.u32 %v2881, 7
        %v2883 = vsub.s32 %v2880, %v2882
        %v2884 = vrot.slane %v2870, %v2883
        %2885 = vrot.lane.b32.xlu0 %v2884, 16
        %v2886 = vpop.permute.xlu0 %2885
        %vm2888 = vcmp.ge.s32.totalorder %v2857, 16
        %vm2889 = vcmp.lt.s32.totalorder %v2857, 32
        %vm2890 = vmand %vm2888, %vm2889
        %2891 = vst.msk [vmem:[#allocation4] sm:$0x1] %vm2890, %v2886
        %v2892 = vcombine.high %v2877, %v2877
        %2893 = vrot.lane.b32.xlu0 %v2892, 32
        %v2894 = vpop.permute.xlu0 %2893
        %vm2896 = vcmp.ge.s32.totalorder %v2857, 32
        %vm2897 = vcmp.lt.s32.totalorder %v2857, 48
        %vm2898 = vmand %vm2896, %vm2897
        %2899 = vst.msk [vmem:[#allocation4] sm:$0x1] %vm2898, %v2894
        %v2900 = vcombine.high %v2884, %v2884
        %2901 = vrot.lane.b32.xlu0 %v2900, 48
        %v2902 = vpop.permute.xlu0 %2901
        %vm2904 = vcmp.ge.s32.totalorder %v2857, 48
        %vm2905 = vcmp.lt.s32.totalorder %v2857, 64
        %vm2906 = vmand %vm2904, %vm2905
        %2907 = vst.msk [vmem:[#allocation4] sm:$0x1] %vm2906, %v2902
        %v2908 = vcombine.high %v2854, %v2854
        %v2910 = vunpack.c.l.s4 1966171168
        %v2911 = vunpack.c.0.s8 %v2910
        %v2912 = vlaneseq
        %v2913 = vshrl.u32 %v2912, 7
        %v2914 = vsub.s32 %v2911, %v2913
        %v2915 = vrot.slane %v2908, %v2914
        %v2917 = vunpack.c.l.s4 1966171168
        %v2918 = vunpack.c.0.s8 %v2917
        %v2919 = vlaneseq
        %v2920 = vshrl.u32 %v2919, 7
        %v2921 = vsub.s32 %v2918, %v2920
        %v2922 = vrot.slane %v2915, %v2921
        %2923 = vrot.lane.b32.xlu0 %v2922, 64
        %v2924 = vpop.permute.xlu0 %2923
        %vm2926 = vcmp.ge.s32.totalorder %v2857, 64
        %vm2927 = vcmp.lt.s32.totalorder %v2857, 80
        %vm2928 = vmand %vm2926, %vm2927
        %2929 = vst.msk [vmem:[#allocation4] sm:$0x1] %vm2928, %v2924
        %v2930 = vcombine.high %v2915, %v2915
        %v2932 = vunpack.c.l.s4 1966171168
        %v2933 = vunpack.c.0.s8 %v2932
        %v2934 = vlaneseq
        %v2935 = vshrl.u32 %v2934, 7
        %v2936 = vsub.s32 %v2933, %v2935
        %v2937 = vrot.slane %v2930, %v2936
        %2938 = vrot.lane.b32.xlu0 %v2937, 80
        %v2939 = vpop.permute.xlu0 %2938
        %vm2941 = vcmp.ge.s32.totalorder %v2857, 80
        %vm2942 = vcmp.lt.s32.totalorder %v2857, 96
        %vm2943 = vmand %vm2941, %vm2942
        %2944 = vst.msk [vmem:[#allocation4] sm:$0x1] %vm2943, %v2939
        %v2945 = vcombine.high %v2922, %v2922
        %2946 = vrot.lane.b32.xlu0 %v2945, 96
        %v2947 = vpop.permute.xlu0 %2946
        %vm2949 = vcmp.ge.s32.totalorder %v2857, 96
        %vm2950 = vcmp.lt.s32.totalorder %v2857, 112
        %vm2951 = vmand %vm2949, %vm2950
        %2952 = vst.msk [vmem:[#allocation4] sm:$0x1] %vm2951, %v2947
        %v2953 = vcombine.high %v2937, %v2937
        %2954 = vrot.lane.b32.xlu0 %v2953, 112
        %v2955 = vpop.permute.xlu0 %2954
        %vm2957 = vcmp.ge.s32.totalorder %v2857, 112
        %vm2958 = vcmp.lt.s32.totalorder %v2857, 128
        %vm2959 = vmand %vm2957, %vm2958
        %2960 = vst.msk [vmem:[#allocation4] sm:$0x1] %vm2959, %v2955
        %2961 = vst.msk [vmem:[#allocation4 + $0x1] sm:$0x1] %vm2860, %v2856
        %v2964 = vunpack.c.l.s4 1966171168
        %v2965 = vunpack.c.0.s8 %v2964
        %v2966 = vlaneseq
        %v2967 = vshrl.u32 %v2966, 7
        %v2968 = vsub.s32 %v2965, %v2967
        %v2969 = vrot.slane %v2856, %v2968
        %v2970 = vcombine.high %v2969, %v2969
        %v2972 = vunpack.c.l.s4 1966171168
        %v2973 = vunpack.c.0.s8 %v2972
        %v2974 = vlaneseq
        %v2975 = vshrl.u32 %v2974, 7
        %v2976 = vsub.s32 %v2973, %v2975
        %v2977 = vrot.slane %v2969, %v2976
        %v2979 = vunpack.c.l.s4 1966171168
        %v2980 = vunpack.c.0.s8 %v2979
        %v2981 = vlaneseq
        %v2982 = vshrl.u32 %v2981, 7
        %v2983 = vsub.s32 %v2980, %v2982
        %v2984 = vrot.slane %v2970, %v2983
        %2985 = vrot.lane.b32.xlu0 %v2984, 16
        %v2986 = vpop.permute.xlu0 %2985
        %2988 = vst.msk [vmem:[#allocation4 + $0x1] sm:$0x1] %vm2890, %v2986
        %v2989 = vcombine.high %v2977, %v2977
        %2990 = vrot.lane.b32.xlu0 %v2989, 32
        %v2991 = vpop.permute.xlu0 %2990
        %2993 = vst.msk [vmem:[#allocation4 + $0x1] sm:$0x1] %vm2898, %v2991
        %v2994 = vcombine.high %v2984, %v2984
        %2995 = vrot.lane.b32.xlu0 %v2994, 48
        %v2996 = vpop.permute.xlu0 %2995
        %2998 = vst.msk [vmem:[#allocation4 + $0x1] sm:$0x1] %vm2906, %v2996
        %v2999 = vcombine.high %v2856, %v2856
        %v3001 = vunpack.c.l.s4 1966171168
        %v3002 = vunpack.c.0.s8 %v3001
        %v3003 = vlaneseq
        %v3004 = vshrl.u32 %v3003, 7
        %v3005 = vsub.s32 %v3002, %v3004
        %v3006 = vrot.slane %v2999, %v3005
        %v3008 = vunpack.c.l.s4 1966171168
        %v3009 = vunpack.c.0.s8 %v3008
        %v3010 = vlaneseq
        %v3011 = vshrl.u32 %v3010, 7
        %v3012 = vsub.s32 %v3009, %v3011
        %v3013 = vrot.slane %v3006, %v3012
        %3014 = vrot.lane.b32.xlu0 %v3013, 64
        %v3015 = vpop.permute.xlu0 %3014
        %3017 = vst.msk [vmem:[#allocation4 + $0x1] sm:$0x1] %vm2928, %v3015
        %v3018 = vcombine.high %v3006, %v3006
        %v3020 = vunpack.c.l.s4 1966171168
        %v3021 = vunpack.c.0.s8 %v3020
        %v3022 = vlaneseq
        %v3023 = vshrl.u32 %v3022, 7
        %v3024 = vsub.s32 %v3021, %v3023
        %v3025 = vrot.slane %v3018, %v3024
        %3026 = vrot.lane.b32.xlu0 %v3025, 80
        %v3027 = vpop.permute.xlu0 %3026
        %3029 = vst.msk [vmem:[#allocation4 + $0x1] sm:$0x1] %vm2943, %v3027
        %v3030 = vcombine.high %v3013, %v3013
        %3031 = vrot.lane.b32.xlu0 %v3030, 96
        %v3032 = vpop.permute.xlu0 %3031
        %3034 = vst.msk [vmem:[#allocation4 + $0x1] sm:$0x1] %vm2951, %v3032
        %v3035 = vcombine.high %v3025, %v3025
        %3036 = vrot.lane.b32.xlu0 %v3035, 112
        %v3037 = vpop.permute.xlu0 %3036
        %3039 = vst.msk [vmem:[#allocation4 + $0x1] sm:$0x1] %vm2959, %v3037
        %v3040 = vld [vmem:[#allocation4] sm:$0x3]
        %v3042 = vlaneseq
        %v3043 = vshrl.u32 %v3042, 7
        %v3044 = vsub.s32 0, %v3043
        %v3045 = vrot.slane %v3040, %v3044
        %v3046 = vlaneseq
        %v3047 = vshrl.u32 %v3046, 7
        %v3048 = vsub.s32 1, %v3047
        %v3049 = vrot.slane %v3040, %v3048
        %v3052 = vmul.f32 %v512, %v3045
        %v3053 = vmul.f32 %v513, %v3049
        %v3054 = vmul.f32 %v514, %v3045
        %v3055 = vmul.f32 %v515, %v3049
        %v3056 = vmul.f32 %v516, %v3045
        %v3057 = vmul.f32 %v517, %v3049
        %v3058 = vmul.f32 %v518, %v3045
        %v3059 = vmul.f32 %v519, %v3049
        %v3060 = vadd.f32 %v3052, %v230
        %v3061 = vadd.f32 %v3053, %v231
        %v3062 = vadd.f32 %v3054, %v232
        %v3063 = vadd.f32 %v3055, %v233
        %v3064 = vadd.f32 %v3056, %v234
        %v3065 = vadd.f32 %v3057, %v235
        %v3066 = vadd.f32 %v3058, %v236
        %v3067 = vadd.f32 %v3059, %v237
        %v3068 = vmax.f32 %v3060, 0.0
        %v3069 = vmax.f32 %v3061, 0.0
        %v3070 = vmax.f32 %v3062, 0.0
        %v3071 = vmax.f32 %v3063, 0.0
        %v3072 = vmax.f32 %v3064, 0.0
        %v3073 = vmax.f32 %v3065, 0.0
        %v3074 = vmax.f32 %v3066, 0.0
        %v3075 = vmax.f32 %v3067, 0.0
        %3076 = vst [vmem:[%s229] sm:$0xff] %v3068
        %3077 = vst [vmem:[%s229 + $0x8] sm:$0xff] %v3069
        %3078 = vst [vmem:[%s229 + $0x10] sm:$0xff] %v3070
        %3079 = vst [vmem:[%s229 + $0x18] sm:$0xff] %v3071
        %3080 = vst [vmem:[%s229 + $0x20] sm:$0xff] %v3072
        %3081 = vst [vmem:[%s229 + $0x28] sm:$0xff] %v3073
        %3082 = vst [vmem:[%s229 + $0x30] sm:$0xff] %v3074
        %3083 = vst [vmem:[%s229 + $0x38] sm:$0xff] %v3075
        %s3084 = sand.u32 %s119, 1
        %s3085 = scalar_lea.sflag [#allocation7], %s3084
        %s3086 = sand.u32 %s119, 1
        %s3087 = smul.addr %s3086, 64
        %s3088 = scalar_lea.vmem [#allocation10], %s3087
        // Predicated region
        $region45: #{tpu_custom_call.1} parent=35 // pred_check
          %p3089 = pneg %p129
        $region46: #{tpu_custom_call.1} parent=35 // pred_check_branch
          %3091 = sbr.rel (%p3089) target = $region48
        $region47: #{tpu_custom_call.1} parent=35 // pred_region
          %s3093 = ssub.s32 1024, 1024
          %3094 = vsyncadd %s3085, %s3093
          %s3095 = smul.addr %s22, 8
          %s3096 = smul.addr %s3095, 128
          %s3097 = scalar_lea.hbm %s4, %s3096
          %s3098 = sshll.u32 %s3088, 4
          %s3099 = int_to_ptr.vmem [resolvable:$true] %s3098
          %3104 = dma.vmem_to_hbm [thread:$0]  %s3099, 1024, %s3097, %s3085, 256, 256, 16
        $region48: #{tpu_custom_call.1} parent=35 // pred_fallthru
          _
      $region36: #{tpu_custom_call.1} parent=5 // pred_fallthru
        _
      %p3105 = scmp.le.s32.totalorder 2, %s17
      // Predicated region
      $region49: #{tpu_custom_call.1} parent=5 // pred_check
        %p3106 = pneg %p3105
      $region50: #{tpu_custom_call.1} parent=5 // pred_check_branch
        %3108 = sbr.rel (%p3106) target = $region52
      $region51: #{tpu_custom_call.1} parent=5 // pred_region
        %s3109 = ssub.s32 %s17, 2
        // Predicated region
        $region53: #{tpu_custom_call.1} parent=51 // pred_check
          %p3110 = pneg %p135
        $region54: #{tpu_custom_call.1} parent=51 // pred_check_branch
          %3112 = sbr.rel (%p3110) target = $region56
        $region55: #{tpu_custom_call.1} parent=51 // pred_region
          %s3113 = sand.u32 %s120, 1
          %s3114 = scalar_lea.sflag [#allocation7], %s3113
          %s3115 = sand.u32 %s120, 1
          %s3116 = smul.addr %s3115, 64
          %s3117 = scalar_lea.vmem [#allocation10], %s3116
          %3118 = dma.done %s3114, 1024
        $region56: #{tpu_custom_call.1} parent=51 // pred_fallthru
          _
      $region52: #{tpu_custom_call.1} parent=5 // pred_fallthru
        _
    $region6: #{tpu_custom_call.1} parent=1 // loop_footer
      %s21 = sadd.s32 1, %s17
    $region7: #{tpu_custom_call.1} parent=1 // loop_footer_branch
      %16 = sbr.rel target = $region3
    $region8: #{tpu_custom_call.1} parent=1 // loop_exit
      _
    %3119 = vsyncpa [#allocation6], 1
    %s3120 = scalar_lea.sflag [#allocation6], 1
    %3121 = vsyncpa %s3120, 1
    %3122 = vsyncpa [#allocation7], 1
    %s3123 = scalar_lea.sflag [#allocation7], 1
    %3124 = vsyncpa %s3123, 1
    %3125 = vsyncpa [#allocation8], 1
    %s3126 = scalar_lea.sflag [#allocation8], 1
    %3127 = vsyncpa %s3126, 1

</llo_original>
